<compile_context>
chip_gen: v7x
topology: tpu7x:2x2x1
jax: 0.10.0
libtpu: 0.0.40
codegen_flags: <defaults>
</compile_context>

<pallas_src>
import jax
import jax.numpy as jnp
from jax import lax
from jax.experimental import pallas as pl
from jax.experimental.pallas import tpu as pltpu

# ---- model dims (consistent with the module's hyper-params) ------------------
EMBED_DIM = 128          # embed_dim
NUM_HEADS = 4            # num_heads
HEAD_DIM = EMBED_DIM // NUM_HEADS
CONTEXT_LEN = 64         # context_length
FF_DIM = 4 * EMBED_DIM   # dim_feedforward
NUM_LAYERS = 2           # num_decoders
VOCAB = 256              # synthetic vocab (real gpt2 tokenizer vocab not loaded)
LN_EPS = 1e-5


# ----------------------------- shared math helpers ----------------------------
def _layernorm(x, w, b, eps=LN_EPS):
    # var = E[x^2] - E[x]^2: the two cross-lane reductions are independent and
    # can pipeline through the XLU (biased variance, matches torch LayerNorm).
    m = jnp.mean(x, axis=-1, keepdims=True)
    m2 = jnp.mean(x * x, axis=-1, keepdims=True)
    return (x - m) * lax.rsqrt(m2 - m * m + eps) * w + b


def _gelu_exact(x):
    # PyTorch F.gelu default (erf form) — kept exact for module fidelity.
    return 0.5 * x * (1.0 + lax.erf(x * 0.7071067811865476))


# ----------------------------- fused forward kernel ---------------------------
def gpt2_kernel(x_ref,
                ln1w_ref, ln1b_ref, wqkv_ref, bqkv_ref, wo_ref, bo_ref,
                ln2w_ref, ln2b_ref, w1_ref, b1_ref, w2_ref, b2_ref,
                lnfw_ref, lnfb_ref, wh_ref, bh_ref,
                o_ref, x_scr):
    S, E = x_ref.shape                      # (S, E) = one sequence of the batch
    H = NUM_HEADS
    HS = H * S
    HD = E // H
    log_s = S.bit_length() - 1              # S, HD are powers of two (asserted in wrapper)
    log_hd = HD.bit_length() - 1

    layer = pl.program_id(1)
    last = pl.num_programs(1) - 1

    # residual stream persists in VMEM scratch across the layer grid axis
    @pl.when(layer == 0)
    def _():
        x_scr[...] = x_ref[...]

    x = x_scr[...]                          # (S, E) f32

    # ---- masks generated on-chip (static shapes -> a few VPU iota/compare ops,
    #      no HBM traffic / prologue DMA) -------------------------------------
    # additive causal bias, replicated across the H head blocks: (S, H*S)
    qi = lax.broadcasted_iota(jnp.int32, (S, HS), 0)
    kj = lax.broadcasted_iota(jnp.int32, (S, HS), 1) & (S - 1)
    causal = jnp.where(kj <= qi, 0.0, -1e30).astype(jnp.float32)
    # block-diagonal head mask (H*S, E): row h*S+j keeps only head-h feature cols
    r = lax.broadcasted_iota(jnp.int32, (HS, E), 0)
    c = lax.broadcasted_iota(jnp.int32, (HS, E), 1)
    hmask_bf = ((r >> log_s) == (c >> log_hd)).astype(jnp.bfloat16)

    # ---- causal multi-head self-attention (pre-norm) -------------------------
    xn = _layernorm(x, ln1w_ref[0], ln1b_ref[0])
    qkv = jnp.dot(xn.astype(jnp.bfloat16), wqkv_ref[0],
                  preferred_element_type=jnp.float32) + bqkv_ref[0]     # (S, 3E)
    # (1/sqrt(HD) is pre-folded into the Q columns of wqkv/bqkv)
    q = qkv[:, 0:E].astype(jnp.bfloat16)
    k = qkv[:, E:2 * E].astype(jnp.bfloat16)
    v = qkv[:, 2 * E:3 * E].astype(jnp.bfloat16)

    # block-diagonal head expansion of K/V: (H*S, E), masked in bf16
    kblk = jnp.concatenate([k] * H, axis=0) * hmask_bf
    vblk = jnp.concatenate([v] * H, axis=0) * hmask_bf

    # all-head scores, lane-dense (S, H*S); contraction over E (A·Bᵀ MXU feed)
    s = lax.dot_general(q, kblk, (((1,), (1,)), ((), ())),
                        preferred_element_type=jnp.float32)
    s = s + causal
    # global row max: constant shift per row cancels within each head's softmax
    s = s - jnp.max(s, axis=-1, keepdims=True)
    pb = jnp.exp(s).astype(jnp.bfloat16)                                # (S, H*S)

    # fused P·V + per-head softmax denominator: one (S,H*S) x (H*S,2E) matmul
    pv_rhs = jnp.concatenate([vblk, hmask_bf], axis=1)                  # (H*S, 2E)
    cd = jnp.dot(pb, pv_rhs, preferred_element_type=jnp.float32)        # (S, 2E)
    ctx = cd[:, 0:E] * pl.reciprocal(cd[:, E:2 * E], approx=True)       # (S, E)

    attn = jnp.dot(ctx.astype(jnp.bfloat16), wo_ref[0],
                   preferred_element_type=jnp.float32) + bo_ref[0]
    x = x + attn

    # ---- feed-forward (pre-norm) ----------------------------------------------
    xn2 = _layernorm(x, ln2w_ref[0], ln2b_ref[0])
    h = _gelu_exact(jnp.dot(xn2.astype(jnp.bfloat16), w1_ref[0],
                            preferred_element_type=jnp.float32) + b1_ref[0])
    x = x + jnp.dot(h.astype(jnp.bfloat16), w2_ref[0],
                    preferred_element_type=jnp.float32) + b2_ref[0]

    x_scr[...] = x

    # ---- final LayerNorm + prediction head (only on the last layer step) ------
    @pl.when(layer == last)
    def _():
        xn_f = _layernorm(x, lnfw_ref[...], lnfb_ref[...])
        o_ref[...] = jnp.dot(xn_f.astype(jnp.bfloat16), wh_ref[...],
                             preferred_element_type=jnp.float32) + bh_ref[...]


# ------------------------------- wrapper ---------------------------------------
@jax.jit
def gpt2_forward(idx, kp):
    B, S = idx.shape
    E, V = EMBED_DIM, VOCAB
    assert S & (S - 1) == 0 and S % 8 == 0, "seq len must be a power of two here"

    # embedding gather + positional add (plain JAX glue outside the kernel)
    tok = jnp.take(kp["tok_emb"], idx, axis=0)                # (B, S, E)
    pos = kp["pos_emb"][:S][None, :, :]                       # (1, S, E)
    x = (tok + pos).astype(jnp.float32).reshape(B * S, E)     # (B*S, E)

    inputs = [x,
              kp["ln1_w"], kp["ln1_b"], kp["wqkv"], kp["bqkv"], kp["wo"], kp["bo"],
              kp["ln2_w"], kp["ln2_b"], kp["w1"], kp["b1"], kp["w2"], kp["b2"],
              kp["lnf_w"], kp["lnf_b"], kp["wh"], kp["bh"]]

    x_spec = pl.BlockSpec((S, E), lambda b, l: (b, 0))

    def layer_spec(a):                    # stacked (L, ...) weights, layer-indexed
        nd = a.ndim
        return pl.BlockSpec((1,) + a.shape[1:],
                            lambda b, l, nd=nd: (l,) + (0,) * (nd - 1))

    def shared_spec(a):                   # final-LN / head weights, loaded once
        nd = a.ndim
        return pl.BlockSpec(a.shape, lambda b, l, nd=nd: (0,) * nd)

    in_specs = ([x_spec]
                + [layer_spec(a) for a in inputs[1:13]]
                + [shared_spec(a) for a in inputs[13:]])

    out = pl.pallas_call(
        gpt2_kernel,
        out_shape=jax.ShapeDtypeStruct((B * S, V), jnp.float32),
        grid=(B, NUM_LAYERS),
        in_specs=in_specs,
        out_specs=pl.BlockSpec((S, V), lambda b, l: (b, 0)),
        scratch_shapes=[pltpu.VMEM((S, E), jnp.float32)],
        compiler_params=pltpu.CompilerParams(
            dimension_semantics=("parallel", "arbitrary")),
    )(*inputs)
    return out.reshape(B, S, V)


# ------------------------------ parameter init ---------------------------------
def init_params(key):
    """Module-native parameters (f32, (in, out) weight layout)."""
    keys = iter(jax.random.split(key, 32))

    def nrm(shape, s=0.02):
        return s * jax.random.normal(next(keys), shape, dtype=jnp.float32)

    L, E, F, V, C = NUM_LAYERS, EMBED_DIM, FF_DIM, VOCAB, CONTEXT_LEN
    return {
        "tok_emb": nrm((V, E)),
        "pos_emb": nrm((C, E)),
        "ln1_w": 1.0 + nrm((L, E)), "ln1_b": nrm((L, E)),
        "wqkv": nrm((L, E, 3 * E)), "bqkv": nrm((L, 3 * E)),
        "wo": nrm((L, E, E)), "bo": nrm((L, E)),
        "ln2_w": 1.0 + nrm((L, E)), "ln2_b": nrm((L, E)),
        "w1": nrm((L, E, F)), "b1": nrm((L, F)),
        "w2": nrm((L, F, E)), "b2": nrm((L, E)),
        "lnf_w": 1.0 + nrm((E,)), "lnf_b": nrm((E,)),
        "wh": nrm((E, V)), "bh": nrm((V,)),
    }


def prepare_kernel_params(p):
    """One-time (outside jit) folding for the kernel: scale Q columns by
    1/sqrt(head_dim), cast matmul weights to bf16, reshape biases/LN params to
    broadcastable (L, 1, .) layout.  Mathematically identical to the module."""
    L, E, F, V = NUM_LAYERS, EMBED_DIM, FF_DIM, VOCAB
    scale = 1.0 / (HEAD_DIM ** 0.5)
    qscale = jnp.concatenate([jnp.full((E,), scale, jnp.float32),
                              jnp.ones((2 * E,), jnp.float32)])
    bf = lambda a: a.astype(jnp.bfloat16)
    return {
        "tok_emb": p["tok_emb"],
        "pos_emb": p["pos_emb"],
        "ln1_w": p["ln1_w"].reshape(L, 1, E), "ln1_b": p["ln1_b"].reshape(L, 1, E),
        "wqkv": bf(p["wqkv"] * qscale[None, None, :]),
        "bqkv": (p["bqkv"] * qscale[None, :]).reshape(L, 1, 3 * E),
        "wo": bf(p["wo"]), "bo": p["bo"].reshape(L, 1, E),
        "ln2_w": p["ln2_w"].reshape(L, 1, E), "ln2_b": p["ln2_b"].reshape(L, 1, E),
        "w1": bf(p["w1"]), "b1": p["b1"].reshape(L, 1, F),
        "w2": bf(p["w2"]), "b2": p["b2"].reshape(L, 1, E),
        "lnf_w": p["lnf_w"].reshape(1, E), "lnf_b": p["lnf_b"].reshape(1, E),
        "wh": bf(p["wh"]), "bh": p["bh"].reshape(1, V),
    }


# ------------------------- pure-JAX reference (check) ---------------------------
def _ref_forward(idx, p):
    """Faithful f32 transcription of the PyTorch module (eval mode)."""
    B, S = idx.shape
    x = (jnp.take(p["tok_emb"], idx, axis=0) + p["pos_emb"][:S][None]).astype(jnp.float32)
    mask = jnp.tril(jnp.ones((S, S), bool))
    for l in range(NUM_LAYERS):
        xn = _layernorm(x, p["ln1_w"][l], p["ln1_b"][l])
        qkv = xn @ p["wqkv"][l] + p["bqkv"][l]
        q, k, v = jnp.split(qkv, 3, axis=-1)
        q = q.reshape(B, S, NUM_HEADS, HEAD_DIM)
        k = k.reshape(B, S, NUM_HEADS, HEAD_DIM)
        v = v.reshape(B, S, NUM_HEADS, HEAD_DIM)
        sc = jnp.einsum('bqhd,bkhd->bhqk', q, k) / (HEAD_DIM ** 0.5)
        sc = jnp.where(mask[None, None], sc, -jnp.inf)
        pr = jax.nn.softmax(sc, axis=-1)
        att = jnp.einsum('bhqk,bkhd->bqhd', pr, v).reshape(B, S, EMBED_DIM)
        x = x + att @ p["wo"][l] + p["bo"][l]
        xn2 = _layernorm(x, p["ln2_w"][l], p["ln2_b"][l])
        h = _gelu_exact(xn2 @ p["w1"][l] + p["b1"][l])
        x = x + h @ p["w2"][l] + p["b2"][l]
    xn = _layernorm(x, p["lnf_w"], p["lnf_b"])
    return xn @ p["wh"] + p["bh"]


if __name__ == "__main__":
    key = jax.random.PRNGKey(0)
    k_param, k_idx = jax.random.split(key)
    params = init_params(k_param)
    kparams = prepare_kernel_params(params)     # one-time fold, outside jit

    B, S = 2, CONTEXT_LEN
    idx = jax.random.randint(k_idx, (B, S), 0, VOCAB, dtype=jnp.int32)

    logits = gpt2_forward(idx, kparams)
    jax.block_until_ready(logits)
    assert logits.shape == (B, S, VOCAB)

    ref = _ref_forward(idx, params)
    max_err = float(jnp.max(jnp.abs(logits - ref)))
    assert jnp.allclose(logits, ref, rtol=2e-2, atol=2e-2), \
        f"mismatch vs reference (max abs err {max_err})"

    print("KERNEL_OK")
</pallas_src>

<mosaic_0001>
module attributes {stable_mosaic.version = 11 : i64} {
  func.func @gpt2_kernel(%arg0: i32, %arg1: i32, %arg2: memref<64x128xf32, #tpu.memory_space<vmem>>, %arg3: memref<1x1x128xf32, #tpu.memory_space<vmem>>, %arg4: memref<1x1x128xf32, #tpu.memory_space<vmem>>, %arg5: memref<1x128x384xbf16, #tpu.memory_space<vmem>>, %arg6: memref<1x1x384xf32, #tpu.memory_space<vmem>>, %arg7: memref<1x128x128xbf16, #tpu.memory_space<vmem>>, %arg8: memref<1x1x128xf32, #tpu.memory_space<vmem>>, %arg9: memref<1x1x128xf32, #tpu.memory_space<vmem>>, %arg10: memref<1x1x128xf32, #tpu.memory_space<vmem>>, %arg11: memref<1x128x512xbf16, #tpu.memory_space<vmem>>, %arg12: memref<1x1x512xf32, #tpu.memory_space<vmem>>, %arg13: memref<1x512x128xbf16, #tpu.memory_space<vmem>>, %arg14: memref<1x1x128xf32, #tpu.memory_space<vmem>>, %arg15: memref<1x128xf32, #tpu.memory_space<vmem>>, %arg16: memref<1x128xf32, #tpu.memory_space<vmem>>, %arg17: memref<128x256xbf16, #tpu.memory_space<vmem>>, %arg18: memref<1x256xf32, #tpu.memory_space<vmem>>, %arg19: memref<64x256xf32, #tpu.memory_space<vmem>>, %arg20: memref<64x128xf32, #tpu.memory_space<vmem>>) attributes {dimension_semantics = [#tpu.dimension_semantics<parallel>, #tpu.dimension_semantics<arbitrary>], iteration_bounds = array<i64: 2, 2>, scalar_prefetch = 0 : i64, scratch_operands = 1 : i64, tpu.core_type = #tpu.core_type<tc>, window_params = [{transform_indices = @transform_0, window_bounds = array<i64: 64, 128>}, {transform_indices = @transform_1, window_bounds = array<i64: 1, 1, 128>}, {transform_indices = @transform_2, window_bounds = array<i64: 1, 1, 128>}, {transform_indices = @transform_3, window_bounds = array<i64: 1, 128, 384>}, {transform_indices = @transform_4, window_bounds = array<i64: 1, 1, 384>}, {transform_indices = @transform_5, window_bounds = array<i64: 1, 128, 128>}, {transform_indices = @transform_6, window_bounds = array<i64: 1, 1, 128>}, {transform_indices = @transform_7, window_bounds = array<i64: 1, 1, 128>}, {transform_indices = @transform_8, window_bounds = array<i64: 1, 1, 128>}, {transform_indices = @transform_9, window_bounds = array<i64: 1, 128, 512>}, {transform_indices = @transform_10, window_bounds = array<i64: 1, 1, 512>}, {transform_indices = @transform_11, window_bounds = array<i64: 1, 512, 128>}, {transform_indices = @transform_12, window_bounds = array<i64: 1, 1, 128>}, {pipeline_mode = #tpu.pipeline_mode<synchronous>, transform_indices = @transform_13, window_bounds = array<i64: 1, 128>}, {pipeline_mode = #tpu.pipeline_mode<synchronous>, transform_indices = @transform_14, window_bounds = array<i64: 1, 128>}, {pipeline_mode = #tpu.pipeline_mode<synchronous>, transform_indices = @transform_15, window_bounds = array<i64: 128, 256>}, {pipeline_mode = #tpu.pipeline_mode<synchronous>, transform_indices = @transform_16, window_bounds = array<i64: 1, 256>}, {transform_indices = @transform_17, window_bounds = array<i64: 64, 256>}]} {
    %c0_i32 = arith.constant 0 : i32
    %0 = arith.cmpi eq, %arg1, %c0_i32 : i32
    %1 = arith.extui %0 : i1 to i32
    %c0_i32_0 = arith.constant 0 : i32
    %2 = arith.cmpi ne, %1, %c0_i32_0 : i32
    scf.if %2 {
      %c0_62 = arith.constant 0 : index
      %c0_63 = arith.constant 0 : index
      %144 = vector.load %arg2[%c0_62, %c0_63] : memref<64x128xf32, #tpu.memory_space<vmem>>, vector<64x128xf32>
      %c0_64 = arith.constant 0 : index
      %c0_65 = arith.constant 0 : index
      %145 = vector.load %arg20[%c0_64, %c0_65] : memref<64x128xf32, #tpu.memory_space<vmem>>, vector<64x128xf32>
      tpu.vector_store %arg20[%c0_64, %c0_65], %144 {strides = array<i32>} : memref<64x128xf32, #tpu.memory_space<vmem>>, vector<64x128xf32>,
    } else {
    }
    %c0 = arith.constant 0 : index
    %c0_1 = arith.constant 0 : index
    %3 = vector.load %arg20[%c0, %c0_1] : memref<64x128xf32, #tpu.memory_space<vmem>>, vector<64x128xf32>
    %4 = tpu.iota {dimensions = array<i32: 0>} : vector<64x256xi32>
    %5 = tpu.iota {dimensions = array<i32: 1>} : vector<64x256xi32>
    %c63_i32 = arith.constant 63 : i32
    %6 = vector.broadcast %c63_i32 : i32 to vector<64x256xi32>
    %7 = arith.andi %5, %6 : vector<64x256xi32>
    %8 = arith.cmpi sle, %7, %4 : vector<64x256xi32>
    %cst = arith.constant 0.000000e+00 : f32
    %cst_2 = arith.constant -1.000000e+30 : f32
    %9 = vector.broadcast %cst : f32 to vector<64x256xf32>
    %10 = vector.broadcast %cst_2 : f32 to vector<64x256xf32>
    %11 = arith.select %8, %9, %10 : vector<64x256xi1>, vector<64x256xf32>
    %12 = tpu.iota {dimensions = array<i32: 0>} : vector<256x128xi32>
    %13 = tpu.iota {dimensions = array<i32: 1>} : vector<256x128xi32>
    %c6_i32 = arith.constant 6 : i32
    %14 = vector.broadcast %c6_i32 : i32 to vector<256x128xi32>
    %15 = arith.shrsi %12, %14 : vector<256x128xi32>
    %c5_i32 = arith.constant 5 : i32
    %16 = vector.broadcast %c5_i32 : i32 to vector<256x128xi32>
    %17 = arith.shrsi %13, %16 : vector<256x128xi32>
    %18 = arith.cmpi eq, %15, %17 : vector<256x128xi32>
    %19 = arith.extui %18 : vector<256x128xi1> to vector<256x128xi32>
    %20 = arith.sitofp %19 : vector<256x128xi32> to vector<256x128xf32>
    %21 = arith.truncf %20 : vector<256x128xf32> to vector<256x128xbf16>
    %c0_3 = arith.constant 0 : index
    %c0_4 = arith.constant 0 : index
    %c0_5 = arith.constant 0 : index
    %22 = vector.load %arg3[%c0_3, %c0_4, %c0_5] : memref<1x1x128xf32, #tpu.memory_space<vmem>>, vector<1x1x128xf32>
    %23 = vector.shape_cast %22 : vector<1x1x128xf32> to vector<1x128xf32>
    %c0_6 = arith.constant 0 : index
    %c0_7 = arith.constant 0 : index
    %c0_8 = arith.constant 0 : index
    %24 = vector.load %arg4[%c0_6, %c0_7, %c0_8] : memref<1x1x128xf32, #tpu.memory_space<vmem>>, vector<1x1x128xf32>
    %25 = vector.shape_cast %24 : vector<1x1x128xf32> to vector<1x128xf32>
    %cst_9 = arith.constant dense<0.000000e+00> : vector<64xf32>
    %26 = vector.multi_reduction <add>, %3, %cst_9 [1] : vector<64x128xf32> to vector<64xf32>
    %27 = vector.shape_cast %26 : vector<64xf32> to vector<64x1xf32>
    %cst_10 = arith.constant 1.280000e+02 : f32
    %28 = vector.broadcast %cst_10 : f32 to vector<64x1xf32>
    %29 = arith.divf %27, %28 : vector<64x1xf32>
    %30 = arith.mulf %3, %3 : vector<64x128xf32>
    %cst_11 = arith.constant dense<0.000000e+00> : vector<64xf32>
    %31 = vector.multi_reduction <add>, %30, %cst_11 [1] : vector<64x128xf32> to vector<64xf32>
    %32 = vector.shape_cast %31 : vector<64xf32> to vector<64x1xf32>
    %cst_12 = arith.constant 1.280000e+02 : f32
    %33 = vector.broadcast %cst_12 : f32 to vector<64x1xf32>
    %34 = arith.divf %32, %33 : vector<64x1xf32>
    %35 = vector.broadcast %29 : vector<64x1xf32> to vector<64x128xf32>
    %36 = arith.subf %3, %35 : vector<64x128xf32>
    %37 = arith.mulf %29, %29 : vector<64x1xf32>
    %38 = arith.subf %34, %37 : vector<64x1xf32>
    %cst_13 = arith.constant 9.99999974E-6 : f32
    %39 = vector.broadcast %cst_13 : f32 to vector<64x1xf32>
    %40 = arith.addf %38, %39 : vector<64x1xf32>
    %41 = math.rsqrt %40 : vector<64x1xf32>
    %42 = vector.broadcast %41 : vector<64x1xf32> to vector<64x128xf32>
    %43 = arith.mulf %36, %42 : vector<64x128xf32>
    %44 = vector.broadcast %23 : vector<1x128xf32> to vector<64x128xf32>
    %45 = arith.mulf %43, %44 : vector<64x128xf32>
    %46 = vector.broadcast %25 : vector<1x128xf32> to vector<64x128xf32>
    %47 = arith.addf %45, %46 : vector<64x128xf32>
    %48 = arith.truncf %47 : vector<64x128xf32> to vector<64x128xbf16>
    %c0_14 = arith.constant 0 : index
    %c0_15 = arith.constant 0 : index
    %c0_16 = arith.constant 0 : index
    %49 = vector.load %arg5[%c0_14, %c0_15, %c0_16] : memref<1x128x384xbf16, #tpu.memory_space<vmem>>, vector<1x128x384xbf16>
    %50 = vector.shape_cast %49 : vector<1x128x384xbf16> to vector<128x384xbf16>
    %cst_17 = arith.constant dense<0.000000e+00> : vector<64x384xf32>
    %51 = tpu.matmul %48, %50, %cst_17 {dimension_numbers = #tpu.dot_dimension_numbers<[1], [0], [0], [1], [0, 0, 1, 1], [], []>} : vector<64x128xbf16>, vector<128x384xbf16>, vector<64x384xf32> -> vector<64x384xf32>
    %c0_18 = arith.constant 0 : index
    %c0_19 = arith.constant 0 : index
    %c0_20 = arith.constant 0 : index
    %52 = vector.load %arg6[%c0_18, %c0_19, %c0_20] : memref<1x1x384xf32, #tpu.memory_space<vmem>>, vector<1x1x384xf32>
    %53 = vector.shape_cast %52 : vector<1x1x384xf32> to vector<1x384xf32>
    %54 = vector.broadcast %53 : vector<1x384xf32> to vector<64x384xf32>
    %55 = arith.addf %51, %54 : vector<64x384xf32>
    %56 = vector.extract_strided_slice %55 {offsets = [0, 0], sizes = [64, 128], strides = [1, 1]} : vector<64x384xf32> to vector<64x128xf32>
    %57 = arith.truncf %56 : vector<64x128xf32> to vector<64x128xbf16>
    %58 = vector.extract_strided_slice %55 {offsets = [0, 128], sizes = [64, 128], strides = [1, 1]} : vector<64x384xf32> to vector<64x128xf32>
    %59 = arith.truncf %58 : vector<64x128xf32> to vector<64x128xbf16>
    %60 = vector.extract_strided_slice %55 {offsets = [0, 256], sizes = [64, 128], strides = [1, 1]} : vector<64x384xf32> to vector<64x128xf32>
    %61 = arith.truncf %60 : vector<64x128xf32> to vector<64x128xbf16>
    %62 = tpu.concatenate %59, %59, %59, %59 in 0 : vector<64x128xbf16>, vector<64x128xbf16>, vector<64x128xbf16>, vector<64x128xbf16> -> vector<256x128xbf16>
    %63 = arith.mulf %62, %21 : vector<256x128xbf16>
    %64 = tpu.concatenate %61, %61, %61, %61 in 0 : vector<64x128xbf16>, vector<64x128xbf16>, vector<64x128xbf16>, vector<64x128xbf16> -> vector<256x128xbf16>
    %65 = arith.mulf %64, %21 : vector<256x128xbf16>
    %cst_21 = arith.constant dense<0.000000e+00> : vector<64x256xf32>
    %66 = tpu.matmul %57, %63, %cst_21 {dimension_numbers = #tpu.dot_dimension_numbers<[1], [1], [0], [0], [0, 0, 1, 0], [], []>} : vector<64x128xbf16>, vector<256x128xbf16>, vector<64x256xf32> -> vector<64x256xf32>
    %67 = arith.addf %66, %11 : vector<64x256xf32>
    %cst_22 = arith.constant dense<0xFF800000> : vector<64xf32>
    %68 = vector.multi_reduction <maximumf>, %67, %cst_22 [1] : vector<64x256xf32> to vector<64xf32>
    %69 = vector.shape_cast %68 : vector<64xf32> to vector<64x1xf32>
    %70 = vector.broadcast %69 : vector<64x1xf32> to vector<64x256xf32>
    %71 = arith.subf %67, %70 : vector<64x256xf32>
    %72 = math.exp %71 : vector<64x256xf32>
    %73 = arith.truncf %72 : vector<64x256xf32> to vector<64x256xbf16>
    %74 = tpu.concatenate %65, %21 in 1 : vector<256x128xbf16>, vector<256x128xbf16> -> vector<256x256xbf16>
    %cst_23 = arith.constant dense<0.000000e+00> : vector<64x256xf32>
    %75 = tpu.matmul %73, %74, %cst_23 {dimension_numbers = #tpu.dot_dimension_numbers<[1], [0], [0], [1], [0, 0, 1, 1], [], []>} : vector<64x256xbf16>, vector<256x256xbf16>, vector<64x256xf32> -> vector<64x256xf32>
    %76 = vector.extract_strided_slice %75 {offsets = [0, 0], sizes = [64, 128], strides = [1, 1]} : vector<64x256xf32> to vector<64x128xf32>
    %77 = vector.extract_strided_slice %75 {offsets = [0, 128], sizes = [64, 128], strides = [1, 1]} : vector<64x256xf32> to vector<64x128xf32>
    %78 = tpu.reciprocal %77 {approx = true} : vector<64x128xf32> -> vector<64x128xf32>
    %79 = arith.mulf %76, %78 : vector<64x128xf32>
    %80 = arith.truncf %79 : vector<64x128xf32> to vector<64x128xbf16>
    %c0_24 = arith.constant 0 : index
    %c0_25 = arith.constant 0 : index
    %c0_26 = arith.constant 0 : index
    %81 = vector.load %arg7[%c0_24, %c0_25, %c0_26] : memref<1x128x128xbf16, #tpu.memory_space<vmem>>, vector<1x128x128xbf16>
    %82 = vector.shape_cast %81 : vector<1x128x128xbf16> to vector<128x128xbf16>
    %cst_27 = arith.constant dense<0.000000e+00> : vector<64x128xf32>
    %83 = tpu.matmul %80, %82, %cst_27 {dimension_numbers = #tpu.dot_dimension_numbers<[1], [0], [0], [1], [0, 0, 1, 1], [], []>} : vector<64x128xbf16>, vector<128x128xbf16>, vector<64x128xf32> -> vector<64x128xf32>
    %c0_28 = arith.constant 0 : index
    %c0_29 = arith.constant 0 : index
    %c0_30 = arith.constant 0 : index
    %84 = vector.load %arg8[%c0_28, %c0_29, %c0_30] : memref<1x1x128xf32, #tpu.memory_space<vmem>>, vector<1x1x128xf32>
    %85 = vector.shape_cast %84 : vector<1x1x128xf32> to vector<1x128xf32>
    %86 = vector.broadcast %85 : vector<1x128xf32> to vector<64x128xf32>
    %87 = arith.addf %83, %86 : vector<64x128xf32>
    %88 = arith.addf %3, %87 : vector<64x128xf32>
    %c0_31 = arith.constant 0 : index
    %c0_32 = arith.constant 0 : index
    %c0_33 = arith.constant 0 : index
    %89 = vector.load %arg9[%c0_31, %c0_32, %c0_33] : memref<1x1x128xf32, #tpu.memory_space<vmem>>, vector<1x1x128xf32>
    %90 = vector.shape_cast %89 : vector<1x1x128xf32> to vector<1x128xf32>
    %c0_34 = arith.constant 0 : index
    %c0_35 = arith.constant 0 : index
    %c0_36 = arith.constant 0 : index
    %91 = vector.load %arg10[%c0_34, %c0_35, %c0_36] : memref<1x1x128xf32, #tpu.memory_space<vmem>>, vector<1x1x128xf32>
    %92 = vector.shape_cast %91 : vector<1x1x128xf32> to vector<1x128xf32>
    %cst_37 = arith.constant dense<0.000000e+00> : vector<64xf32>
    %93 = vector.multi_reduction <add>, %88, %cst_37 [1] : vector<64x128xf32> to vector<64xf32>
    %94 = vector.shape_cast %93 : vector<64xf32> to vector<64x1xf32>
    %cst_38 = arith.constant 1.280000e+02 : f32
    %95 = vector.broadcast %cst_38 : f32 to vector<64x1xf32>
    %96 = arith.divf %94, %95 : vector<64x1xf32>
    %97 = arith.mulf %88, %88 : vector<64x128xf32>
    %cst_39 = arith.constant dense<0.000000e+00> : vector<64xf32>
    %98 = vector.multi_reduction <add>, %97, %cst_39 [1] : vector<64x128xf32> to vector<64xf32>
    %99 = vector.shape_cast %98 : vector<64xf32> to vector<64x1xf32>
    %cst_40 = arith.constant 1.280000e+02 : f32
    %100 = vector.broadcast %cst_40 : f32 to vector<64x1xf32>
    %101 = arith.divf %99, %100 : vector<64x1xf32>
    %102 = vector.broadcast %96 : vector<64x1xf32> to vector<64x128xf32>
    %103 = arith.subf %88, %102 : vector<64x128xf32>
    %104 = arith.mulf %96, %96 : vector<64x1xf32>
    %105 = arith.subf %101, %104 : vector<64x1xf32>
    %cst_41 = arith.constant 9.99999974E-6 : f32
    %106 = vector.broadcast %cst_41 : f32 to vector<64x1xf32>
    %107 = arith.addf %105, %106 : vector<64x1xf32>
    %108 = math.rsqrt %107 : vector<64x1xf32>
    %109 = vector.broadcast %108 : vector<64x1xf32> to vector<64x128xf32>
    %110 = arith.mulf %103, %109 : vector<64x128xf32>
    %111 = vector.broadcast %90 : vector<1x128xf32> to vector<64x128xf32>
    %112 = arith.mulf %110, %111 : vector<64x128xf32>
    %113 = vector.broadcast %92 : vector<1x128xf32> to vector<64x128xf32>
    %114 = arith.addf %112, %113 : vector<64x128xf32>
    %115 = arith.truncf %114 : vector<64x128xf32> to vector<64x128xbf16>
    %c0_42 = arith.constant 0 : index
    %c0_43 = arith.constant 0 : index
    %c0_44 = arith.constant 0 : index
    %116 = vector.load %arg11[%c0_42, %c0_43, %c0_44] : memref<1x128x512xbf16, #tpu.memory_space<vmem>>, vector<1x128x512xbf16>
    %117 = vector.shape_cast %116 : vector<1x128x512xbf16> to vector<128x512xbf16>
    %cst_45 = arith.constant dense<0.000000e+00> : vector<64x512xf32>
    %118 = tpu.matmul %115, %117, %cst_45 {dimension_numbers = #tpu.dot_dimension_numbers<[1], [0], [0], [1], [0, 0, 1, 1], [], []>} : vector<64x128xbf16>, vector<128x512xbf16>, vector<64x512xf32> -> vector<64x512xf32>
    %c0_46 = arith.constant 0 : index
    %c0_47 = arith.constant 0 : index
    %c0_48 = arith.constant 0 : index
    %119 = vector.load %arg12[%c0_46, %c0_47, %c0_48] : memref<1x1x512xf32, #tpu.memory_space<vmem>>, vector<1x1x512xf32>
    %120 = vector.shape_cast %119 : vector<1x1x512xf32> to vector<1x512xf32>
    %121 = vector.broadcast %120 : vector<1x512xf32> to vector<64x512xf32>
    %122 = arith.addf %118, %121 : vector<64x512xf32>
    %cst_49 = arith.constant 5.000000e-01 : f32
    %123 = vector.broadcast %cst_49 : f32 to vector<64x512xf32>
    %124 = arith.mulf %123, %122 : vector<64x512xf32>
    %cst_50 = arith.constant 0.707106769 : f32
    %125 = vector.broadcast %cst_50 : f32 to vector<64x512xf32>
    %126 = arith.mulf %122, %125 : vector<64x512xf32>
    %127 = math.erf %126 : vector<64x512xf32>
    %cst_51 = arith.constant 1.000000e+00 : f32
    %128 = vector.broadcast %cst_51 : f32 to vector<64x512xf32>
    %129 = arith.addf %128, %127 : vector<64x512xf32>
    %130 = arith.mulf %124, %129 : vector<64x512xf32>
    %131 = arith.truncf %130 : vector<64x512xf32> to vector<64x512xbf16>
    %c0_52 = arith.constant 0 : index
    %c0_53 = arith.constant 0 : index
    %c0_54 = arith.constant 0 : index
    %132 = vector.load %arg13[%c0_52, %c0_53, %c0_54] : memref<1x512x128xbf16, #tpu.memory_space<vmem>>, vector<1x512x128xbf16>
    %133 = vector.shape_cast %132 : vector<1x512x128xbf16> to vector<512x128xbf16>
    %cst_55 = arith.constant dense<0.000000e+00> : vector<64x128xf32>
    %134 = tpu.matmul %131, %133, %cst_55 {dimension_numbers = #tpu.dot_dimension_numbers<[1], [0], [0], [1], [0, 0, 1, 1], [], []>} : vector<64x512xbf16>, vector<512x128xbf16>, vector<64x128xf32> -> vector<64x128xf32>
    %135 = arith.addf %88, %134 : vector<64x128xf32>
    %c0_56 = arith.constant 0 : index
    %c0_57 = arith.constant 0 : index
    %c0_58 = arith.constant 0 : index
    %136 = vector.load %arg14[%c0_56, %c0_57, %c0_58] : memref<1x1x128xf32, #tpu.memory_space<vmem>>, vector<1x1x128xf32>
    %137 = vector.shape_cast %136 : vector<1x1x128xf32> to vector<1x128xf32>
    %138 = vector.broadcast %137 : vector<1x128xf32> to vector<64x128xf32>
    %139 = arith.addf %135, %138 : vector<64x128xf32>
    %c0_59 = arith.constant 0 : index
    %c0_60 = arith.constant 0 : index
    %140 = vector.load %arg20[%c0_59, %c0_60] : memref<64x128xf32, #tpu.memory_space<vmem>>, vector<64x128xf32>
    tpu.vector_store %arg20[%c0_59, %c0_60], %139 {strides = array<i32>} : memref<64x128xf32, #tpu.memory_space<vmem>>, vector<64x128xf32>,
    %c1_i32 = arith.constant 1 : i32
    %141 = arith.cmpi eq, %arg1, %c1_i32 : i32
    %142 = arith.extui %141 : i1 to i32
    %c0_i32_61 = arith.constant 0 : i32
    %143 = arith.cmpi ne, %142, %c0_i32_61 : i32
    scf.if %143 {
      %c0_62 = arith.constant 0 : index
      %c0_63 = arith.constant 0 : index
      %144 = vector.load %arg15[%c0_62, %c0_63] : memref<1x128xf32, #tpu.memory_space<vmem>>, vector<1x128xf32>
      %c0_64 = arith.constant 0 : index
      %c0_65 = arith.constant 0 : index
      %145 = vector.load %arg16[%c0_64, %c0_65] : memref<1x128xf32, #tpu.memory_space<vmem>>, vector<1x128xf32>
      %cst_66 = arith.constant dense<0.000000e+00> : vector<64xf32>
      %146 = vector.multi_reduction <add>, %139, %cst_66 [1] : vector<64x128xf32> to vector<64xf32>
      %147 = vector.shape_cast %146 : vector<64xf32> to vector<64x1xf32>
      %cst_67 = arith.constant 1.280000e+02 : f32
      %148 = vector.broadcast %cst_67 : f32 to vector<64x1xf32>
      %149 = arith.divf %147, %148 : vector<64x1xf32>
      %150 = arith.mulf %139, %139 : vector<64x128xf32>
      %cst_68 = arith.constant dense<0.000000e+00> : vector<64xf32>
      %151 = vector.multi_reduction <add>, %150, %cst_68 [1] : vector<64x128xf32> to vector<64xf32>
      %152 = vector.shape_cast %151 : vector<64xf32> to vector<64x1xf32>
      %cst_69 = arith.constant 1.280000e+02 : f32
      %153 = vector.broadcast %cst_69 : f32 to vector<64x1xf32>
      %154 = arith.divf %152, %153 : vector<64x1xf32>
      %155 = vector.broadcast %149 : vector<64x1xf32> to vector<64x128xf32>
      %156 = arith.subf %139, %155 : vector<64x128xf32>
      %157 = arith.mulf %149, %149 : vector<64x1xf32>
      %158 = arith.subf %154, %157 : vector<64x1xf32>
      %cst_70 = arith.constant 9.99999974E-6 : f32
      %159 = vector.broadcast %cst_70 : f32 to vector<64x1xf32>
      %160 = arith.addf %158, %159 : vector<64x1xf32>
      %161 = math.rsqrt %160 : vector<64x1xf32>
      %162 = vector.broadcast %161 : vector<64x1xf32> to vector<64x128xf32>
      %163 = arith.mulf %156, %162 : vector<64x128xf32>
      %164 = vector.broadcast %144 : vector<1x128xf32> to vector<64x128xf32>
      %165 = arith.mulf %163, %164 : vector<64x128xf32>
      %166 = vector.broadcast %145 : vector<1x128xf32> to vector<64x128xf32>
      %167 = arith.addf %165, %166 : vector<64x128xf32>
      %168 = arith.truncf %167 : vector<64x128xf32> to vector<64x128xbf16>
      %c0_71 = arith.constant 0 : index
      %c0_72 = arith.constant 0 : index
      %169 = vector.load %arg17[%c0_71, %c0_72] : memref<128x256xbf16, #tpu.memory_space<vmem>>, vector<128x256xbf16>
      %cst_73 = arith.constant dense<0.000000e+00> : vector<64x256xf32>
      %170 = tpu.matmul %168, %169, %cst_73 {dimension_numbers = #tpu.dot_dimension_numbers<[1], [0], [0], [1], [0, 0, 1, 1], [], []>} : vector<64x128xbf16>, vector<128x256xbf16>, vector<64x256xf32> -> vector<64x256xf32>
      %c0_74 = arith.constant 0 : index
      %c0_75 = arith.constant 0 : index
      %171 = vector.load %arg18[%c0_74, %c0_75] : memref<1x256xf32, #tpu.memory_space<vmem>>, vector<1x256xf32>
      %172 = vector.broadcast %171 : vector<1x256xf32> to vector<64x256xf32>
      %173 = arith.addf %170, %172 : vector<64x256xf32>
      %c0_76 = arith.constant 0 : index
      %c0_77 = arith.constant 0 : index
      %174 = vector.load %arg19[%c0_76, %c0_77] : memref<64x256xf32, #tpu.memory_space<vmem>>, vector<64x256xf32>
      tpu.vector_store %arg19[%c0_76, %c0_77], %173 {strides = array<i32>} : memref<64x256xf32, #tpu.memory_space<vmem>>, vector<64x256xf32>,
    } else {
    }
    return
  }
  func.func @transform_0(%arg0: i32, %arg1: i32) -> (i32, i32) {
    %c0_i32 = arith.constant 0 : i32
    %c0_i32_0 = arith.constant 0 : i32
    return %arg0, %c0_i32 : i32, i32
  }
  func.func @transform_1(%arg0: i32, %arg1: i32) -> (i32, i32, i32) {
    %c0_i32 = arith.constant 0 : i32
    %c0_i32_0 = arith.constant 0 : i32
    %c0_i32_1 = arith.constant 0 : i32
    return %arg1, %c0_i32, %c0_i32_0 : i32, i32, i32
  }
  func.func @transform_2(%arg0: i32, %arg1: i32) -> (i32, i32, i32) {
    %c0_i32 = arith.constant 0 : i32
    %c0_i32_0 = arith.constant 0 : i32
    %c0_i32_1 = arith.constant 0 : i32
    return %arg1, %c0_i32, %c0_i32_0 : i32, i32, i32
  }
  func.func @transform_3(%arg0: i32, %arg1: i32) -> (i32, i32, i32) {
    %c0_i32 = arith.constant 0 : i32
    %c0_i32_0 = arith.constant 0 : i32
    %c0_i32_1 = arith.constant 0 : i32
    return %arg1, %c0_i32, %c0_i32_0 : i32, i32, i32
  }
  func.func @transform_4(%arg0: i32, %arg1: i32) -> (i32, i32, i32) {
    %c0_i32 = arith.constant 0 : i32
    %c0_i32_0 = arith.constant 0 : i32
    %c0_i32_1 = arith.constant 0 : i32
    return %arg1, %c0_i32, %c0_i32_0 : i32, i32, i32
  }
  func.func @transform_5(%arg0: i32, %arg1: i32) -> (i32, i32, i32) {
    %c0_i32 = arith.constant 0 : i32
    %c0_i32_0 = arith.constant 0 : i32
    %c0_i32_1 = arith.constant 0 : i32
    return %arg1, %c0_i32, %c0_i32_0 : i32, i32, i32
  }
  func.func @transform_6(%arg0: i32, %arg1: i32) -> (i32, i32, i32) {
    %c0_i32 = arith.constant 0 : i32
    %c0_i32_0 = arith.constant 0 : i32
    %c0_i32_1 = arith.constant 0 : i32
    return %arg1, %c0_i32, %c0_i32_0 : i32, i32, i32
  }
  func.func @transform_7(%arg0: i32, %arg1: i32) -> (i32, i32, i32) {
    %c0_i32 = arith.constant 0 : i32
    %c0_i32_0 = arith.constant 0 : i32
    %c0_i32_1 = arith.constant 0 : i32
    return %arg1, %c0_i32, %c0_i32_0 : i32, i32, i32
  }
  func.func @transform_8(%arg0: i32, %arg1: i32) -> (i32, i32, i32) {
    %c0_i32 = arith.constant 0 : i32
    %c0_i32_0 = arith.constant 0 : i32
    %c0_i32_1 = arith.constant 0 : i32
    return %arg1, %c0_i32, %c0_i32_0 : i32, i32, i32
  }
  func.func @transform_9(%arg0: i32, %arg1: i32) -> (i32, i32, i32) {
    %c0_i32 = arith.constant 0 : i32
    %c0_i32_0 = arith.constant 0 : i32
    %c0_i32_1 = arith.constant 0 : i32
    return %arg1, %c0_i32, %c0_i32_0 : i32, i32, i32
  }
  func.func @transform_10(%arg0: i32, %arg1: i32) -> (i32, i32, i32) {
    %c0_i32 = arith.constant 0 : i32
    %c0_i32_0 = arith.constant 0 : i32
    %c0_i32_1 = arith.constant 0 : i32
    return %arg1, %c0_i32, %c0_i32_0 : i32, i32, i32
  }
  func.func @transform_11(%arg0: i32, %arg1: i32) -> (i32, i32, i32) {
    %c0_i32 = arith.constant 0 : i32
    %c0_i32_0 = arith.constant 0 : i32
    %c0_i32_1 = arith.constant 0 : i32
    return %arg1, %c0_i32, %c0_i32_0 : i32, i32, i32
  }
  func.func @transform_12(%arg0: i32, %arg1: i32) -> (i32, i32, i32) {
    %c0_i32 = arith.constant 0 : i32
    %c0_i32_0 = arith.constant 0 : i32
    %c0_i32_1 = arith.constant 0 : i32
    return %arg1, %c0_i32, %c0_i32_0 : i32, i32, i32
  }
  func.func @transform_13(%arg0: i32, %arg1: i32) -> (i32, i32) {
    %c0_i32 = arith.constant 0 : i32
    %c0_i32_0 = arith.constant 0 : i32
    %c0_i32_1 = arith.constant 0 : i32
    return %c0_i32, %c0_i32_0 : i32, i32
  }
  func.func @transform_14(%arg0: i32, %arg1: i32) -> (i32, i32) {
    %c0_i32 = arith.constant 0 : i32
    %c0_i32_0 = arith.constant 0 : i32
    %c0_i32_1 = arith.constant 0 : i32
    return %c0_i32, %c0_i32_0 : i32, i32
  }
  func.func @transform_15(%arg0: i32, %arg1: i32) -> (i32, i32) {
    %c0_i32 = arith.constant 0 : i32
    %c0_i32_0 = arith.constant 0 : i32
    %c0_i32_1 = arith.constant 0 : i32
    return %c0_i32, %c0_i32_0 : i32, i32
  }
  func.func @transform_16(%arg0: i32, %arg1: i32) -> (i32, i32) {
    %c0_i32 = arith.constant 0 : i32
    %c0_i32_0 = arith.constant 0 : i32
    %c0_i32_1 = arith.constant 0 : i32
    return %c0_i32, %c0_i32_0 : i32, i32
  }
  func.func @transform_17(%arg0: i32, %arg1: i32) -> (i32, i32) {
    %c0_i32 = arith.constant 0 : i32
    %c0_i32_0 = arith.constant 0 : i32
    return %arg0, %c0_i32 : i32, i32
  }
}

</mosaic_0001>

<llo_original>
// kernel: gpt2_forward.1
$region0: #{gpt2_forward.1}
  #allocation0 [shape = 'u32[]', space=smem, size = 0x4, offset = 0x4, fixed_abs, tag = 'smem constant byte address 0x4 - core index']
  #allocation1 [shape = 'u32[144,128]{1,0:T(1,128)}', space=vmem, size = 0x12000, scoped, tag = 'internal scratch']
  #allocation2 [shape = 'f32[64,128]{1,0:T(8,128)}', space=vmem, size = 0x8000, scoped, tag = 'scratch operand']
  %s0 = inlined_call_operand.vmem [shape: f32[128,128], index: 0, kind: input, shape index: {}]
  %s1 = inlined_call_operand.vmem [shape: f32[2,1,128], index: 1, kind: input, shape index: {}]
  %s2 = inlined_call_operand.vmem [shape: f32[2,1,128], index: 2, kind: input, shape index: {}]
  %s3 = inlined_call_operand.vmem [shape: bf16[2,128,384], index: 3, kind: input, shape index: {}]
  %s4 = inlined_call_operand.vmem [shape: f32[2,1,384], index: 4, kind: input, shape index: {}]
  %s5 = inlined_call_operand.vmem [shape: bf16[2,128,128], index: 5, kind: input, shape index: {}]
  %s6 = inlined_call_operand.vmem [shape: f32[2,1,128], index: 6, kind: input, shape index: {}]
  %s7 = inlined_call_operand.vmem [shape: f32[2,1,128], index: 7, kind: input, shape index: {}]
  %s8 = inlined_call_operand.vmem [shape: f32[2,1,128], index: 8, kind: input, shape index: {}]
  %s9 = inlined_call_operand.vmem [shape: bf16[2,128,512], index: 9, kind: input, shape index: {}]
  %s10 = inlined_call_operand.vmem [shape: f32[2,1,512], index: 10, kind: input, shape index: {}]
  %s11 = inlined_call_operand.vmem [shape: bf16[2,512,128], index: 11, kind: input, shape index: {}]
  %s12 = inlined_call_operand.vmem [shape: f32[2,1,128], index: 12, kind: input, shape index: {}]
  %s13 = inlined_call_operand.vmem [shape: f32[1,128], index: 13, kind: input, shape index: {}]
  %s14 = inlined_call_operand.vmem [shape: f32[1,128], index: 14, kind: input, shape index: {}]
  %s15 = inlined_call_operand.vmem [shape: bf16[128,256], index: 15, kind: input, shape index: {}]
  %s16 = inlined_call_operand.hbm [shape: f32[1,256], index: 16, kind: input, shape index: {}]
  %s17 = inlined_call_operand.hbm [shape: f32[128,256], index: 17, kind: output, shape index: {}]
  %s18 = sld [smem:[#allocation0]]
  $region113: #{gpt2_forward.1} parent=0
    _
  %s20 = ssub.s32 1, %s18
  %s21 = scalar_select 0, %s20, %s18
  $region1: #{gpt2_forward.1} parent=0
    #allocation3 [shape = 'u8[1024]{0}', space=vmem, size = 0x400, scoped, tag = 'input window, operand 16, single buffered']
    #allocation4 [shape = 's32[2]{0}', space=sflag, size = 0x8, scoped, tag = 'scoped memory for gpt2_forward.1']
    #allocation5 [shape = 's32[2]{0}', space=sflag, size = 0x8, scoped, tag = 'scoped memory for gpt2_forward.1']
    #allocation6 [shape = 'u8[131072]{0}', space=vmem, size = 0x20000, scoped, tag = 'output window, operand 0']
    %22 = vsyncpa [#allocation4], 0
    %23 = vsyncpa [#allocation5], 0
    %s24 = scalar_lea.sflag [#allocation5], 1
    %25 = vsyncpa %s24, 0
    loop: start=0, step=1, limit=6
    $region2: #{gpt2_forward.1} parent=1 // loop_pre_header
      _
    $region3: #{gpt2_forward.1} parent=1 // loop_header
      %s27 = sphi 0, %s31
      %p28 = scmp.ge.s32.totalorder %s27, 6
      %s34 = sphi 0, %s46
      %s35 = sphi 0, %s42
      %s36 = sphi 0, %s34
      %s37 = sphi 0, %s35
      %s38 = sphi 0, %s36
      %s39 = sphi 0, %s37
      %s49 = sphi 0, %s51
      %s52 = sphi 0, %s49
      %s53 = sphi 0, %s52
      %s69 = sphi 0, %s53
      %s75 = sphi 0, %s77
      %s78 = sphi 0, %s75
      %s79 = sphi 0, %s78
      %s95 = sphi 0, %s79
      %s101 = sphi 0, %s103
      %s104 = sphi 0, %s101
      %s105 = sphi 0, %s104
      %s121 = sphi 0, %s105
      %s127 = sphi 0, %s129
      %s130 = sphi 0, %s127
      %s131 = sphi 0, %s130
      %s147 = sphi 0, %s131
      %s153 = sphi 0, %s155
      %s156 = sphi 0, %s153
      %s157 = sphi 0, %s156
      %s173 = sphi 0, %s157
      %s179 = sphi 0, %s181
      %s182 = sphi 0, %s179
      %s183 = sphi 0, %s182
      %s199 = sphi 0, %s183
      %s205 = sphi 0, %s207
      %s208 = sphi 0, %s205
      %s209 = sphi 0, %s208
      %s225 = sphi 0, %s209
      %s231 = sphi 0, %s233
      %s234 = sphi 0, %s231
      %s235 = sphi 0, %s234
      %s251 = sphi 0, %s235
      %s257 = sphi 0, %s259
      %s260 = sphi 0, %s257
      %s261 = sphi 0, %s260
      %s277 = sphi 0, %s261
      %s283 = sphi 0, %s285
      %s286 = sphi 0, %s283
      %s287 = sphi 0, %s286
      %s303 = sphi 0, %s287
      %s309 = sphi 0, %s311
      %s312 = sphi 0, %s309
      %s313 = sphi 0, %s312
      %s329 = sphi 0, %s313
      %s335 = sphi 0, %s337
      %s338 = sphi 0, %s335
      %s339 = sphi 0, %s338
      %s355 = sphi 0, %s339
      %s361 = sphi 0, %s363
      %s364 = sphi 0, %s361
      %s365 = sphi 0, %s364
      %s381 = sphi 0, %s365
      %s385 = sphi 0, %s385
      %s387 = sphi 0, %s385
      %s388 = sphi 0, %s387
      %s402 = sphi 0, %s388
      %s406 = sphi 0, %s406
      %s408 = sphi 0, %s406
      %s409 = sphi 0, %s408
      %s423 = sphi 0, %s409
      %s427 = sphi 0, %s427
      %s429 = sphi 0, %s427
      %s430 = sphi 0, %s429
      %s444 = sphi 0, %s430
      %s448 = sphi 0, %s448
      %s450 = sphi 0, %s448
      %s451 = sphi 0, %s450
      %s465 = sphi 0, %s451
      %s471 = sphi 0, %s473
      %s474 = sphi 0, %s471
      %s475 = sphi 0, %s474
      %s491 = sphi 0, %s475
    $region4: #{gpt2_forward.1} parent=1 // loop_header_branch
      %30 = sbr.rel (%p28) target = $region8
    $region5: #{gpt2_forward.1} parent=1 // loop_body
      %s32 = ssub.s32 %s27, 1
      %s33 = ssub.s32 %s27, 2
      %s40 = sadd.s32 1, %s35
      %p41 = scmp.ge.s32.totalorder %s40, 2
      %s42 = scalar_select %p41, 0, %s40
      %s43 = sadd.s32 1, %s34
      %s44 = scalar_select %p41, %s43, %s34
      %p45 = scmp.ge.s32.totalorder %s44, 2
      %s46 = scalar_select %p45, 0, %s44
      %s47 = ssub.s32 %s34, %s46
      %p48 = scmp.eq.s32.totalorder %s47, 0
      %s50 = sadd.s32 %s49, 1
      %s51 = scalar_select %p48, %s49, %s50
      %p54 = pneg %p48
      %p55 = scmp.eq.s32.totalorder %s27, 3
      %p56 = por %p54, %p55
      %p57 = scmp.ne.s32.totalorder %s49, %s52
      %p58 = scmp.eq.s32.totalorder %s27, 0
      %p59 = por %p57, %p58
      %p60 = scmp.ne.s32.totalorder %s49, %s52
      %p61 = scmp.eq.s32.totalorder %s32, 3
      %p62 = por %p60, %p61
      %p63 = scmp.ne.s32.totalorder %s52, %s53
      %p64 = scmp.eq.s32.totalorder %s32, 0
      %p65 = por %p63, %p64
      %p66 = scmp.ne.s32.totalorder %s52, %s53
      %p67 = scmp.eq.s32.totalorder %s33, 3
      %p68 = por %p66, %p67
      %p70 = scmp.ne.s32.totalorder %s53, %s69
      %p71 = scmp.eq.s32.totalorder %s33, 0
      %p72 = por %p70, %p71
      %s73 = ssub.s32 %s35, %s42
      %p74 = scmp.eq.s32.totalorder %s73, 0
      %s76 = sadd.s32 %s75, 1
      %s77 = scalar_select %p74, %s75, %s76
      %p80 = pneg %p74
      %p81 = scmp.eq.s32.totalorder %s27, 3
      %p82 = por %p80, %p81
      %p83 = scmp.ne.s32.totalorder %s75, %s78
      %p84 = scmp.eq.s32.totalorder %s27, 0
      %p85 = por %p83, %p84
      %p86 = scmp.ne.s32.totalorder %s75, %s78
      %p87 = scmp.eq.s32.totalorder %s32, 3
      %p88 = por %p86, %p87
      %p89 = scmp.ne.s32.totalorder %s78, %s79
      %p90 = scmp.eq.s32.totalorder %s32, 0
      %p91 = por %p89, %p90
      %p92 = scmp.ne.s32.totalorder %s78, %s79
      %p93 = scmp.eq.s32.totalorder %s33, 3
      %p94 = por %p92, %p93
      %p96 = scmp.ne.s32.totalorder %s79, %s95
      %p97 = scmp.eq.s32.totalorder %s33, 0
      %p98 = por %p96, %p97
      %s99 = ssub.s32 %s35, %s42
      %p100 = scmp.eq.s32.totalorder %s99, 0
      %s102 = sadd.s32 %s101, 1
      %s103 = scalar_select %p100, %s101, %s102
      %p106 = pneg %p100
      %p107 = scmp.eq.s32.totalorder %s27, 3
      %p108 = por %p106, %p107
      %p109 = scmp.ne.s32.totalorder %s101, %s104
      %p110 = scmp.eq.s32.totalorder %s27, 0
      %p111 = por %p109, %p110
      %p112 = scmp.ne.s32.totalorder %s101, %s104
      %p113 = scmp.eq.s32.totalorder %s32, 3
      %p114 = por %p112, %p113
      %p115 = scmp.ne.s32.totalorder %s104, %s105
      %p116 = scmp.eq.s32.totalorder %s32, 0
      %p117 = por %p115, %p116
      %p118 = scmp.ne.s32.totalorder %s104, %s105
      %p119 = scmp.eq.s32.totalorder %s33, 3
      %p120 = por %p118, %p119
      %p122 = scmp.ne.s32.totalorder %s105, %s121
      %p123 = scmp.eq.s32.totalorder %s33, 0
      %p124 = por %p122, %p123
      %s125 = ssub.s32 %s35, %s42
      %p126 = scmp.eq.s32.totalorder %s125, 0
      %s128 = sadd.s32 %s127, 1
      %s129 = scalar_select %p126, %s127, %s128
      %p132 = pneg %p126
      %p133 = scmp.eq.s32.totalorder %s27, 3
      %p134 = por %p132, %p133
      %p135 = scmp.ne.s32.totalorder %s127, %s130
      %p136 = scmp.eq.s32.totalorder %s27, 0
      %p137 = por %p135, %p136
      %p138 = scmp.ne.s32.totalorder %s127, %s130
      %p139 = scmp.eq.s32.totalorder %s32, 3
      %p140 = por %p138, %p139
      %p141 = scmp.ne.s32.totalorder %s130, %s131
      %p142 = scmp.eq.s32.totalorder %s32, 0
      %p143 = por %p141, %p142
      %p144 = scmp.ne.s32.totalorder %s130, %s131
      %p145 = scmp.eq.s32.totalorder %s33, 3
      %p146 = por %p144, %p145
      %p148 = scmp.ne.s32.totalorder %s131, %s147
      %p149 = scmp.eq.s32.totalorder %s33, 0
      %p150 = por %p148, %p149
      %s151 = ssub.s32 %s35, %s42
      %p152 = scmp.eq.s32.totalorder %s151, 0
      %s154 = sadd.s32 %s153, 1
      %s155 = scalar_select %p152, %s153, %s154
      %p158 = pneg %p152
      %p159 = scmp.eq.s32.totalorder %s27, 3
      %p160 = por %p158, %p159
      %p161 = scmp.ne.s32.totalorder %s153, %s156
      %p162 = scmp.eq.s32.totalorder %s27, 0
      %p163 = por %p161, %p162
      %p164 = scmp.ne.s32.totalorder %s153, %s156
      %p165 = scmp.eq.s32.totalorder %s32, 3
      %p166 = por %p164, %p165
      %p167 = scmp.ne.s32.totalorder %s156, %s157
      %p168 = scmp.eq.s32.totalorder %s32, 0
      %p169 = por %p167, %p168
      %p170 = scmp.ne.s32.totalorder %s156, %s157
      %p171 = scmp.eq.s32.totalorder %s33, 3
      %p172 = por %p170, %p171
      %p174 = scmp.ne.s32.totalorder %s157, %s173
      %p175 = scmp.eq.s32.totalorder %s33, 0
      %p176 = por %p174, %p175
      %s177 = ssub.s32 %s35, %s42
      %p178 = scmp.eq.s32.totalorder %s177, 0
      %s180 = sadd.s32 %s179, 1
      %s181 = scalar_select %p178, %s179, %s180
      %p184 = pneg %p178
      %p185 = scmp.eq.s32.totalorder %s27, 3
      %p186 = por %p184, %p185
      %p187 = scmp.ne.s32.totalorder %s179, %s182
      %p188 = scmp.eq.s32.totalorder %s27, 0
      %p189 = por %p187, %p188
      %p190 = scmp.ne.s32.totalorder %s179, %s182
      %p191 = scmp.eq.s32.totalorder %s32, 3
      %p192 = por %p190, %p191
      %p193 = scmp.ne.s32.totalorder %s182, %s183
      %p194 = scmp.eq.s32.totalorder %s32, 0
      %p195 = por %p193, %p194
      %p196 = scmp.ne.s32.totalorder %s182, %s183
      %p197 = scmp.eq.s32.totalorder %s33, 3
      %p198 = por %p196, %p197
      %p200 = scmp.ne.s32.totalorder %s183, %s199
      %p201 = scmp.eq.s32.totalorder %s33, 0
      %p202 = por %p200, %p201
      %s203 = ssub.s32 %s35, %s42
      %p204 = scmp.eq.s32.totalorder %s203, 0
      %s206 = sadd.s32 %s205, 1
      %s207 = scalar_select %p204, %s205, %s206
      %p210 = pneg %p204
      %p211 = scmp.eq.s32.totalorder %s27, 3
      %p212 = por %p210, %p211
      %p213 = scmp.ne.s32.totalorder %s205, %s208
      %p214 = scmp.eq.s32.totalorder %s27, 0
      %p215 = por %p213, %p214
      %p216 = scmp.ne.s32.totalorder %s205, %s208
      %p217 = scmp.eq.s32.totalorder %s32, 3
      %p218 = por %p216, %p217
      %p219 = scmp.ne.s32.totalorder %s208, %s209
      %p220 = scmp.eq.s32.totalorder %s32, 0
      %p221 = por %p219, %p220
      %p222 = scmp.ne.s32.totalorder %s208, %s209
      %p223 = scmp.eq.s32.totalorder %s33, 3
      %p224 = por %p222, %p223
      %p226 = scmp.ne.s32.totalorder %s209, %s225
      %p227 = scmp.eq.s32.totalorder %s33, 0
      %p228 = por %p226, %p227
      %s229 = ssub.s32 %s35, %s42
      %p230 = scmp.eq.s32.totalorder %s229, 0
      %s232 = sadd.s32 %s231, 1
      %s233 = scalar_select %p230, %s231, %s232
      %p236 = pneg %p230
      %p237 = scmp.eq.s32.totalorder %s27, 3
      %p238 = por %p236, %p237
      %p239 = scmp.ne.s32.totalorder %s231, %s234
      %p240 = scmp.eq.s32.totalorder %s27, 0
      %p241 = por %p239, %p240
      %p242 = scmp.ne.s32.totalorder %s231, %s234
      %p243 = scmp.eq.s32.totalorder %s32, 3
      %p244 = por %p242, %p243
      %p245 = scmp.ne.s32.totalorder %s234, %s235
      %p246 = scmp.eq.s32.totalorder %s32, 0
      %p247 = por %p245, %p246
      %p248 = scmp.ne.s32.totalorder %s234, %s235
      %p249 = scmp.eq.s32.totalorder %s33, 3
      %p250 = por %p248, %p249
      %p252 = scmp.ne.s32.totalorder %s235, %s251
      %p253 = scmp.eq.s32.totalorder %s33, 0
      %p254 = por %p252, %p253
      %s255 = ssub.s32 %s35, %s42
      %p256 = scmp.eq.s32.totalorder %s255, 0
      %s258 = sadd.s32 %s257, 1
      %s259 = scalar_select %p256, %s257, %s258
      %p262 = pneg %p256
      %p263 = scmp.eq.s32.totalorder %s27, 3
      %p264 = por %p262, %p263
      %p265 = scmp.ne.s32.totalorder %s257, %s260
      %p266 = scmp.eq.s32.totalorder %s27, 0
      %p267 = por %p265, %p266
      %p268 = scmp.ne.s32.totalorder %s257, %s260
      %p269 = scmp.eq.s32.totalorder %s32, 3
      %p270 = por %p268, %p269
      %p271 = scmp.ne.s32.totalorder %s260, %s261
      %p272 = scmp.eq.s32.totalorder %s32, 0
      %p273 = por %p271, %p272
      %p274 = scmp.ne.s32.totalorder %s260, %s261
      %p275 = scmp.eq.s32.totalorder %s33, 3
      %p276 = por %p274, %p275
      %p278 = scmp.ne.s32.totalorder %s261, %s277
      %p279 = scmp.eq.s32.totalorder %s33, 0
      %p280 = por %p278, %p279
      %s281 = ssub.s32 %s35, %s42
      %p282 = scmp.eq.s32.totalorder %s281, 0
      %s284 = sadd.s32 %s283, 1
      %s285 = scalar_select %p282, %s283, %s284
      %p288 = pneg %p282
      %p289 = scmp.eq.s32.totalorder %s27, 3
      %p290 = por %p288, %p289
      %p291 = scmp.ne.s32.totalorder %s283, %s286
      %p292 = scmp.eq.s32.totalorder %s27, 0
      %p293 = por %p291, %p292
      %p294 = scmp.ne.s32.totalorder %s283, %s286
      %p295 = scmp.eq.s32.totalorder %s32, 3
      %p296 = por %p294, %p295
      %p297 = scmp.ne.s32.totalorder %s286, %s287
      %p298 = scmp.eq.s32.totalorder %s32, 0
      %p299 = por %p297, %p298
      %p300 = scmp.ne.s32.totalorder %s286, %s287
      %p301 = scmp.eq.s32.totalorder %s33, 3
      %p302 = por %p300, %p301
      %p304 = scmp.ne.s32.totalorder %s287, %s303
      %p305 = scmp.eq.s32.totalorder %s33, 0
      %p306 = por %p304, %p305
      %s307 = ssub.s32 %s35, %s42
      %p308 = scmp.eq.s32.totalorder %s307, 0
      %s310 = sadd.s32 %s309, 1
      %s311 = scalar_select %p308, %s309, %s310
      %p314 = pneg %p308
      %p315 = scmp.eq.s32.totalorder %s27, 3
      %p316 = por %p314, %p315
      %p317 = scmp.ne.s32.totalorder %s309, %s312
      %p318 = scmp.eq.s32.totalorder %s27, 0
      %p319 = por %p317, %p318
      %p320 = scmp.ne.s32.totalorder %s309, %s312
      %p321 = scmp.eq.s32.totalorder %s32, 3
      %p322 = por %p320, %p321
      %p323 = scmp.ne.s32.totalorder %s312, %s313
      %p324 = scmp.eq.s32.totalorder %s32, 0
      %p325 = por %p323, %p324
      %p326 = scmp.ne.s32.totalorder %s312, %s313
      %p327 = scmp.eq.s32.totalorder %s33, 3
      %p328 = por %p326, %p327
      %p330 = scmp.ne.s32.totalorder %s313, %s329
      %p331 = scmp.eq.s32.totalorder %s33, 0
      %p332 = por %p330, %p331
      %s333 = ssub.s32 %s35, %s42
      %p334 = scmp.eq.s32.totalorder %s333, 0
      %s336 = sadd.s32 %s335, 1
      %s337 = scalar_select %p334, %s335, %s336
      %p340 = pneg %p334
      %p341 = scmp.eq.s32.totalorder %s27, 3
      %p342 = por %p340, %p341
      %p343 = scmp.ne.s32.totalorder %s335, %s338
      %p344 = scmp.eq.s32.totalorder %s27, 0
      %p345 = por %p343, %p344
      %p346 = scmp.ne.s32.totalorder %s335, %s338
      %p347 = scmp.eq.s32.totalorder %s32, 3
      %p348 = por %p346, %p347
      %p349 = scmp.ne.s32.totalorder %s338, %s339
      %p350 = scmp.eq.s32.totalorder %s32, 0
      %p351 = por %p349, %p350
      %p352 = scmp.ne.s32.totalorder %s338, %s339
      %p353 = scmp.eq.s32.totalorder %s33, 3
      %p354 = por %p352, %p353
      %p356 = scmp.ne.s32.totalorder %s339, %s355
      %p357 = scmp.eq.s32.totalorder %s33, 0
      %p358 = por %p356, %p357
      %s359 = ssub.s32 %s35, %s42
      %p360 = scmp.eq.s32.totalorder %s359, 0
      %s362 = sadd.s32 %s361, 1
      %s363 = scalar_select %p360, %s361, %s362
      %p366 = pneg %p360
      %p367 = scmp.eq.s32.totalorder %s27, 3
      %p368 = por %p366, %p367
      %p369 = scmp.ne.s32.totalorder %s361, %s364
      %p370 = scmp.eq.s32.totalorder %s27, 0
      %p371 = por %p369, %p370
      %p372 = scmp.ne.s32.totalorder %s361, %s364
      %p373 = scmp.eq.s32.totalorder %s32, 3
      %p374 = por %p372, %p373
      %p375 = scmp.ne.s32.totalorder %s364, %s365
      %p376 = scmp.eq.s32.totalorder %s32, 0
      %p377 = por %p375, %p376
      %p378 = scmp.ne.s32.totalorder %s364, %s365
      %p379 = scmp.eq.s32.totalorder %s33, 3
      %p380 = por %p378, %p379
      %p382 = scmp.ne.s32.totalorder %s365, %s381
      %p383 = scmp.eq.s32.totalorder %s33, 0
      %p384 = por %p382, %p383
      %s386 = sadd.s32 %s385, 1
      %p389 = scmp.eq.s32.totalorder %s27, 3
      %p390 = scmp.ne.s32.totalorder %s385, %s387
      %p391 = scmp.eq.s32.totalorder %s27, 0
      %p392 = por %p390, %p391
      %p393 = scmp.ne.s32.totalorder %s385, %s387
      %p394 = scmp.eq.s32.totalorder %s32, 3
      %p395 = por %p393, %p394
      %p396 = scmp.ne.s32.totalorder %s387, %s388
      %p397 = scmp.eq.s32.totalorder %s32, 0
      %p398 = por %p396, %p397
      %p399 = scmp.ne.s32.totalorder %s387, %s388
      %p400 = scmp.eq.s32.totalorder %s33, 3
      %p401 = por %p399, %p400
      %p403 = scmp.ne.s32.totalorder %s388, %s402
      %p404 = scmp.eq.s32.totalorder %s33, 0
      %p405 = por %p403, %p404
      %s407 = sadd.s32 %s406, 1
      %p410 = scmp.eq.s32.totalorder %s27, 3
      %p411 = scmp.ne.s32.totalorder %s406, %s408
      %p412 = scmp.eq.s32.totalorder %s27, 0
      %p413 = por %p411, %p412
      %p414 = scmp.ne.s32.totalorder %s406, %s408
      %p415 = scmp.eq.s32.totalorder %s32, 3
      %p416 = por %p414, %p415
      %p417 = scmp.ne.s32.totalorder %s408, %s409
      %p418 = scmp.eq.s32.totalorder %s32, 0
      %p419 = por %p417, %p418
      %p420 = scmp.ne.s32.totalorder %s408, %s409
      %p421 = scmp.eq.s32.totalorder %s33, 3
      %p422 = por %p420, %p421
      %p424 = scmp.ne.s32.totalorder %s409, %s423
      %p425 = scmp.eq.s32.totalorder %s33, 0
      %p426 = por %p424, %p425
      %s428 = sadd.s32 %s427, 1
      %p431 = scmp.eq.s32.totalorder %s27, 3
      %p432 = scmp.ne.s32.totalorder %s427, %s429
      %p433 = scmp.eq.s32.totalorder %s27, 0
      %p434 = por %p432, %p433
      %p435 = scmp.ne.s32.totalorder %s427, %s429
      %p436 = scmp.eq.s32.totalorder %s32, 3
      %p437 = por %p435, %p436
      %p438 = scmp.ne.s32.totalorder %s429, %s430
      %p439 = scmp.eq.s32.totalorder %s32, 0
      %p440 = por %p438, %p439
      %p441 = scmp.ne.s32.totalorder %s429, %s430
      %p442 = scmp.eq.s32.totalorder %s33, 3
      %p443 = por %p441, %p442
      %p445 = scmp.ne.s32.totalorder %s430, %s444
      %p446 = scmp.eq.s32.totalorder %s33, 0
      %p447 = por %p445, %p446
      %s449 = sadd.s32 %s448, 1
      %p452 = scmp.eq.s32.totalorder %s27, 3
      %p453 = scmp.ne.s32.totalorder %s448, %s450
      %p454 = scmp.eq.s32.totalorder %s27, 0
      %p455 = por %p453, %p454
      %p456 = scmp.ne.s32.totalorder %s448, %s450
      %p457 = scmp.eq.s32.totalorder %s32, 3
      %p458 = por %p456, %p457
      %p459 = scmp.ne.s32.totalorder %s450, %s451
      %p460 = scmp.eq.s32.totalorder %s32, 0
      %p461 = por %p459, %p460
      %p462 = scmp.ne.s32.totalorder %s450, %s451
      %p463 = scmp.eq.s32.totalorder %s33, 3
      %p464 = por %p462, %p463
      %p466 = scmp.ne.s32.totalorder %s451, %s465
      %p467 = scmp.eq.s32.totalorder %s33, 0
      %p468 = por %p466, %p467
      %s469 = ssub.s32 %s34, %s46
      %p470 = scmp.eq.s32.totalorder %s469, 0
      %s472 = sadd.s32 %s471, 1
      %s473 = scalar_select %p470, %s471, %s472
      %p476 = pneg %p470
      %p477 = scmp.eq.s32.totalorder %s27, 3
      %p478 = por %p476, %p477
      %p479 = scmp.ne.s32.totalorder %s471, %s474
      %p480 = scmp.eq.s32.totalorder %s27, 0
      %p481 = por %p479, %p480
      %p482 = scmp.ne.s32.totalorder %s471, %s474
      %p483 = scmp.eq.s32.totalorder %s32, 3
      %p484 = por %p482, %p483
      %p485 = scmp.ne.s32.totalorder %s474, %s475
      %p486 = scmp.eq.s32.totalorder %s32, 0
      %p487 = por %p485, %p486
      %p488 = scmp.ne.s32.totalorder %s474, %s475
      %p489 = scmp.eq.s32.totalorder %s33, 3
      %p490 = por %p488, %p489
      %p492 = scmp.ne.s32.totalorder %s475, %s491
      %p493 = scmp.eq.s32.totalorder %s33, 0
      %p494 = por %p492, %p493
      %p495 = scmp.le.s32.totalorder 1, %s27
      %p496 = scmp.lt.s32.totalorder %s27, 5
      %p497 = pnand %p495, %p496
      %p498 = pneg %p497
      // Predicated region
      $region9: #{gpt2_forward.1} parent=5 // pred_check
        _
      $region10: #{gpt2_forward.1} parent=5 // pred_check_branch
        %500 = sbr.rel (%p497) target = $region12
      $region11: #{gpt2_forward.1} parent=5 // pred_region
        %s501 = ssub.s32 %s27, 1
        // Predicated region
        $region13: #{gpt2_forward.1} parent=11 // pred_check
          %p502 = pneg %p398
        $region14: #{gpt2_forward.1} parent=11 // pred_check_branch
          %504 = sbr.rel (%p502) target = $region16
        $region15: #{gpt2_forward.1} parent=11 // pred_region
          _
        $region16: #{gpt2_forward.1} parent=11 // pred_fallthru
          _
        // Predicated region
        $region17: #{gpt2_forward.1} parent=11 // pred_check
          %p505 = pneg %p419
        $region18: #{gpt2_forward.1} parent=11 // pred_check_branch
          %507 = sbr.rel (%p505) target = $region20
        $region19: #{gpt2_forward.1} parent=11 // pred_region
          _
        $region20: #{gpt2_forward.1} parent=11 // pred_fallthru
          _
        // Predicated region
        $region21: #{gpt2_forward.1} parent=11 // pred_check
          %p508 = pneg %p440
        $region22: #{gpt2_forward.1} parent=11 // pred_check_branch
          %510 = sbr.rel (%p508) target = $region24
        $region23: #{gpt2_forward.1} parent=11 // pred_region
          _
        $region24: #{gpt2_forward.1} parent=11 // pred_fallthru
          _
        // Predicated region
        $region25: #{gpt2_forward.1} parent=11 // pred_check
          %p511 = pneg %p461
        $region26: #{gpt2_forward.1} parent=11 // pred_check_branch
          %513 = sbr.rel (%p511) target = $region28
        $region27: #{gpt2_forward.1} parent=11 // pred_region
          %s515 = ssub.s32 32, 32
          %516 = vsyncadd [#allocation4], %s515
          %s518 = sshll.u32 [#allocation3], 4
          %s519 = int_to_ptr.vmem [resolvable:$true] %s518
          %521 = dma.hbm_to_vmem [thread:$0]  %s16, 32, %s519, [#allocation4]
        $region28: #{gpt2_forward.1} parent=11 // pred_fallthru
          _
      $region12: #{gpt2_forward.1} parent=5 // pred_fallthru
        _
      %p522 = scmp.lt.s32.totalorder %s27, 4
      // Predicated region
      $region29: #{gpt2_forward.1} parent=5 // pred_check
        %p523 = pneg %p522
      $region30: #{gpt2_forward.1} parent=5 // pred_check_branch
        %525 = sbr.rel (%p523) target = $region32
      $region31: #{gpt2_forward.1} parent=5 // pred_region
        // Predicated region
        $region33: #{gpt2_forward.1} parent=31 // pred_check
          %p526 = pneg %p59
        $region34: #{gpt2_forward.1} parent=31 // pred_check_branch
          %528 = sbr.rel (%p526) target = $region36
        $region35: #{gpt2_forward.1} parent=31 // pred_region
          %s529 = smul.u32 8, %s34
          %p530 = scmp.lt.s32.totalorder %s529, 15
          %s531 = scalar_select %p530, %s529, 15
          %s532 = smul.addr %s531, 8
          %s533 = scalar_lea.vmem %s0, %s532
          %s534 = smul.u32 8, %s34
        $region36: #{gpt2_forward.1} parent=31 // pred_fallthru
          _
        // Predicated region
        $region37: #{gpt2_forward.1} parent=31 // pred_check
          %p535 = pneg %p85
        $region38: #{gpt2_forward.1} parent=31 // pred_check_branch
          %537 = sbr.rel (%p535) target = $region40
        $region39: #{gpt2_forward.1} parent=31 // pred_region
          %p538 = scmp.lt.s32.totalorder %s35, 1
          %s539 = scalar_select %p538, %s35, 1
          %s540 = scalar_lea.vmem %s1, %s539
        $region40: #{gpt2_forward.1} parent=31 // pred_fallthru
          _
        // Predicated region
        $region41: #{gpt2_forward.1} parent=31 // pred_check
          %p541 = pneg %p111
        $region42: #{gpt2_forward.1} parent=31 // pred_check_branch
          %543 = sbr.rel (%p541) target = $region44
        $region43: #{gpt2_forward.1} parent=31 // pred_region
          %p544 = scmp.lt.s32.totalorder %s35, 1
          %s545 = scalar_select %p544, %s35, 1
          %s546 = scalar_lea.vmem %s2, %s545
        $region44: #{gpt2_forward.1} parent=31 // pred_fallthru
          _
        // Predicated region
        $region45: #{gpt2_forward.1} parent=31 // pred_check
          %p547 = pneg %p137
        $region46: #{gpt2_forward.1} parent=31 // pred_check_branch
          %549 = sbr.rel (%p547) target = $region48
        $region47: #{gpt2_forward.1} parent=31 // pred_region
          %p550 = scmp.lt.s32.totalorder %s35, 1
          %s551 = scalar_select %p550, %s35, 1
          %s552 = smul.addr %s551, 48
          %s553 = smul.addr %s552, 4
          %s554 = scalar_lea.vmem %s3, %s553
        $region48: #{gpt2_forward.1} parent=31 // pred_fallthru
          _
        // Predicated region
        $region49: #{gpt2_forward.1} parent=31 // pred_check
          %p555 = pneg %p163
        $region50: #{gpt2_forward.1} parent=31 // pred_check_branch
          %557 = sbr.rel (%p555) target = $region52
        $region51: #{gpt2_forward.1} parent=31 // pred_region
          %p558 = scmp.lt.s32.totalorder %s35, 1
          %s559 = scalar_select %p558, %s35, 1
          %s560 = smul.addr %s559, 3
          %s561 = scalar_lea.vmem %s4, %s560
        $region52: #{gpt2_forward.1} parent=31 // pred_fallthru
          _
        // Predicated region
        $region53: #{gpt2_forward.1} parent=31 // pred_check
          %p562 = pneg %p189
        $region54: #{gpt2_forward.1} parent=31 // pred_check_branch
          %564 = sbr.rel (%p562) target = $region56
        $region55: #{gpt2_forward.1} parent=31 // pred_region
          %p565 = scmp.lt.s32.totalorder %s35, 1
          %s566 = scalar_select %p565, %s35, 1
          %s567 = smul.addr %s566, 16
          %s568 = smul.addr %s567, 4
          %s569 = scalar_lea.vmem %s5, %s568
        $region56: #{gpt2_forward.1} parent=31 // pred_fallthru
          _
        // Predicated region
        $region57: #{gpt2_forward.1} parent=31 // pred_check
          %p570 = pneg %p215
        $region58: #{gpt2_forward.1} parent=31 // pred_check_branch
          %572 = sbr.rel (%p570) target = $region60
        $region59: #{gpt2_forward.1} parent=31 // pred_region
          %p573 = scmp.lt.s32.totalorder %s35, 1
          %s574 = scalar_select %p573, %s35, 1
          %s575 = scalar_lea.vmem %s6, %s574
        $region60: #{gpt2_forward.1} parent=31 // pred_fallthru
          _
        // Predicated region
        $region61: #{gpt2_forward.1} parent=31 // pred_check
          %p576 = pneg %p241
        $region62: #{gpt2_forward.1} parent=31 // pred_check_branch
          %578 = sbr.rel (%p576) target = $region64
        $region63: #{gpt2_forward.1} parent=31 // pred_region
          %p579 = scmp.lt.s32.totalorder %s35, 1
          %s580 = scalar_select %p579, %s35, 1
          %s581 = scalar_lea.vmem %s7, %s580
        $region64: #{gpt2_forward.1} parent=31 // pred_fallthru
          _
        // Predicated region
        $region65: #{gpt2_forward.1} parent=31 // pred_check
          %p582 = pneg %p267
        $region66: #{gpt2_forward.1} parent=31 // pred_check_branch
          %584 = sbr.rel (%p582) target = $region68
        $region67: #{gpt2_forward.1} parent=31 // pred_region
          %p585 = scmp.lt.s32.totalorder %s35, 1
          %s586 = scalar_select %p585, %s35, 1
          %s587 = scalar_lea.vmem %s8, %s586
        $region68: #{gpt2_forward.1} parent=31 // pred_fallthru
          _
        // Predicated region
        $region69: #{gpt2_forward.1} parent=31 // pred_check
          %p588 = pneg %p293
        $region70: #{gpt2_forward.1} parent=31 // pred_check_branch
          %590 = sbr.rel (%p588) target = $region72
        $region71: #{gpt2_forward.1} parent=31 // pred_region
          %p591 = scmp.lt.s32.totalorder %s35, 1
          %s592 = scalar_select %p591, %s35, 1
          %s593 = smul.addr %s592, 64
          %s594 = smul.addr %s593, 4
          %s595 = scalar_lea.vmem %s9, %s594
        $region72: #{gpt2_forward.1} parent=31 // pred_fallthru
          _
        // Predicated region
        $region73: #{gpt2_forward.1} parent=31 // pred_check
          %p596 = pneg %p319
        $region74: #{gpt2_forward.1} parent=31 // pred_check_branch
          %598 = sbr.rel (%p596) target = $region76
        $region75: #{gpt2_forward.1} parent=31 // pred_region
          %p599 = scmp.lt.s32.totalorder %s35, 1
          %s600 = scalar_select %p599, %s35, 1
          %s601 = smul.addr %s600, 4
          %s602 = scalar_lea.vmem %s10, %s601
        $region76: #{gpt2_forward.1} parent=31 // pred_fallthru
          _
        // Predicated region
        $region77: #{gpt2_forward.1} parent=31 // pred_check
          %p603 = pneg %p345
        $region78: #{gpt2_forward.1} parent=31 // pred_check_branch
          %605 = sbr.rel (%p603) target = $region80
        $region79: #{gpt2_forward.1} parent=31 // pred_region
          %p606 = scmp.lt.s32.totalorder %s35, 1
          %s607 = scalar_select %p606, %s35, 1
          %s608 = smul.addr %s607, 64
          %s609 = smul.addr %s608, 4
          %s610 = scalar_lea.vmem %s11, %s609
        $region80: #{gpt2_forward.1} parent=31 // pred_fallthru
          _
        // Predicated region
        $region81: #{gpt2_forward.1} parent=31 // pred_check
          %p611 = pneg %p371
        $region82: #{gpt2_forward.1} parent=31 // pred_check_branch
          %613 = sbr.rel (%p611) target = $region84
        $region83: #{gpt2_forward.1} parent=31 // pred_region
          %p614 = scmp.lt.s32.totalorder %s35, 1
          %s615 = scalar_select %p614, %s35, 1
          %s616 = scalar_lea.vmem %s12, %s615
        $region84: #{gpt2_forward.1} parent=31 // pred_fallthru
          _
      $region32: #{gpt2_forward.1} parent=5 // pred_fallthru
        _
      %p617 = scmp.le.s32.totalorder 1, %s27
      %p618 = scmp.lt.s32.totalorder %s27, 5
      %p619 = pnand %p617, %p618
      %p620 = pneg %p619
      // Predicated region
      $region85: #{gpt2_forward.1} parent=5 // pred_check
        _
      $region86: #{gpt2_forward.1} parent=5 // pred_check_branch
        %622 = sbr.rel (%p619) target = $region88
      $region87: #{gpt2_forward.1} parent=5 // pred_region
        %s623 = ssub.s32 %s27, 1
        // Predicated region
        $region89: #{gpt2_forward.1} parent=87 // pred_check
          %p624 = pneg %p461
        $region90: #{gpt2_forward.1} parent=87 // pred_check_branch
          %626 = sbr.rel (%p624) target = $region92
        $region91: #{gpt2_forward.1} parent=87 // pred_region
          %627 = dma.done [#allocation4], 32
        $region92: #{gpt2_forward.1} parent=87 // pred_fallthru
          _
        %s628 = smul.u32 8, %s36
        %p629 = scmp.lt.s32.totalorder %s628, 15
        %s630 = scalar_select %p629, %s628, 15
        %s631 = smul.addr %s630, 8
        %s632 = scalar_lea.vmem %s0, %s631
        %p633 = pneg %p65
        %p634 = pneg %p62
        %p635 = scmp.lt.s32.totalorder %s37, 1
        %s636 = scalar_select %p635, %s37, 1
        %s637 = scalar_lea.vmem %s1, %s636
        %p638 = pneg %p91
        %p639 = pneg %p88
        %p640 = scmp.lt.s32.totalorder %s37, 1
        %s641 = scalar_select %p640, %s37, 1
        %s642 = scalar_lea.vmem %s2, %s641
        %p643 = pneg %p117
        %p644 = pneg %p114
        %p645 = scmp.lt.s32.totalorder %s37, 1
        %s646 = scalar_select %p645, %s37, 1
        %s647 = smul.addr %s646, 48
        %s648 = smul.addr %s647, 4
        %s649 = scalar_lea.vmem %s3, %s648
        %p650 = pneg %p143
        %p651 = pneg %p140
        %p652 = scmp.lt.s32.totalorder %s37, 1
        %s653 = scalar_select %p652, %s37, 1
        %s654 = smul.addr %s653, 3
        %s655 = scalar_lea.vmem %s4, %s654
        %p656 = pneg %p169
        %p657 = pneg %p166
        %p658 = scmp.lt.s32.totalorder %s37, 1
        %s659 = scalar_select %p658, %s37, 1
        %s660 = smul.addr %s659, 16
        %s661 = smul.addr %s660, 4
        %s662 = scalar_lea.vmem %s5, %s661
        %p663 = pneg %p195
        %p664 = pneg %p192
        %p665 = scmp.lt.s32.totalorder %s37, 1
        %s666 = scalar_select %p665, %s37, 1
        %s667 = scalar_lea.vmem %s6, %s666
        %p668 = pneg %p221
        %p669 = pneg %p218
        %p670 = scmp.lt.s32.totalorder %s37, 1
        %s671 = scalar_select %p670, %s37, 1
        %s672 = scalar_lea.vmem %s7, %s671
        %p673 = pneg %p247
        %p674 = pneg %p244
        %p675 = scmp.lt.s32.totalorder %s37, 1
        %s676 = scalar_select %p675, %s37, 1
        %s677 = scalar_lea.vmem %s8, %s676
        %p678 = pneg %p273
        %p679 = pneg %p270
        %p680 = scmp.lt.s32.totalorder %s37, 1
        %s681 = scalar_select %p680, %s37, 1
        %s682 = smul.addr %s681, 64
        %s683 = smul.addr %s682, 4
        %s684 = scalar_lea.vmem %s9, %s683
        %p685 = pneg %p299
        %p686 = pneg %p296
        %p687 = scmp.lt.s32.totalorder %s37, 1
        %s688 = scalar_select %p687, %s37, 1
        %s689 = smul.addr %s688, 4
        %s690 = scalar_lea.vmem %s10, %s689
        %p691 = pneg %p325
        %p692 = pneg %p322
        %p693 = scmp.lt.s32.totalorder %s37, 1
        %s694 = scalar_select %p693, %s37, 1
        %s695 = smul.addr %s694, 64
        %s696 = smul.addr %s695, 4
        %s697 = scalar_lea.vmem %s11, %s696
        %p698 = pneg %p351
        %p699 = pneg %p348
        %p700 = scmp.lt.s32.totalorder %s37, 1
        %s701 = scalar_select %p700, %s37, 1
        %s702 = scalar_lea.vmem %s12, %s701
        %p703 = pneg %p377
        %p704 = pneg %p374
        %p705 = pneg %p398
        %p706 = pneg %p395
        %p707 = pneg %p419
        %p708 = pneg %p416
        %p709 = pneg %p440
        %p710 = pneg %p437
        %p711 = pneg %p461
        %p712 = pneg %p458
        %p713 = pneg %p487
        %p714 = pneg %p484
        %s715 = sand.u32 %s474, 1
        %s716 = scalar_lea.sflag [#allocation5], %s715
        %s717 = sand.u32 %s474, 1
        %s718 = smul.addr %s717, 128
        %s719 = scalar_lea.vmem [#allocation6], %s718
        %s720 = smul.u32 8, %s36
        %p721 = scmp.lt.s32.totalorder %s720, 15
        %s722 = scalar_select %p721, %s720, 15
        %s723 = smul.addr %s722, 8
        %s724 = scalar_lea.vmem %s0, %s723
        %s725 = smul.u32 8, %s36
        %p726 = scmp.lt.s32.totalorder %s37, 1
        %s727 = scalar_select %p726, %s37, 1
        %s728 = scalar_lea.vmem %s1, %s727
        %p729 = scmp.lt.s32.totalorder %s37, 1
        %s730 = scalar_select %p729, %s37, 1
        %s731 = scalar_lea.vmem %s2, %s730
        %p732 = scmp.lt.s32.totalorder %s37, 1
        %s733 = scalar_select %p732, %s37, 1
        %s734 = smul.addr %s733, 48
        %s735 = smul.addr %s734, 4
        %s736 = scalar_lea.vmem %s3, %s735
        %p737 = scmp.lt.s32.totalorder %s37, 1
        %s738 = scalar_select %p737, %s37, 1
        %s739 = smul.addr %s738, 3
        %s740 = scalar_lea.vmem %s4, %s739
        %p741 = scmp.lt.s32.totalorder %s37, 1
        %s742 = scalar_select %p741, %s37, 1
        %s743 = smul.addr %s742, 16
        %s744 = smul.addr %s743, 4
        %s745 = scalar_lea.vmem %s5, %s744
        %p746 = scmp.lt.s32.totalorder %s37, 1
        %s747 = scalar_select %p746, %s37, 1
        %s748 = scalar_lea.vmem %s6, %s747
        %p749 = scmp.lt.s32.totalorder %s37, 1
        %s750 = scalar_select %p749, %s37, 1
        %s751 = scalar_lea.vmem %s7, %s750
        %p752 = scmp.lt.s32.totalorder %s37, 1
        %s753 = scalar_select %p752, %s37, 1
        %s754 = scalar_lea.vmem %s8, %s753
        %p755 = scmp.lt.s32.totalorder %s37, 1
        %s756 = scalar_select %p755, %s37, 1
        %s757 = smul.addr %s756, 64
        %s758 = smul.addr %s757, 4
        %s759 = scalar_lea.vmem %s9, %s758
        %p760 = scmp.lt.s32.totalorder %s37, 1
        %s761 = scalar_select %p760, %s37, 1
        %s762 = smul.addr %s761, 4
        %s763 = scalar_lea.vmem %s10, %s762
        %p764 = scmp.lt.s32.totalorder %s37, 1
        %s765 = scalar_select %p764, %s37, 1
        %s766 = smul.addr %s765, 64
        %s767 = smul.addr %s766, 4
        %s768 = scalar_lea.vmem %s11, %s767
        %p769 = scmp.lt.s32.totalorder %s37, 1
        %s770 = scalar_select %p769, %s37, 1
        %s771 = scalar_lea.vmem %s12, %s770
        %s772 = smul.u32 8, %s36
        %p774 = scmp.eq.s32.totalorder %s37, 0
        // Predicated region
        $region93: #{gpt2_forward.1} parent=87 // pred_check
          %p775 = pneg %p774
        $region94: #{gpt2_forward.1} parent=87 // pred_check_branch
          %777 = sbr.rel (%p775) target = $region96
        $region95: #{gpt2_forward.1} parent=87 // pred_region
          %v778 = vld [vmem:[%s724] sm:$0xff]
          %v779 = vld [vmem:[%s724 + $0x8] sm:$0xff]
          %v780 = vld [vmem:[%s724 + $0x10] sm:$0xff]
          %v781 = vld [vmem:[%s724 + $0x18] sm:$0xff]
          %v782 = vld [vmem:[%s724 + $0x20] sm:$0xff]
          %v783 = vld [vmem:[%s724 + $0x28] sm:$0xff]
          %v784 = vld [vmem:[%s724 + $0x30] sm:$0xff]
          %v785 = vld [vmem:[%s724 + $0x38] sm:$0xff]
          %786 = vst [vmem:[#allocation2] sm:$0xff] %v778
          %787 = vst [vmem:[#allocation2 + $0x8] sm:$0xff] %v779
          %788 = vst [vmem:[#allocation2 + $0x10] sm:$0xff] %v780
          %789 = vst [vmem:[#allocation2 + $0x18] sm:$0xff] %v781
          %790 = vst [vmem:[#allocation2 + $0x20] sm:$0xff] %v782
          %791 = vst [vmem:[#allocation2 + $0x28] sm:$0xff] %v783
          %792 = vst [vmem:[#allocation2 + $0x30] sm:$0xff] %v784
          %793 = vst [vmem:[#allocation2 + $0x38] sm:$0xff] %v785
        $region96: #{gpt2_forward.1} parent=87 // pred_fallthru
          _
        %v794 = vld [vmem:[#allocation2] sm:$0xff]
        %v795 = vld [vmem:[#allocation2 + $0x8] sm:$0xff]
        %v796 = vld [vmem:[#allocation2 + $0x10] sm:$0xff]
        %v797 = vld [vmem:[#allocation2 + $0x18] sm:$0xff]
        %v798 = vld [vmem:[#allocation2 + $0x20] sm:$0xff]
        %v799 = vld [vmem:[#allocation2 + $0x28] sm:$0xff]
        %v800 = vld [vmem:[#allocation2 + $0x30] sm:$0xff]
        %v801 = vld [vmem:[#allocation2 + $0x38] sm:$0xff]
        %v802 = vlaneseq
        %v803 = vshrl.u32 %v802, 7
        %v804 = vadd.s32 %v803, 8
        %v805 = vadd.s32 %v803, 16
        %v806 = vadd.s32 %v803, 24
        %v807 = vadd.s32 %v803, 32
        %v808 = vadd.s32 %v803, 40
        %v809 = vadd.s32 %v803, 48
        %v810 = vadd.s32 %v803, 56
        %v811 = vlaneseq
        %v812 = vand.u32 %v811, 127
        %v813 = vadd.s32 %v812, 128
        %v814 = vand.u32 %v812, 63
        %v815 = vand.u32 %v813, 63
        %vm816 = vcmp.le.s32.totalorder %v814, %v803
        %vm817 = vcmp.le.s32.totalorder %v815, %v803
        %vm818 = vcmp.le.s32.totalorder %v814, %v804
        %vm819 = vcmp.le.s32.totalorder %v815, %v804
        %vm820 = vcmp.le.s32.totalorder %v814, %v805
        %vm821 = vcmp.le.s32.totalorder %v815, %v805
        %vm822 = vcmp.le.s32.totalorder %v814, %v806
        %vm823 = vcmp.le.s32.totalorder %v815, %v806
        %vm824 = vcmp.le.s32.totalorder %v814, %v807
        %vm825 = vcmp.le.s32.totalorder %v815, %v807
        %vm826 = vcmp.le.s32.totalorder %v814, %v808
        %vm827 = vcmp.le.s32.totalorder %v815, %v808
        %vm828 = vcmp.le.s32.totalorder %v814, %v809
        %vm829 = vcmp.le.s32.totalorder %v815, %v809
        %vm830 = vcmp.le.s32.totalorder %v814, %v810
        %vm831 = vcmp.le.s32.totalorder %v815, %v810
        %v832 = vsel %vm816, 0.0, -1e+30
        %v833 = vsel %vm817, 0.0, -1e+30
        %v834 = vsel %vm818, 0.0, -1e+30
        %v835 = vsel %vm819, 0.0, -1e+30
        %v836 = vsel %vm820, 0.0, -1e+30
        %v837 = vsel %vm821, 0.0, -1e+30
        %v838 = vsel %vm822, 0.0, -1e+30
        %v839 = vsel %vm823, 0.0, -1e+30
        %v840 = vsel %vm824, 0.0, -1e+30
        %v841 = vsel %vm825, 0.0, -1e+30
        %v842 = vsel %vm826, 0.0, -1e+30
        %v843 = vsel %vm827, 0.0, -1e+30
        %v844 = vsel %vm828, 0.0, -1e+30
        %v845 = vsel %vm829, 0.0, -1e+30
        %v846 = vsel %vm830, 0.0, -1e+30
        %v847 = vsel %vm831, 0.0, -1e+30
        %v848 = vadd.s32 %v803, 64
        %v849 = vadd.s32 %v803, 72
        %v850 = vadd.s32 %v803, 80
        %v851 = vadd.s32 %v803, 88
        %v852 = vadd.s32 %v803, 96
        %v853 = vadd.s32 %v803, 104
        %v854 = vadd.s32 %v803, 112
        %v855 = vadd.s32 %v803, 120
        %v856 = vadd.s32 %v803, 128
        %v857 = vadd.s32 %v803, 136
        %v858 = vadd.s32 %v803, 144
        %v859 = vadd.s32 %v803, 152
        %v860 = vadd.s32 %v803, 160
        %v861 = vadd.s32 %v803, 168
        %v862 = vadd.s32 %v803, 176
        %v863 = vadd.s32 %v803, 184
        %v864 = vadd.s32 %v803, 192
        %v865 = vadd.s32 %v803, 200
        %v866 = vadd.s32 %v803, 208
        %v867 = vadd.s32 %v803, 216
        %v868 = vadd.s32 %v803, 224
        %v869 = vadd.s32 %v803, 232
        %v870 = vadd.s32 %v803, 240
        %v871 = vadd.s32 %v803, 248
        %v872 = vshra.s32 %v803, 6
        %v873 = vshra.s32 %v804, 6
        %v874 = vshra.s32 %v805, 6
        %v875 = vshra.s32 %v806, 6
        %v876 = vshra.s32 %v807, 6
        %v877 = vshra.s32 %v808, 6
        %v878 = vshra.s32 %v809, 6
        %v879 = vshra.s32 %v810, 6
        %v880 = vshra.s32 %v848, 6
        %v881 = vshra.s32 %v849, 6
        %v882 = vshra.s32 %v850, 6
        %v883 = vshra.s32 %v851, 6
        %v884 = vshra.s32 %v852, 6
        %v885 = vshra.s32 %v853, 6
        %v886 = vshra.s32 %v854, 6
        %v887 = vshra.s32 %v855, 6
        %v888 = vshra.s32 %v856, 6
        %v889 = vshra.s32 %v857, 6
        %v890 = vshra.s32 %v858, 6
        %v891 = vshra.s32 %v859, 6
        %v892 = vshra.s32 %v860, 6
        %v893 = vshra.s32 %v861, 6
        %v894 = vshra.s32 %v862, 6
        %v895 = vshra.s32 %v863, 6
        %v896 = vshra.s32 %v864, 6
        %v897 = vshra.s32 %v865, 6
        %v898 = vshra.s32 %v866, 6
        %v899 = vshra.s32 %v867, 6
        %v900 = vshra.s32 %v868, 6
        %v901 = vshra.s32 %v869, 6
        %v902 = vshra.s32 %v870, 6
        %v903 = vshra.s32 %v871, 6
        %v904 = vshra.s32 %v812, 5
        %vm905 = vcmp.eq.s32.totalorder %v872, %v904
        %vm906 = vcmp.eq.s32.totalorder %v873, %v904
        %vm907 = vcmp.eq.s32.totalorder %v874, %v904
        %vm908 = vcmp.eq.s32.totalorder %v875, %v904
        %vm909 = vcmp.eq.s32.totalorder %v876, %v904
        %vm910 = vcmp.eq.s32.totalorder %v877, %v904
        %vm911 = vcmp.eq.s32.totalorder %v878, %v904
        %vm912 = vcmp.eq.s32.totalorder %v879, %v904
        %vm913 = vcmp.eq.s32.totalorder %v880, %v904
        %vm914 = vcmp.eq.s32.totalorder %v881, %v904
        %vm915 = vcmp.eq.s32.totalorder %v882, %v904
        %vm916 = vcmp.eq.s32.totalorder %v883, %v904
        %vm917 = vcmp.eq.s32.totalorder %v884, %v904
        %vm918 = vcmp.eq.s32.totalorder %v885, %v904
        %vm919 = vcmp.eq.s32.totalorder %v886, %v904
        %vm920 = vcmp.eq.s32.totalorder %v887, %v904
        %vm921 = vcmp.eq.s32.totalorder %v888, %v904
        %vm922 = vcmp.eq.s32.totalorder %v889, %v904
        %vm923 = vcmp.eq.s32.totalorder %v890, %v904
        %vm924 = vcmp.eq.s32.totalorder %v891, %v904
        %vm925 = vcmp.eq.s32.totalorder %v892, %v904
        %vm926 = vcmp.eq.s32.totalorder %v893, %v904
        %vm927 = vcmp.eq.s32.totalorder %v894, %v904
        %vm928 = vcmp.eq.s32.totalorder %v895, %v904
        %vm929 = vcmp.eq.s32.totalorder %v896, %v904
        %vm930 = vcmp.eq.s32.totalorder %v897, %v904
        %vm931 = vcmp.eq.s32.totalorder %v898, %v904
        %vm932 = vcmp.eq.s32.totalorder %v899, %v904
        %vm933 = vcmp.eq.s32.totalorder %v900, %v904
        %vm934 = vcmp.eq.s32.totalorder %v901, %v904
        %vm935 = vcmp.eq.s32.totalorder %v902, %v904
        %vm936 = vcmp.eq.s32.totalorder %v903, %v904
        %v937 = vsel %vm905, 1, 0
        %v938 = vsel %vm906, 1, 0
        %v939 = vsel %vm907, 1, 0
        %v940 = vsel %vm908, 1, 0
        %v941 = vsel %vm909, 1, 0
        %v942 = vsel %vm910, 1, 0
        %v943 = vsel %vm911, 1, 0
        %v944 = vsel %vm912, 1, 0
        %v945 = vsel %vm913, 1, 0
        %v946 = vsel %vm914, 1, 0
        %v947 = vsel %vm915, 1, 0
        %v948 = vsel %vm916, 1, 0
        %v949 = vsel %vm917, 1, 0
        %v950 = vsel %vm918, 1, 0
        %v951 = vsel %vm919, 1, 0
        %v952 = vsel %vm920, 1, 0
        %v953 = vsel %vm921, 1, 0
        %v954 = vsel %vm922, 1, 0
        %v955 = vsel %vm923, 1, 0
        %v956 = vsel %vm924, 1, 0
        %v957 = vsel %vm925, 1, 0
        %v958 = vsel %vm926, 1, 0
        %v959 = vsel %vm927, 1, 0
        %v960 = vsel %vm928, 1, 0
        %v961 = vsel %vm929, 1, 0
        %v962 = vsel %vm930, 1, 0
        %v963 = vsel %vm931, 1, 0
        %v964 = vsel %vm932, 1, 0
        %v965 = vsel %vm933, 1, 0
        %v966 = vsel %vm934, 1, 0
        %v967 = vsel %vm935, 1, 0
        %v968 = vsel %vm936, 1, 0
        %v969 = vcvt.s32.f32 %v937
        %v970 = vcvt.s32.f32 %v938
        %v971 = vcvt.s32.f32 %v939
        %v972 = vcvt.s32.f32 %v940
        %v973 = vcvt.s32.f32 %v941
        %v974 = vcvt.s32.f32 %v942
        %v975 = vcvt.s32.f32 %v943
        %v976 = vcvt.s32.f32 %v944
        %v977 = vcvt.s32.f32 %v945
        %v978 = vcvt.s32.f32 %v946
        %v979 = vcvt.s32.f32 %v947
        %v980 = vcvt.s32.f32 %v948
        %v981 = vcvt.s32.f32 %v949
        %v982 = vcvt.s32.f32 %v950
        %v983 = vcvt.s32.f32 %v951
        %v984 = vcvt.s32.f32 %v952
        %v985 = vcvt.s32.f32 %v953
        %v986 = vcvt.s32.f32 %v954
        %v987 = vcvt.s32.f32 %v955
        %v988 = vcvt.s32.f32 %v956
        %v989 = vcvt.s32.f32 %v957
        %v990 = vcvt.s32.f32 %v958
        %v991 = vcvt.s32.f32 %v959
        %v992 = vcvt.s32.f32 %v960
        %v993 = vcvt.s32.f32 %v961
        %v994 = vcvt.s32.f32 %v962
        %v995 = vcvt.s32.f32 %v963
        %v996 = vcvt.s32.f32 %v964
        %v997 = vcvt.s32.f32 %v965
        %v998 = vcvt.s32.f32 %v966
        %v999 = vcvt.s32.f32 %v967
        %v1000 = vcvt.s32.f32 %v968
        %v1001 = vpack.c.bf16 %v970, %v969
        %v1002 = vpack.c.bf16 %v972, %v971
        %v1003 = vpack.c.bf16 %v974, %v973
        %v1004 = vpack.c.bf16 %v976, %v975
        %v1005 = vpack.c.bf16 %v978, %v977
        %v1006 = vpack.c.bf16 %v980, %v979
        %v1007 = vpack.c.bf16 %v982, %v981
        %v1008 = vpack.c.bf16 %v984, %v983
        %v1009 = vpack.c.bf16 %v986, %v985
        %v1010 = vpack.c.bf16 %v988, %v987
        %v1011 = vpack.c.bf16 %v990, %v989
        %v1012 = vpack.c.bf16 %v992, %v991
        %v1013 = vpack.c.bf16 %v994, %v993
        %v1014 = vpack.c.bf16 %v996, %v995
        %v1015 = vpack.c.bf16 %v998, %v997
        %v1016 = vpack.c.bf16 %v1000, %v999
        %v1017 = vld [vmem:[%s728] sm:$0x1]
        %v1018 = vld [vmem:[%s731] sm:$0x1]
        %1019 = vadd.xlane.f32.xlu0 %v794
        %v1020 = vpop.xlane.xlu0 %1019
        %1021 = vadd.xlane.f32.xlu0 %v795
        %v1022 = vpop.xlane.xlu0 %1021
        %1023 = vadd.xlane.f32.xlu0 %v796
        %v1024 = vpop.xlane.xlu0 %1023
        %1025 = vadd.xlane.f32.xlu0 %v797
        %v1026 = vpop.xlane.xlu0 %1025
        %1027 = vadd.xlane.f32.xlu0 %v798
        %v1028 = vpop.xlane.xlu0 %1027
        %1029 = vadd.xlane.f32.xlu0 %v799
        %v1030 = vpop.xlane.xlu0 %1029
        %1031 = vadd.xlane.f32.xlu0 %v800
        %v1032 = vpop.xlane.xlu0 %1031
        %1033 = vadd.xlane.f32.xlu0 %v801
        %v1034 = vpop.xlane.xlu0 %1033
        %v1035 = vrcp.pop 128.0
        %v1036 = vmul.f32 %v1020, %v1035
        %v1037 = vmul.f32 %v1022, %v1035
        %v1038 = vmul.f32 %v1024, %v1035
        %v1039 = vmul.f32 %v1026, %v1035
        %v1040 = vmul.f32 %v1028, %v1035
        %v1041 = vmul.f32 %v1030, %v1035
        %v1042 = vmul.f32 %v1032, %v1035
        %v1043 = vmul.f32 %v1034, %v1035
        %v1044 = vmul.f32 %v794, %v794
        %v1045 = vmul.f32 %v795, %v795
        %v1046 = vmul.f32 %v796, %v796
        %v1047 = vmul.f32 %v797, %v797
        %v1048 = vmul.f32 %v798, %v798
        %v1049 = vmul.f32 %v799, %v799
        %v1050 = vmul.f32 %v800, %v800
        %v1051 = vmul.f32 %v801, %v801
        %1052 = vadd.xlane.f32.xlu0 %v1044
        %v1053 = vpop.xlane.xlu0 %1052
        %1054 = vadd.xlane.f32.xlu0 %v1045
        %v1055 = vpop.xlane.xlu0 %1054
        %1056 = vadd.xlane.f32.xlu0 %v1046
        %v1057 = vpop.xlane.xlu0 %1056
        %1058 = vadd.xlane.f32.xlu0 %v1047
        %v1059 = vpop.xlane.xlu0 %1058
        %1060 = vadd.xlane.f32.xlu0 %v1048
        %v1061 = vpop.xlane.xlu0 %1060
        %1062 = vadd.xlane.f32.xlu0 %v1049
        %v1063 = vpop.xlane.xlu0 %1062
        %1064 = vadd.xlane.f32.xlu0 %v1050
        %v1065 = vpop.xlane.xlu0 %1064
        %1066 = vadd.xlane.f32.xlu0 %v1051
        %v1067 = vpop.xlane.xlu0 %1066
        %v1068 = vmul.f32 %v1053, %v1035
        %v1069 = vmul.f32 %v1055, %v1035
        %v1070 = vmul.f32 %v1057, %v1035
        %v1071 = vmul.f32 %v1059, %v1035
        %v1072 = vmul.f32 %v1061, %v1035
        %v1073 = vmul.f32 %v1063, %v1035
        %v1074 = vmul.f32 %v1065, %v1035
        %v1075 = vmul.f32 %v1067, %v1035
        %v1076 = vsub.f32 %v794, %v1036
        %v1077 = vsub.f32 %v795, %v1037
        %v1078 = vsub.f32 %v796, %v1038
        %v1079 = vsub.f32 %v797, %v1039
        %v1080 = vsub.f32 %v798, %v1040
        %v1081 = vsub.f32 %v799, %v1041
        %v1082 = vsub.f32 %v800, %v1042
        %v1083 = vsub.f32 %v801, %v1043
        %v1084 = vmul.f32 %v1036, %v1036
        %v1085 = vmul.f32 %v1037, %v1037
        %v1086 = vmul.f32 %v1038, %v1038
        %v1087 = vmul.f32 %v1039, %v1039
        %v1088 = vmul.f32 %v1040, %v1040
        %v1089 = vmul.f32 %v1041, %v1041
        %v1090 = vmul.f32 %v1042, %v1042
        %v1091 = vmul.f32 %v1043, %v1043
        %v1092 = vsub.f32 %v1068, %v1084
        %v1093 = vsub.f32 %v1069, %v1085
        %v1094 = vsub.f32 %v1070, %v1086
        %v1095 = vsub.f32 %v1071, %v1087
        %v1096 = vsub.f32 %v1072, %v1088
        %v1097 = vsub.f32 %v1073, %v1089
        %v1098 = vsub.f32 %v1074, %v1090
        %v1099 = vsub.f32 %v1075, %v1091
        %v1100 = vadd.f32 %v1092, 1e-05
        %v1101 = vadd.f32 %v1093, 1e-05
        %v1102 = vadd.f32 %v1094, 1e-05
        %v1103 = vadd.f32 %v1095, 1e-05
        %v1104 = vadd.f32 %v1096, 1e-05
        %v1105 = vadd.f32 %v1097, 1e-05
        %v1106 = vadd.f32 %v1098, 1e-05
        %v1107 = vadd.f32 %v1099, 1e-05
        %v1108 = vrsqrt.pop %v1100
        %v1109 = vrsqrt.pop %v1101
        %v1110 = vrsqrt.pop %v1102
        %v1111 = vrsqrt.pop %v1103
        %v1112 = vrsqrt.pop %v1104
        %v1113 = vrsqrt.pop %v1105
        %v1114 = vrsqrt.pop %v1106
        %v1115 = vrsqrt.pop %v1107
        %v1116 = vmul.f32 %v1076, %v1108
        %v1117 = vmul.f32 %v1077, %v1109
        %v1118 = vmul.f32 %v1078, %v1110
        %v1119 = vmul.f32 %v1079, %v1111
        %v1120 = vmul.f32 %v1080, %v1112
        %v1121 = vmul.f32 %v1081, %v1113
        %v1122 = vmul.f32 %v1082, %v1114
        %v1123 = vmul.f32 %v1083, %v1115
        %v1125 = vlaneseq
        %v1126 = vshrl.u32 %v1125, 7
        %v1127 = vsub.s32 0, %v1126
        %v1128 = vrot.slane %v1017, %v1127
        %v1130 = vmul.f32 %v1116, %v1128
        %v1131 = vmul.f32 %v1117, %v1128
        %v1132 = vmul.f32 %v1118, %v1128
        %v1133 = vmul.f32 %v1119, %v1128
        %v1134 = vmul.f32 %v1120, %v1128
        %v1135 = vmul.f32 %v1121, %v1128
        %v1136 = vmul.f32 %v1122, %v1128
        %v1137 = vmul.f32 %v1123, %v1128
        %v1139 = vlaneseq
        %v1140 = vshrl.u32 %v1139, 7
        %v1141 = vsub.s32 0, %v1140
        %v1142 = vrot.slane %v1018, %v1141
        %v1144 = vadd.f32 %v1130, %v1142
        %v1145 = vadd.f32 %v1131, %v1142
        %v1146 = vadd.f32 %v1132, %v1142
        %v1147 = vadd.f32 %v1133, %v1142
        %v1148 = vadd.f32 %v1134, %v1142
        %v1149 = vadd.f32 %v1135, %v1142
        %v1150 = vadd.f32 %v1136, %v1142
        %v1151 = vadd.f32 %v1137, %v1142
        %v1152 = vpack.c.bf16 %v1145, %v1144
        %v1153 = vpack.c.bf16 %v1147, %v1146
        %v1154 = vpack.c.bf16 %v1149, %v1148
        %v1155 = vpack.c.bf16 %v1151, %v1150
        %v1156 = vld [vmem:[%s736] sm:$0xff]
        %v1157 = vld [vmem:[%s736 + $0x8] sm:$0xf]
        %v1158 = vld [vmem:[%s736 + $0xc] sm:$0xff]
        %v1159 = vld [vmem:[%s736 + $0x14] sm:$0xf]
        %v1160 = vld [vmem:[%s736 + $0x18] sm:$0xff]
        %v1161 = vld [vmem:[%s736 + $0x20] sm:$0xf]
        %v1162 = vld [vmem:[%s736 + $0x24] sm:$0xff]
        %v1163 = vld [vmem:[%s736 + $0x2c] sm:$0xf]
        %v1164 = vld [vmem:[%s736 + $0x30] sm:$0xff]
        %v1165 = vld [vmem:[%s736 + $0x38] sm:$0xf]
        %v1166 = vld [vmem:[%s736 + $0x3c] sm:$0xff]
        %v1167 = vld [vmem:[%s736 + $0x44] sm:$0xf]
        %v1168 = vld [vmem:[%s736 + $0x48] sm:$0xff]
        %v1169 = vld [vmem:[%s736 + $0x50] sm:$0xf]
        %v1170 = vld [vmem:[%s736 + $0x54] sm:$0xff]
        %v1171 = vld [vmem:[%s736 + $0x5c] sm:$0xf]
        %v1172 = vld [vmem:[%s736 + $0x60] sm:$0xff]
        %v1173 = vld [vmem:[%s736 + $0x68] sm:$0xf]
        %v1174 = vld [vmem:[%s736 + $0x6c] sm:$0xff]
        %v1175 = vld [vmem:[%s736 + $0x74] sm:$0xf]
        %v1176 = vld [vmem:[%s736 + $0x78] sm:$0xff]
        %v1177 = vld [vmem:[%s736 + $0x80] sm:$0xf]
        %v1178 = vld [vmem:[%s736 + $0x84] sm:$0xff]
        %v1179 = vld [vmem:[%s736 + $0x8c] sm:$0xf]
        %v1180 = vld [vmem:[%s736 + $0x90] sm:$0xff]
        %v1181 = vld [vmem:[%s736 + $0x98] sm:$0xf]
        %v1182 = vld [vmem:[%s736 + $0x9c] sm:$0xff]
        %v1183 = vld [vmem:[%s736 + $0xa4] sm:$0xf]
        %v1184 = vld [vmem:[%s736 + $0xa8] sm:$0xff]
        %v1185 = vld [vmem:[%s736 + $0xb0] sm:$0xf]
        %v1186 = vld [vmem:[%s736 + $0xb4] sm:$0xff]
        %v1187 = vld [vmem:[%s736 + $0xbc] sm:$0xf]
        %v1188 = vld [vmem:[%s740] sm:$0x7]
        %v1190 = vlaneseq
        %v1191 = vshrl.u32 %v1190, 7
        %v1192 = vsub.s32 0, %v1191
        %v1193 = vrot.slane %v1188, %v1192
        %v1194 = vlaneseq
        %v1195 = vshrl.u32 %v1194, 7
        %v1196 = vsub.s32 1, %v1195
        %v1197 = vrot.slane %v1188, %v1196
        %v1198 = vlaneseq
        %v1199 = vshrl.u32 %v1198, 7
        %v1200 = vsub.s32 2, %v1199
        %v1201 = vrot.slane %v1188, %v1200
        %v1237 = vunpack.c.l.b16 %v1156
        %v1238 = vunpack.c.h.b16 %v1156
        %v1239 = vunpack.c.l.b16 %v1157
        %v1240 = vunpack.c.l.b16 %v1158
        %v1241 = vunpack.c.h.b16 %v1158
        %v1242 = vunpack.c.l.b16 %v1159
        %v1243 = vunpack.c.l.b16 %v1160
        %v1244 = vunpack.c.h.b16 %v1160
        %v1245 = vunpack.c.l.b16 %v1161
        %v1246 = vunpack.c.l.b16 %v1162
        %v1247 = vunpack.c.h.b16 %v1162
        %v1248 = vunpack.c.l.b16 %v1163
        %v1249 = vunpack.c.l.b16 %v1164
        %v1250 = vunpack.c.h.b16 %v1164
        %v1251 = vunpack.c.l.b16 %v1165
        %v1252 = vunpack.c.l.b16 %v1166
        %v1253 = vunpack.c.h.b16 %v1166
        %v1254 = vunpack.c.l.b16 %v1167
        %v1255 = vunpack.c.l.b16 %v1168
        %v1256 = vunpack.c.h.b16 %v1168
        %v1257 = vunpack.c.l.b16 %v1169
        %v1258 = vunpack.c.l.b16 %v1170
        %v1259 = vunpack.c.h.b16 %v1170
        %v1260 = vunpack.c.l.b16 %v1171
        %v1261 = vunpack.c.l.b16 %v1172
        %v1262 = vunpack.c.h.b16 %v1172
        %v1263 = vunpack.c.l.b16 %v1173
        %v1264 = vunpack.c.l.b16 %v1174
        %v1265 = vunpack.c.h.b16 %v1174
        %v1266 = vunpack.c.l.b16 %v1175
        %v1267 = vunpack.c.l.b16 %v1176
        %v1268 = vunpack.c.h.b16 %v1176
        %v1269 = vunpack.c.l.b16 %v1177
        %v1270 = vunpack.c.l.b16 %v1178
        %v1271 = vunpack.c.h.b16 %v1178
        %v1272 = vunpack.c.l.b16 %v1179
        %v1273 = vunpack.c.l.b16 %v1180
        %v1274 = vunpack.c.h.b16 %v1180
        %v1275 = vunpack.c.l.b16 %v1181
        %v1276 = vunpack.c.l.b16 %v1182
        %v1277 = vunpack.c.h.b16 %v1182
        %v1278 = vunpack.c.l.b16 %v1183
        %v1279 = vunpack.c.l.b16 %v1184
        %v1280 = vunpack.c.h.b16 %v1184
        %v1281 = vunpack.c.l.b16 %v1185
        %v1282 = vunpack.c.l.b16 %v1186
        %v1283 = vunpack.c.h.b16 %v1186
        %v1284 = vunpack.c.l.b16 %v1187
        %v1285 = vpack.c.b16 %v1240, %v1237
        %v1286 = vpack.c.b16 %v1241, %v1238
        %v1287 = vpack.c.b16 %v1242, %v1239
        %v1288 = vpack.c.b16 %v1246, %v1243
        %v1289 = vpack.c.b16 %v1247, %v1244
        %v1290 = vpack.c.b16 %v1248, %v1245
        %v1291 = vpack.c.b16 %v1252, %v1249
        %v1292 = vpack.c.b16 %v1253, %v1250
        %v1293 = vpack.c.b16 %v1254, %v1251
        %v1294 = vpack.c.b16 %v1258, %v1255
        %v1295 = vpack.c.b16 %v1259, %v1256
        %v1296 = vpack.c.b16 %v1260, %v1257
        %v1297 = vpack.c.b16 %v1264, %v1261
        %v1298 = vpack.c.b16 %v1265, %v1262
        %v1299 = vpack.c.b16 %v1266, %v1263
        %v1300 = vpack.c.b16 %v1270, %v1267
        %v1301 = vpack.c.b16 %v1271, %v1268
        %v1302 = vpack.c.b16 %v1272, %v1269
        %v1303 = vpack.c.b16 %v1276, %v1273
        %v1304 = vpack.c.b16 %v1277, %v1274
        %v1305 = vpack.c.b16 %v1278, %v1275
        %v1306 = vpack.c.b16 %v1282, %v1279
        %v1307 = vpack.c.b16 %v1283, %v1280
        %v1308 = vpack.c.b16 %v1284, %v1281
        %1333 = vmatprep.subr.bf16.mxu0 %v1286
        %1334 = vmatpush1.bf16.msra.mxu0 %v1285
        %1335 = vmatprep.subr.bf16.mxu0 %v1289
        %1336 = vmatpush1.bf16.msra.mxu0 %v1288
        %1337 = vmatprep.subr.bf16.mxu0 %v1292
        %1338 = vmatpush1.bf16.msra.mxu0 %v1291
        %1339 = vmatprep.subr.bf16.mxu0 %v1295
        %1340 = vmatpush1.bf16.msra.mxu0 %v1294
        %1341 = vmatprep.subr.bf16.mxu0 %v1298
        %1342 = vmatpush1.bf16.msra.mxu0 %v1297
        %1343 = vmatprep.subr.bf16.mxu0 %v1301
        %1344 = vmatpush1.bf16.msra.mxu0 %v1300
        %1345 = vmatprep.subr.bf16.mxu0 %v1304
        %1346 = vmatpush1.bf16.msra.mxu0 %v1303
        %1347 = vmatprep.subr.bf16.mxu0 %v1307
        %1348 = vmatpush1.bf16.msra.mxu0 %v1306
        %1349 = vmatprep.subr.bf16.mxu0 0
        %1350 = vmatpush1.bf16.msra.mxu0 0
        %1351 = vmatprep.subr.bf16.mxu0 0
        %1352 = vmatpush1.bf16.msra.mxu0 0
        %1353 = vmatprep.subr.bf16.mxu0 0
        %1354 = vmatpush1.bf16.msra.mxu0 0
        %1355 = vmatprep.subr.bf16.mxu0 0
        %1356 = vmatpush1.bf16.msra.mxu0 0
        %1357 = vmatprep.subr.bf16.mxu0 0
        %1358 = vmatpush1.bf16.msra.mxu0 0
        %1359 = vmatprep.subr.bf16.mxu0 0
        %1360 = vmatpush1.bf16.msra.mxu0 0
        %1361 = vmatprep.subr.bf16.mxu0 0
        %1362 = vmatpush1.bf16.msra.mxu0 0
        %1363 = vmatprep.subr.bf16.mxu0 0
        %1364 = vmatpush1.bf16.msra.mxu0 0
        %1365 = vmatprep.mubr.bf16.mxu0 0
        %1366 = vmatmul.mubr.bf16.gmra.mrb[0].mxu0 %v1152
        %v1367 = vpop.f32.mrb[0].mxu0
        %v1368 = vadd.f32 %v1193, %v1367
        %v1369 = vpop.f32.mrb[0].mxu0
        %v1370 = vadd.f32 %v1197, %v1369
        %v1371 = vpop.f32.mrb[0].mxu0
        %v1372 = vadd.f32 %v1193, %v1371
        %v1373 = vpop.f32.mrb[0].mxu0
        %v1374 = vadd.f32 %v1197, %v1373
        %1375 = vmatprep.mubr.bf16.mxu0 0
        %1376 = vmatmul.mubr.bf16.gmra.mrb[0].mxu0 %v1153
        %v1377 = vpop.f32.mrb[0].mxu0
        %v1378 = vadd.f32 %v1193, %v1377
        %v1379 = vpop.f32.mrb[0].mxu0
        %v1380 = vadd.f32 %v1197, %v1379
        %v1381 = vpop.f32.mrb[0].mxu0
        %v1382 = vadd.f32 %v1193, %v1381
        %v1383 = vpop.f32.mrb[0].mxu0
        %v1384 = vadd.f32 %v1197, %v1383
        %1385 = vmatprep.mubr.bf16.mxu0 0
        %1386 = vmatmul.mubr.bf16.gmra.mrb[0].mxu0 %v1154
        %v1387 = vpop.f32.mrb[0].mxu0
        %v1388 = vadd.f32 %v1193, %v1387
        %v1389 = vpop.f32.mrb[0].mxu0
        %v1390 = vadd.f32 %v1197, %v1389
        %v1391 = vpop.f32.mrb[0].mxu0
        %v1392 = vadd.f32 %v1193, %v1391
        %v1393 = vpop.f32.mrb[0].mxu0
        %v1394 = vadd.f32 %v1197, %v1393
        %1395 = vmatprep.mubr.bf16.mxu0 0
        %1396 = vmatmul.mubr.bf16.gmra.mrb[0].mxu0 %v1155
        %v1397 = vpop.f32.mrb[0].mxu0
        %v1398 = vadd.f32 %v1193, %v1397
        %v1399 = vpop.f32.mrb[0].mxu0
        %v1400 = vadd.f32 %v1197, %v1399
        %v1401 = vpop.f32.mrb[0].mxu0
        %v1402 = vadd.f32 %v1193, %v1401
        %v1403 = vpop.f32.mrb[0].mxu0
        %v1404 = vadd.f32 %v1197, %v1403
        %1405 = vdwg.mxu0
        %1406 = vmatprep.subr.bf16.mxu0 0
        %1407 = vmatpush1.bf16.msra.mxu0 %v1287
        %1408 = vmatprep.subr.bf16.mxu0 0
        %1409 = vmatpush1.bf16.msra.mxu0 %v1290
        %1410 = vmatprep.subr.bf16.mxu0 0
        %1411 = vmatpush1.bf16.msra.mxu0 %v1293
        %1412 = vmatprep.subr.bf16.mxu0 0
        %1413 = vmatpush1.bf16.msra.mxu0 %v1296
        %1414 = vmatprep.subr.bf16.mxu0 0
        %1415 = vmatpush1.bf16.msra.mxu0 %v1299
        %1416 = vmatprep.subr.bf16.mxu0 0
        %1417 = vmatpush1.bf16.msra.mxu0 %v1302
        %1418 = vmatprep.subr.bf16.mxu0 0
        %1419 = vmatpush1.bf16.msra.mxu0 %v1305
        %1420 = vmatprep.subr.bf16.mxu0 0
        %1421 = vmatpush1.bf16.msra.mxu0 %v1308
        %1422 = vmatprep.subr.bf16.mxu0 0
        %1423 = vmatpush1.bf16.msra.mxu0 0
        %1424 = vmatprep.subr.bf16.mxu0 0
        %1425 = vmatpush1.bf16.msra.mxu0 0
        %1426 = vmatprep.subr.bf16.mxu0 0
        %1427 = vmatpush1.bf16.msra.mxu0 0
        %1428 = vmatprep.subr.bf16.mxu0 0
        %1429 = vmatpush1.bf16.msra.mxu0 0
        %1430 = vmatprep.subr.bf16.mxu0 0
        %1431 = vmatpush1.bf16.msra.mxu0 0
        %1432 = vmatprep.subr.bf16.mxu0 0
        %1433 = vmatpush1.bf16.msra.mxu0 0
        %1434 = vmatprep.subr.bf16.mxu0 0
        %1435 = vmatpush1.bf16.msra.mxu0 0
        %1436 = vmatprep.subr.bf16.mxu0 0
        %1437 = vmatpush1.bf16.msra.mxu0 0
        %1438 = vmatprep.mubr.bf16.mxu0 0
        %1439 = vmatmul.mubr.bf16.gmra.mrb[0].mxu0 %v1152
        %v1440 = vpop.f32.mrb[0].mxu0
        %v1441 = vadd.f32 %v1201, %v1440
        %v1442 = vpop.f32.mrb[0].mxu0
        %v1443 = vpop.f32.mrb[0].mxu0
        %v1444 = vadd.f32 %v1201, %v1443
        %v1445 = vpop.f32.mrb[0].mxu0
        %1446 = vmatprep.mubr.bf16.mxu0 0
        %1447 = vmatmul.mubr.bf16.gmra.mrb[0].mxu0 %v1153
        %v1448 = vpop.f32.mrb[0].mxu0
        %v1449 = vadd.f32 %v1201, %v1448
        %v1450 = vpop.f32.mrb[0].mxu0
        %v1451 = vpop.f32.mrb[0].mxu0
        %v1452 = vadd.f32 %v1201, %v1451
        %v1453 = vpop.f32.mrb[0].mxu0
        %1454 = vmatprep.mubr.bf16.mxu0 0
        %1455 = vmatmul.mubr.bf16.gmra.mrb[0].mxu0 %v1154
        %v1456 = vpop.f32.mrb[0].mxu0
        %v1457 = vadd.f32 %v1201, %v1456
        %v1458 = vpop.f32.mrb[0].mxu0
        %v1459 = vpop.f32.mrb[0].mxu0
        %v1460 = vadd.f32 %v1201, %v1459
        %v1461 = vpop.f32.mrb[0].mxu0
        %1462 = vmatprep.mubr.bf16.mxu0 0
        %1463 = vmatmul.mubr.bf16.gmra.mrb[0].mxu0 %v1155
        %v1464 = vpop.f32.mrb[0].mxu0
        %v1465 = vadd.f32 %v1201, %v1464
        %v1466 = vpop.f32.mrb[0].mxu0
        %v1467 = vpop.f32.mrb[0].mxu0
        %v1468 = vadd.f32 %v1201, %v1467
        %v1469 = vpop.f32.mrb[0].mxu0
        %1470 = vdwg.mxu0
        %v1471 = vpack.c.bf16 %v1372, %v1368
        %v1472 = vpack.c.bf16 %v1382, %v1378
        %v1473 = vpack.c.bf16 %v1392, %v1388
        %v1474 = vpack.c.bf16 %v1402, %v1398
        %v1475 = vpack.c.bf16 %v1374, %v1370
        %v1476 = vpack.c.bf16 %v1384, %v1380
        %v1477 = vpack.c.bf16 %v1394, %v1390
        %v1478 = vpack.c.bf16 %v1404, %v1400
        %v1479 = vpack.c.bf16 %v1444, %v1441
        %v1480 = vpack.c.bf16 %v1452, %v1449
        %v1481 = vpack.c.bf16 %v1460, %v1457
        %v1482 = vpack.c.bf16 %v1468, %v1465
        %v1483 = vmul.bf16 %v1475, %v1001
        %v1484 = vmul.bf16 %v1476, %v1002
        %v1485 = vmul.bf16 %v1477, %v1003
        %v1486 = vmul.bf16 %v1478, %v1004
        %v1487 = vmul.bf16 %v1475, %v1005
        %v1488 = vmul.bf16 %v1476, %v1006
        %v1489 = vmul.bf16 %v1477, %v1007
        %v1490 = vmul.bf16 %v1478, %v1008
        %v1491 = vmul.bf16 %v1475, %v1009
        %v1492 = vmul.bf16 %v1476, %v1010
        %v1493 = vmul.bf16 %v1477, %v1011
        %v1494 = vmul.bf16 %v1478, %v1012
        %v1495 = vmul.bf16 %v1475, %v1013
        %v1496 = vmul.bf16 %v1476, %v1014
        %v1497 = vmul.bf16 %v1477, %v1015
        %v1498 = vmul.bf16 %v1478, %v1016
        %v1499 = vmul.bf16 %v1479, %v1001
        %v1500 = vmul.bf16 %v1480, %v1002
        %v1501 = vmul.bf16 %v1481, %v1003
        %v1502 = vmul.bf16 %v1482, %v1004
        %v1503 = vmul.bf16 %v1479, %v1005
        %v1504 = vmul.bf16 %v1480, %v1006
        %v1505 = vmul.bf16 %v1481, %v1007
        %v1506 = vmul.bf16 %v1482, %v1008
        %v1507 = vmul.bf16 %v1479, %v1009
        %v1508 = vmul.bf16 %v1480, %v1010
        %v1509 = vmul.bf16 %v1481, %v1011
        %v1510 = vmul.bf16 %v1482, %v1012
        %v1511 = vmul.bf16 %v1479, %v1013
        %v1512 = vmul.bf16 %v1480, %v1014
        %v1513 = vmul.bf16 %v1481, %v1015
        %v1514 = vmul.bf16 %v1482, %v1016
        %1515 = vmatprep.subr.bf16.mxu0 0
        %1516 = vmatpush1.bf16.xpose.msra.mxu0 %v1483
        %1517 = vmatprep.subr.bf16.mxu0 0
        %1518 = vmatpush1.bf16.xpose.msra.mxu0 %v1484
        %1519 = vmatprep.subr.bf16.mxu0 0
        %1520 = vmatpush1.bf16.xpose.msra.mxu0 %v1485
        %1521 = vmatprep.subr.bf16.mxu0 0
        %1522 = vmatpush1.bf16.xpose.msra.mxu0 %v1486
        %1523 = vmatprep.subr.bf16.mxu0 0
        %1524 = vmatpush1.bf16.xpose.msra.mxu0 %v1487
        %1525 = vmatprep.subr.bf16.mxu0 0
        %1526 = vmatpush1.bf16.xpose.msra.mxu0 %v1488
        %1527 = vmatprep.subr.bf16.mxu0 0
        %1528 = vmatpush1.bf16.xpose.msra.mxu0 %v1489
        %1529 = vmatprep.subr.bf16.mxu0 0
        %1530 = vmatpush1.bf16.xpose.msra.mxu0 %v1490
        %1531 = vmatprep.subr.bf16.mxu0 0
        %1532 = vmatpush1.bf16.xpose.msra.mxu0 %v1491
        %1533 = vmatprep.subr.bf16.mxu0 0
        %1534 = vmatpush1.bf16.xpose.msra.mxu0 %v1492
        %1535 = vmatprep.subr.bf16.mxu0 0
        %1536 = vmatpush1.bf16.xpose.msra.mxu0 %v1493
        %1537 = vmatprep.subr.bf16.mxu0 0
        %1538 = vmatpush1.bf16.xpose.msra.mxu0 %v1494
        %1539 = vmatprep.subr.bf16.mxu0 0
        %1540 = vmatpush1.bf16.xpose.msra.mxu0 %v1495
        %1541 = vmatprep.subr.bf16.mxu0 0
        %1542 = vmatpush1.bf16.xpose.msra.mxu0 %v1496
        %1543 = vmatprep.subr.bf16.mxu0 0
        %1544 = vmatpush1.bf16.xpose.msra.mxu0 %v1497
        %1545 = vmatprep.subr.bf16.mxu0 0
        %1546 = vmatpush1.bf16.xpose.msra.mxu0 %v1498
        %1547 = vmatprep.mubr.bf16.mxu0 0
        %1548 = vmatmul.mubr.bf16.gmra.mrb[0].mxu0 %v1471
        %v1549 = vpop.f32.mrb[0].mxu0
        %v1550 = vadd.f32 %v832, %v1549
        %v1551 = vpop.f32.mrb[0].mxu0
        %v1552 = vadd.f32 %v833, %v1551
        %v1553 = vpop.f32.mrb[0].mxu0
        %v1554 = vadd.f32 %v834, %v1553
        %v1555 = vpop.f32.mrb[0].mxu0
        %v1556 = vadd.f32 %v835, %v1555
        %1557 = vmatprep.mubr.bf16.mxu0 0
        %1558 = vmatmul.mubr.bf16.gmra.mrb[0].mxu0 %v1472
        %v1559 = vpop.f32.mrb[0].mxu0
        %v1560 = vadd.f32 %v836, %v1559
        %v1561 = vpop.f32.mrb[0].mxu0
        %v1562 = vadd.f32 %v837, %v1561
        %v1563 = vpop.f32.mrb[0].mxu0
        %v1564 = vadd.f32 %v838, %v1563
        %v1565 = vpop.f32.mrb[0].mxu0
        %v1566 = vadd.f32 %v839, %v1565
        %1567 = vmatprep.mubr.bf16.mxu0 0
        %1568 = vmatmul.mubr.bf16.gmra.mrb[0].mxu0 %v1473
        %v1569 = vpop.f32.mrb[0].mxu0
        %v1570 = vadd.f32 %v840, %v1569
        %v1571 = vpop.f32.mrb[0].mxu0
        %v1572 = vadd.f32 %v841, %v1571
        %v1573 = vpop.f32.mrb[0].mxu0
        %v1574 = vadd.f32 %v842, %v1573
        %v1575 = vpop.f32.mrb[0].mxu0
        %v1576 = vadd.f32 %v843, %v1575
        %1577 = vmatprep.mubr.bf16.mxu0 0
        %1578 = vmatmul.mubr.bf16.gmra.mrb[0].mxu0 %v1474
        %v1579 = vpop.f32.mrb[0].mxu0
        %v1580 = vadd.f32 %v844, %v1579
        %v1581 = vpop.f32.mrb[0].mxu0
        %v1582 = vadd.f32 %v845, %v1581
        %v1583 = vpop.f32.mrb[0].mxu0
        %v1584 = vadd.f32 %v846, %v1583
        %v1585 = vpop.f32.mrb[0].mxu0
        %v1586 = vadd.f32 %v847, %v1585
        %1587 = vdwg.mxu0
        %v1588 = vmax.f32 %v1550, %v1552
        %1589 = vmax.xlane.f32.xlu0 %v1588
        %v1590 = vpop.xlane.xlu0 %1589
        %v1591 = vmax.f32 %v1554, %v1556
        %1592 = vmax.xlane.f32.xlu0 %v1591
        %v1593 = vpop.xlane.xlu0 %1592
        %v1594 = vmax.f32 %v1560, %v1562
        %1595 = vmax.xlane.f32.xlu0 %v1594
        %v1596 = vpop.xlane.xlu0 %1595
        %v1597 = vmax.f32 %v1564, %v1566
        %1598 = vmax.xlane.f32.xlu0 %v1597
        %v1599 = vpop.xlane.xlu0 %1598
        %v1600 = vmax.f32 %v1570, %v1572
        %1601 = vmax.xlane.f32.xlu0 %v1600
        %v1602 = vpop.xlane.xlu0 %1601
        %v1603 = vmax.f32 %v1574, %v1576
        %1604 = vmax.xlane.f32.xlu0 %v1603
        %v1605 = vpop.xlane.xlu0 %1604
        %v1606 = vmax.f32 %v1580, %v1582
        %1607 = vmax.xlane.f32.xlu0 %v1606
        %v1608 = vpop.xlane.xlu0 %1607
        %v1609 = vmax.f32 %v1584, %v1586
        %1610 = vmax.xlane.f32.xlu0 %v1609
        %v1611 = vpop.xlane.xlu0 %1610
        %v1612 = vsub.f32 %v1550, %v1590
        %v1613 = vsub.f32 %v1552, %v1590
        %v1614 = vsub.f32 %v1554, %v1593
        %v1615 = vsub.f32 %v1556, %v1593
        %v1616 = vsub.f32 %v1560, %v1596
        %v1617 = vsub.f32 %v1562, %v1596
        %v1618 = vsub.f32 %v1564, %v1599
        %v1619 = vsub.f32 %v1566, %v1599
        %v1620 = vsub.f32 %v1570, %v1602
        %v1621 = vsub.f32 %v1572, %v1602
        %v1622 = vsub.f32 %v1574, %v1605
        %v1623 = vsub.f32 %v1576, %v1605
        %v1624 = vsub.f32 %v1580, %v1608
        %v1625 = vsub.f32 %v1582, %v1608
        %v1626 = vsub.f32 %v1584, %v1611
        %v1627 = vsub.f32 %v1586, %v1611
        %v1628 = vmul.f32 %v1612, 1.442695
        %v1629 = vpow.pop %v1628
        %v1630 = vmul.f32 %v1613, 1.442695
        %v1631 = vpow.pop %v1630
        %v1632 = vmul.f32 %v1614, 1.442695
        %v1633 = vpow.pop %v1632
        %v1634 = vmul.f32 %v1615, 1.442695
        %v1635 = vpow.pop %v1634
        %v1636 = vmul.f32 %v1616, 1.442695
        %v1637 = vpow.pop %v1636
        %v1638 = vmul.f32 %v1617, 1.442695
        %v1639 = vpow.pop %v1638
        %v1640 = vmul.f32 %v1618, 1.442695
        %v1641 = vpow.pop %v1640
        %v1642 = vmul.f32 %v1619, 1.442695
        %v1643 = vpow.pop %v1642
        %v1644 = vmul.f32 %v1620, 1.442695
        %v1645 = vpow.pop %v1644
        %v1646 = vmul.f32 %v1621, 1.442695
        %v1647 = vpow.pop %v1646
        %v1648 = vmul.f32 %v1622, 1.442695
        %v1649 = vpow.pop %v1648
        %v1650 = vmul.f32 %v1623, 1.442695
        %v1651 = vpow.pop %v1650
        %v1652 = vmul.f32 %v1624, 1.442695
        %v1653 = vpow.pop %v1652
        %v1654 = vmul.f32 %v1625, 1.442695
        %v1655 = vpow.pop %v1654
        %v1656 = vmul.f32 %v1626, 1.442695
        %v1657 = vpow.pop %v1656
        %v1658 = vmul.f32 %v1627, 1.442695
        %v1659 = vpow.pop %v1658
        %v1660 = vpack.c.bf16 %v1633, %v1629
        %v1661 = vpack.c.bf16 %v1635, %v1631
        %v1662 = vpack.c.bf16 %v1641, %v1637
        %v1663 = vpack.c.bf16 %v1643, %v1639
        %v1664 = vpack.c.bf16 %v1649, %v1645
        %v1665 = vpack.c.bf16 %v1651, %v1647
        %v1666 = vpack.c.bf16 %v1657, %v1653
        %v1667 = vpack.c.bf16 %v1659, %v1655
        %1668 = vmatprep.subr.bf16.mxu0 %v1001
        %1669 = vmatpush1.bf16.msra.mxu0 %v1499
        %1670 = vmatprep.subr.bf16.mxu0 %v1002
        %1671 = vmatpush1.bf16.msra.mxu0 %v1500
        %1672 = vmatprep.subr.bf16.mxu0 %v1003
        %1673 = vmatpush1.bf16.msra.mxu0 %v1501
        %1674 = vmatprep.subr.bf16.mxu0 %v1004
        %1675 = vmatpush1.bf16.msra.mxu0 %v1502
        %1676 = vmatprep.subr.bf16.mxu0 %v1005
        %1677 = vmatpush1.bf16.msra.mxu0 %v1503
        %1678 = vmatprep.subr.bf16.mxu0 %v1006
        %1679 = vmatpush1.bf16.msra.mxu0 %v1504
        %1680 = vmatprep.subr.bf16.mxu0 %v1007
        %1681 = vmatpush1.bf16.msra.mxu0 %v1505
        %1682 = vmatprep.subr.bf16.mxu0 %v1008
        %1683 = vmatpush1.bf16.msra.mxu0 %v1506
        %1684 = vmatprep.subr.bf16.mxu0 %v1009
        %1685 = vmatpush1.bf16.msra.mxu0 %v1507
        %1686 = vmatprep.subr.bf16.mxu0 %v1010
        %1687 = vmatpush1.bf16.msra.mxu0 %v1508
        %1688 = vmatprep.subr.bf16.mxu0 %v1011
        %1689 = vmatpush1.bf16.msra.mxu0 %v1509
        %1690 = vmatprep.subr.bf16.mxu0 %v1012
        %1691 = vmatpush1.bf16.msra.mxu0 %v1510
        %1692 = vmatprep.subr.bf16.mxu0 %v1013
        %1693 = vmatpush1.bf16.msra.mxu0 %v1511
        %1694 = vmatprep.subr.bf16.mxu0 %v1014
        %1695 = vmatpush1.bf16.msra.mxu0 %v1512
        %1696 = vmatprep.subr.bf16.mxu0 %v1015
        %1697 = vmatpush1.bf16.msra.mxu0 %v1513
        %1698 = vmatprep.subr.bf16.mxu0 %v1016
        %1699 = vmatpush1.bf16.msra.mxu0 %v1514
        %1700 = vmatprep.mubr.bf16.mxu0 %v1661
        %1701 = vmatmul.mubr.bf16.gmra.mrb[0].mxu0 %v1660
        %v1702 = vpop.f32.mrb[0].mxu0
        %v1703 = vadd.f32 0.0, %v1702
        %v1704 = vpop.f32.mrb[0].mxu0
        %v1705 = vadd.f32 0.0, %v1704
        %v1706 = vpop.f32.mrb[0].mxu0
        %v1707 = vadd.f32 0.0, %v1706
        %v1708 = vpop.f32.mrb[0].mxu0
        %v1709 = vadd.f32 0.0, %v1708
        %1710 = vmatprep.mubr.bf16.mxu0 %v1663
        %1711 = vmatmul.mubr.bf16.gmra.mrb[0].mxu0 %v1662
        %v1712 = vpop.f32.mrb[0].mxu0
        %v1713 = vadd.f32 0.0, %v1712
        %v1714 = vpop.f32.mrb[0].mxu0
        %v1715 = vadd.f32 0.0, %v1714
        %v1716 = vpop.f32.mrb[0].mxu0
        %v1717 = vadd.f32 0.0, %v1716
        %v1718 = vpop.f32.mrb[0].mxu0
        %v1719 = vadd.f32 0.0, %v1718
        %1720 = vmatprep.mubr.bf16.mxu0 %v1665
        %1721 = vmatmul.mubr.bf16.gmra.mrb[0].mxu0 %v1664
        %v1722 = vpop.f32.mrb[0].mxu0
        %v1723 = vadd.f32 0.0, %v1722
        %v1724 = vpop.f32.mrb[0].mxu0
        %v1725 = vadd.f32 0.0, %v1724
        %v1726 = vpop.f32.mrb[0].mxu0
        %v1727 = vadd.f32 0.0, %v1726
        %v1728 = vpop.f32.mrb[0].mxu0
        %v1729 = vadd.f32 0.0, %v1728
        %1730 = vmatprep.mubr.bf16.mxu0 %v1667
        %1731 = vmatmul.mubr.bf16.gmra.mrb[0].mxu0 %v1666
        %v1732 = vpop.f32.mrb[0].mxu0
        %v1733 = vadd.f32 0.0, %v1732
        %v1734 = vpop.f32.mrb[0].mxu0
        %v1735 = vadd.f32 0.0, %v1734
        %v1736 = vpop.f32.mrb[0].mxu0
        %v1737 = vadd.f32 0.0, %v1736
        %v1738 = vpop.f32.mrb[0].mxu0
        %v1739 = vadd.f32 0.0, %v1738
        %1740 = vdwg.mxu0
        %v1741 = vrcp.pop %v1705
        %v1742 = vrcp.pop %v1709
        %v1743 = vrcp.pop %v1715
        %v1744 = vrcp.pop %v1719
        %v1745 = vrcp.pop %v1725
        %v1746 = vrcp.pop %v1729
        %v1747 = vrcp.pop %v1735
        %v1748 = vrcp.pop %v1739
        %v1749 = vmul.f32 %v1703, %v1741
        %v1750 = vmul.f32 %v1707, %v1742
        %v1751 = vmul.f32 %v1713, %v1743
        %v1752 = vmul.f32 %v1717, %v1744
        %v1753 = vmul.f32 %v1723, %v1745
        %v1754 = vmul.f32 %v1727, %v1746
        %v1755 = vmul.f32 %v1733, %v1747
        %v1756 = vmul.f32 %v1737, %v1748
        %v1757 = vpack.c.bf16 %v1750, %v1749
        %v1758 = vpack.c.bf16 %v1752, %v1751
        %v1759 = vpack.c.bf16 %v1754, %v1753
        %v1760 = vpack.c.bf16 %v1756, %v1755
        %v1761 = vld [vmem:[%s745] sm:$0xf]
        %v1762 = vld [vmem:[%s745 + $0x4] sm:$0xf]
        %v1763 = vld [vmem:[%s745 + $0x8] sm:$0xf]
        %v1764 = vld [vmem:[%s745 + $0xc] sm:$0xf]
        %v1765 = vld [vmem:[%s745 + $0x10] sm:$0xf]
        %v1766 = vld [vmem:[%s745 + $0x14] sm:$0xf]
        %v1767 = vld [vmem:[%s745 + $0x18] sm:$0xf]
        %v1768 = vld [vmem:[%s745 + $0x1c] sm:$0xf]
        %v1769 = vld [vmem:[%s745 + $0x20] sm:$0xf]
        %v1770 = vld [vmem:[%s745 + $0x24] sm:$0xf]
        %v1771 = vld [vmem:[%s745 + $0x28] sm:$0xf]
        %v1772 = vld [vmem:[%s745 + $0x2c] sm:$0xf]
        %v1773 = vld [vmem:[%s745 + $0x30] sm:$0xf]
        %v1774 = vld [vmem:[%s745 + $0x34] sm:$0xf]
        %v1775 = vld [vmem:[%s745 + $0x38] sm:$0xf]
        %v1776 = vld [vmem:[%s745 + $0x3c] sm:$0xf]
        %v1777 = vld [vmem:[%s748] sm:$0x1]
        %v1779 = vlaneseq
        %v1780 = vshrl.u32 %v1779, 7
        %v1781 = vsub.s32 0, %v1780
        %v1782 = vrot.slane %v1777, %v1781
        %v1800 = vunpack.c.l.b16 %v1761
        %v1801 = vunpack.c.l.b16 %v1762
        %v1802 = vunpack.c.l.b16 %v1763
        %v1803 = vunpack.c.l.b16 %v1764
        %v1804 = vunpack.c.l.b16 %v1765
        %v1805 = vunpack.c.l.b16 %v1766
        %v1806 = vunpack.c.l.b16 %v1767
        %v1807 = vunpack.c.l.b16 %v1768
        %v1808 = vunpack.c.l.b16 %v1769
        %v1809 = vunpack.c.l.b16 %v1770
        %v1810 = vunpack.c.l.b16 %v1771
        %v1811 = vunpack.c.l.b16 %v1772
        %v1812 = vunpack.c.l.b16 %v1773
        %v1813 = vunpack.c.l.b16 %v1774
        %v1814 = vunpack.c.l.b16 %v1775
        %v1815 = vunpack.c.l.b16 %v1776
        %v1816 = vpack.c.b16 %v1801, %v1800
        %v1817 = vpack.c.b16 %v1803, %v1802
        %v1818 = vpack.c.b16 %v1805, %v1804
        %v1819 = vpack.c.b16 %v1807, %v1806
        %v1820 = vpack.c.b16 %v1809, %v1808
        %v1821 = vpack.c.b16 %v1811, %v1810
        %v1822 = vpack.c.b16 %v1813, %v1812
        %v1823 = vpack.c.b16 %v1815, %v1814
        %1832 = vmatprep.subr.bf16.mxu0 0
        %1833 = vmatpush1.bf16.msra.mxu0 %v1816
        %1834 = vmatprep.subr.bf16.mxu0 0
        %1835 = vmatpush1.bf16.msra.mxu0 %v1817
        %1836 = vmatprep.subr.bf16.mxu0 0
        %1837 = vmatpush1.bf16.msra.mxu0 %v1818
        %1838 = vmatprep.subr.bf16.mxu0 0
        %1839 = vmatpush1.bf16.msra.mxu0 %v1819
        %1840 = vmatprep.subr.bf16.mxu0 0
        %1841 = vmatpush1.bf16.msra.mxu0 %v1820
        %1842 = vmatprep.subr.bf16.mxu0 0
        %1843 = vmatpush1.bf16.msra.mxu0 %v1821
        %1844 = vmatprep.subr.bf16.mxu0 0
        %1845 = vmatpush1.bf16.msra.mxu0 %v1822
        %1846 = vmatprep.subr.bf16.mxu0 0
        %1847 = vmatpush1.bf16.msra.mxu0 %v1823
        %1848 = vmatprep.subr.bf16.mxu0 0
        %1849 = vmatpush1.bf16.msra.mxu0 0
        %1850 = vmatprep.subr.bf16.mxu0 0
        %1851 = vmatpush1.bf16.msra.mxu0 0
        %1852 = vmatprep.subr.bf16.mxu0 0
        %1853 = vmatpush1.bf16.msra.mxu0 0
        %1854 = vmatprep.subr.bf16.mxu0 0
        %1855 = vmatpush1.bf16.msra.mxu0 0
        %1856 = vmatprep.subr.bf16.mxu0 0
        %1857 = vmatpush1.bf16.msra.mxu0 0
        %1858 = vmatprep.subr.bf16.mxu0 0
        %1859 = vmatpush1.bf16.msra.mxu0 0
        %1860 = vmatprep.subr.bf16.mxu0 0
        %1861 = vmatpush1.bf16.msra.mxu0 0
        %1862 = vmatprep.subr.bf16.mxu0 0
        %1863 = vmatpush1.bf16.msra.mxu0 0
        %1864 = vmatprep.mubr.bf16.mxu0 0
        %1865 = vmatmul.mubr.bf16.gmra.mrb[0].mxu0 %v1757
        %v1866 = vpop.f32.mrb[0].mxu0
        %v1867 = vadd.f32 %v1782, %v1866
        %v1868 = vpop.f32.mrb[0].mxu0
        %v1869 = vpop.f32.mrb[0].mxu0
        %v1870 = vadd.f32 %v1782, %v1869
        %v1871 = vpop.f32.mrb[0].mxu0
        %1872 = vmatprep.mubr.bf16.mxu0 0
        %1873 = vmatmul.mubr.bf16.gmra.mrb[0].mxu0 %v1758
        %v1874 = vpop.f32.mrb[0].mxu0
        %v1875 = vadd.f32 %v1782, %v1874
        %v1876 = vpop.f32.mrb[0].mxu0
        %v1877 = vpop.f32.mrb[0].mxu0
        %v1878 = vadd.f32 %v1782, %v1877
        %v1879 = vpop.f32.mrb[0].mxu0
        %1880 = vmatprep.mubr.bf16.mxu0 0
        %1881 = vmatmul.mubr.bf16.gmra.mrb[0].mxu0 %v1759
        %v1882 = vpop.f32.mrb[0].mxu0
        %v1883 = vadd.f32 %v1782, %v1882
        %v1884 = vpop.f32.mrb[0].mxu0
        %v1885 = vpop.f32.mrb[0].mxu0
        %v1886 = vadd.f32 %v1782, %v1885
        %v1887 = vpop.f32.mrb[0].mxu0
        %1888 = vmatprep.mubr.bf16.mxu0 0
        %1889 = vmatmul.mubr.bf16.gmra.mrb[0].mxu0 %v1760
        %v1890 = vpop.f32.mrb[0].mxu0
        %v1891 = vadd.f32 %v1782, %v1890
        %v1892 = vpop.f32.mrb[0].mxu0
        %v1893 = vpop.f32.mrb[0].mxu0
        %v1894 = vadd.f32 %v1782, %v1893
        %v1895 = vpop.f32.mrb[0].mxu0
        %1896 = vdwg.mxu0
        %v1897 = vadd.f32 %v794, %v1867
        %v1898 = vadd.f32 %v795, %v1870
        %v1899 = vadd.f32 %v796, %v1875
        %v1900 = vadd.f32 %v797, %v1878
        %v1901 = vadd.f32 %v798, %v1883
        %v1902 = vadd.f32 %v799, %v1886
        %v1903 = vadd.f32 %v800, %v1891
        %v1904 = vadd.f32 %v801, %v1894
        %v1905 = vld [vmem:[%s751] sm:$0x1]
        %v1906 = vld [vmem:[%s754] sm:$0x1]
        %1907 = vadd.xlane.f32.xlu0 %v1897
        %v1908 = vpop.xlane.xlu0 %1907
        %1909 = vadd.xlane.f32.xlu0 %v1898
        %v1910 = vpop.xlane.xlu0 %1909
        %1911 = vadd.xlane.f32.xlu0 %v1899
        %v1912 = vpop.xlane.xlu0 %1911
        %1913 = vadd.xlane.f32.xlu0 %v1900
        %v1914 = vpop.xlane.xlu0 %1913
        %1915 = vadd.xlane.f32.xlu0 %v1901
        %v1916 = vpop.xlane.xlu0 %1915
        %1917 = vadd.xlane.f32.xlu0 %v1902
        %v1918 = vpop.xlane.xlu0 %1917
        %1919 = vadd.xlane.f32.xlu0 %v1903
        %v1920 = vpop.xlane.xlu0 %1919
        %1921 = vadd.xlane.f32.xlu0 %v1904
        %v1922 = vpop.xlane.xlu0 %1921
        %v1923 = vmul.f32 %v1908, %v1035
        %v1924 = vmul.f32 %v1910, %v1035
        %v1925 = vmul.f32 %v1912, %v1035
        %v1926 = vmul.f32 %v1914, %v1035
        %v1927 = vmul.f32 %v1916, %v1035
        %v1928 = vmul.f32 %v1918, %v1035
        %v1929 = vmul.f32 %v1920, %v1035
        %v1930 = vmul.f32 %v1922, %v1035
        %v1931 = vmul.f32 %v1897, %v1897
        %v1932 = vmul.f32 %v1898, %v1898
        %v1933 = vmul.f32 %v1899, %v1899
        %v1934 = vmul.f32 %v1900, %v1900
        %v1935 = vmul.f32 %v1901, %v1901
        %v1936 = vmul.f32 %v1902, %v1902
        %v1937 = vmul.f32 %v1903, %v1903
        %v1938 = vmul.f32 %v1904, %v1904
        %1939 = vadd.xlane.f32.xlu0 %v1931
        %v1940 = vpop.xlane.xlu0 %1939
        %1941 = vadd.xlane.f32.xlu0 %v1932
        %v1942 = vpop.xlane.xlu0 %1941
        %1943 = vadd.xlane.f32.xlu0 %v1933
        %v1944 = vpop.xlane.xlu0 %1943
        %1945 = vadd.xlane.f32.xlu0 %v1934
        %v1946 = vpop.xlane.xlu0 %1945
        %1947 = vadd.xlane.f32.xlu0 %v1935
        %v1948 = vpop.xlane.xlu0 %1947
        %1949 = vadd.xlane.f32.xlu0 %v1936
        %v1950 = vpop.xlane.xlu0 %1949
        %1951 = vadd.xlane.f32.xlu0 %v1937
        %v1952 = vpop.xlane.xlu0 %1951
        %1953 = vadd.xlane.f32.xlu0 %v1938
        %v1954 = vpop.xlane.xlu0 %1953
        %v1955 = vmul.f32 %v1940, %v1035
        %v1956 = vmul.f32 %v1942, %v1035
        %v1957 = vmul.f32 %v1944, %v1035
        %v1958 = vmul.f32 %v1946, %v1035
        %v1959 = vmul.f32 %v1948, %v1035
        %v1960 = vmul.f32 %v1950, %v1035
        %v1961 = vmul.f32 %v1952, %v1035
        %v1962 = vmul.f32 %v1954, %v1035
        %v1963 = vsub.f32 %v1897, %v1923
        %v1964 = vsub.f32 %v1898, %v1924
        %v1965 = vsub.f32 %v1899, %v1925
        %v1966 = vsub.f32 %v1900, %v1926
        %v1967 = vsub.f32 %v1901, %v1927
        %v1968 = vsub.f32 %v1902, %v1928
        %v1969 = vsub.f32 %v1903, %v1929
        %v1970 = vsub.f32 %v1904, %v1930
        %v1971 = vmul.f32 %v1923, %v1923
        %v1972 = vmul.f32 %v1924, %v1924
        %v1973 = vmul.f32 %v1925, %v1925
        %v1974 = vmul.f32 %v1926, %v1926
        %v1975 = vmul.f32 %v1927, %v1927
        %v1976 = vmul.f32 %v1928, %v1928
        %v1977 = vmul.f32 %v1929, %v1929
        %v1978 = vmul.f32 %v1930, %v1930
        %v1979 = vsub.f32 %v1955, %v1971
        %v1980 = vsub.f32 %v1956, %v1972
        %v1981 = vsub.f32 %v1957, %v1973
        %v1982 = vsub.f32 %v1958, %v1974
        %v1983 = vsub.f32 %v1959, %v1975
        %v1984 = vsub.f32 %v1960, %v1976
        %v1985 = vsub.f32 %v1961, %v1977
        %v1986 = vsub.f32 %v1962, %v1978
        %v1987 = vadd.f32 %v1979, 1e-05
        %v1988 = vadd.f32 %v1980, 1e-05
        %v1989 = vadd.f32 %v1981, 1e-05
        %v1990 = vadd.f32 %v1982, 1e-05
        %v1991 = vadd.f32 %v1983, 1e-05
        %v1992 = vadd.f32 %v1984, 1e-05
        %v1993 = vadd.f32 %v1985, 1e-05
        %v1994 = vadd.f32 %v1986, 1e-05
        %v1995 = vrsqrt.pop %v1987
        %v1996 = vrsqrt.pop %v1988
        %v1997 = vrsqrt.pop %v1989
        %v1998 = vrsqrt.pop %v1990
        %v1999 = vrsqrt.pop %v1991
        %v2000 = vrsqrt.pop %v1992
        %v2001 = vrsqrt.pop %v1993
        %v2002 = vrsqrt.pop %v1994
        %v2003 = vmul.f32 %v1963, %v1995
        %v2004 = vmul.f32 %v1964, %v1996
        %v2005 = vmul.f32 %v1965, %v1997
        %v2006 = vmul.f32 %v1966, %v1998
        %v2007 = vmul.f32 %v1967, %v1999
        %v2008 = vmul.f32 %v1968, %v2000
        %v2009 = vmul.f32 %v1969, %v2001
        %v2010 = vmul.f32 %v1970, %v2002
        %v2012 = vlaneseq
        %v2013 = vshrl.u32 %v2012, 7
        %v2014 = vsub.s32 0, %v2013
        %v2015 = vrot.slane %v1905, %v2014
        %v2017 = vmul.f32 %v2003, %v2015
        %v2018 = vmul.f32 %v2004, %v2015
        %v2019 = vmul.f32 %v2005, %v2015
        %v2020 = vmul.f32 %v2006, %v2015
        %v2021 = vmul.f32 %v2007, %v2015
        %v2022 = vmul.f32 %v2008, %v2015
        %v2023 = vmul.f32 %v2009, %v2015
        %v2024 = vmul.f32 %v2010, %v2015
        %v2026 = vlaneseq
        %v2027 = vshrl.u32 %v2026, 7
        %v2028 = vsub.s32 0, %v2027
        %v2029 = vrot.slane %v1906, %v2028
        %v2031 = vadd.f32 %v2017, %v2029
        %v2032 = vadd.f32 %v2018, %v2029
        %v2033 = vadd.f32 %v2019, %v2029
        %v2034 = vadd.f32 %v2020, %v2029
        %v2035 = vadd.f32 %v2021, %v2029
        %v2036 = vadd.f32 %v2022, %v2029
        %v2037 = vadd.f32 %v2023, %v2029
        %v2038 = vadd.f32 %v2024, %v2029
        %v2039 = vpack.c.bf16 %v2032, %v2031
        %v2040 = vpack.c.bf16 %v2034, %v2033
        %v2041 = vpack.c.bf16 %v2036, %v2035
        %v2042 = vpack.c.bf16 %v2038, %v2037
        %v2043 = vld [vmem:[%s759] sm:$0xff]
        %v2044 = vld [vmem:[%s759 + $0x8] sm:$0xff]
        %v2045 = vld [vmem:[%s759 + $0x10] sm:$0xff]
        %v2046 = vld [vmem:[%s759 + $0x18] sm:$0xff]
        %v2047 = vld [vmem:[%s759 + $0x20] sm:$0xff]
        %v2048 = vld [vmem:[%s759 + $0x28] sm:$0xff]
        %v2049 = vld [vmem:[%s759 + $0x30] sm:$0xff]
        %v2050 = vld [vmem:[%s759 + $0x38] sm:$0xff]
        %v2051 = vld [vmem:[%s759 + $0x40] sm:$0xff]
        %v2052 = vld [vmem:[%s759 + $0x48] sm:$0xff]
        %v2053 = vld [vmem:[%s759 + $0x50] sm:$0xff]
        %v2054 = vld [vmem:[%s759 + $0x58] sm:$0xff]
        %v2055 = vld [vmem:[%s759 + $0x60] sm:$0xff]
        %v2056 = vld [vmem:[%s759 + $0x68] sm:$0xff]
        %v2057 = vld [vmem:[%s759 + $0x70] sm:$0xff]
        %v2058 = vld [vmem:[%s759 + $0x78] sm:$0xff]
        %v2059 = vld [vmem:[%s759 + $0x80] sm:$0xff]
        %v2060 = vld [vmem:[%s759 + $0x88] sm:$0xff]
        %v2061 = vld [vmem:[%s759 + $0x90] sm:$0xff]
        %v2062 = vld [vmem:[%s759 + $0x98] sm:$0xff]
        %v2063 = vld [vmem:[%s759 + $0xa0] sm:$0xff]
        %v2064 = vld [vmem:[%s759 + $0xa8] sm:$0xff]
        %v2065 = vld [vmem:[%s759 + $0xb0] sm:$0xff]
        %v2066 = vld [vmem:[%s759 + $0xb8] sm:$0xff]
        %v2067 = vld [vmem:[%s759 + $0xc0] sm:$0xff]
        %v2068 = vld [vmem:[%s759 + $0xc8] sm:$0xff]
        %v2069 = vld [vmem:[%s759 + $0xd0] sm:$0xff]
        %v2070 = vld [vmem:[%s759 + $0xd8] sm:$0xff]
        %v2071 = vld [vmem:[%s759 + $0xe0] sm:$0xff]
        %v2072 = vld [vmem:[%s759 + $0xe8] sm:$0xff]
        %v2073 = vld [vmem:[%s759 + $0xf0] sm:$0xff]
        %v2074 = vld [vmem:[%s759 + $0xf8] sm:$0xff]
        %v2075 = vld [vmem:[%s763] sm:$0xf]
        %v2077 = vlaneseq
        %v2078 = vshrl.u32 %v2077, 7
        %v2079 = vsub.s32 0, %v2078
        %v2080 = vrot.slane %v2075, %v2079
        %v2081 = vlaneseq
        %v2082 = vshrl.u32 %v2081, 7
        %v2083 = vsub.s32 1, %v2082
        %v2084 = vrot.slane %v2075, %v2083
        %v2085 = vlaneseq
        %v2086 = vshrl.u32 %v2085, 7
        %v2087 = vsub.s32 2, %v2086
        %v2088 = vrot.slane %v2075, %v2087
        %v2089 = vlaneseq
        %v2090 = vshrl.u32 %v2089, 7
        %v2091 = vsub.s32 3, %v2090
        %v2092 = vrot.slane %v2075, %v2091
        %v2129 = vunpack.c.l.b16 %v2043
        %v2130 = vunpack.c.h.b16 %v2043
        %v2131 = vunpack.c.l.b16 %v2044
        %v2132 = vunpack.c.h.b16 %v2044
        %v2133 = vunpack.c.l.b16 %v2045
        %v2134 = vunpack.c.h.b16 %v2045
        %v2135 = vunpack.c.l.b16 %v2046
        %v2136 = vunpack.c.h.b16 %v2046
        %v2137 = vunpack.c.l.b16 %v2047
        %v2138 = vunpack.c.h.b16 %v2047
        %v2139 = vunpack.c.l.b16 %v2048
        %v2140 = vunpack.c.h.b16 %v2048
        %v2141 = vunpack.c.l.b16 %v2049
        %v2142 = vunpack.c.h.b16 %v2049
        %v2143 = vunpack.c.l.b16 %v2050
        %v2144 = vunpack.c.h.b16 %v2050
        %v2145 = vunpack.c.l.b16 %v2051
        %v2146 = vunpack.c.h.b16 %v2051
        %v2147 = vunpack.c.l.b16 %v2052
        %v2148 = vunpack.c.h.b16 %v2052
        %v2149 = vunpack.c.l.b16 %v2053
        %v2150 = vunpack.c.h.b16 %v2053
        %v2151 = vunpack.c.l.b16 %v2054
        %v2152 = vunpack.c.h.b16 %v2054
        %v2153 = vunpack.c.l.b16 %v2055
        %v2154 = vunpack.c.h.b16 %v2055
        %v2155 = vunpack.c.l.b16 %v2056
        %v2156 = vunpack.c.h.b16 %v2056
        %v2157 = vunpack.c.l.b16 %v2057
        %v2158 = vunpack.c.h.b16 %v2057
        %v2159 = vunpack.c.l.b16 %v2058
        %v2160 = vunpack.c.h.b16 %v2058
        %v2161 = vunpack.c.l.b16 %v2059
        %v2162 = vunpack.c.h.b16 %v2059
        %v2163 = vunpack.c.l.b16 %v2060
        %v2164 = vunpack.c.h.b16 %v2060
        %v2165 = vunpack.c.l.b16 %v2061
        %v2166 = vunpack.c.h.b16 %v2061
        %v2167 = vunpack.c.l.b16 %v2062
        %v2168 = vunpack.c.h.b16 %v2062
        %v2169 = vunpack.c.l.b16 %v2063
        %v2170 = vunpack.c.h.b16 %v2063
        %v2171 = vunpack.c.l.b16 %v2064
        %v2172 = vunpack.c.h.b16 %v2064
        %v2173 = vunpack.c.l.b16 %v2065
        %v2174 = vunpack.c.h.b16 %v2065
        %v2175 = vunpack.c.l.b16 %v2066
        %v2176 = vunpack.c.h.b16 %v2066
        %v2177 = vunpack.c.l.b16 %v2067
        %v2178 = vunpack.c.h.b16 %v2067
        %v2179 = vunpack.c.l.b16 %v2068
        %v2180 = vunpack.c.h.b16 %v2068
        %v2181 = vunpack.c.l.b16 %v2069
        %v2182 = vunpack.c.h.b16 %v2069
        %v2183 = vunpack.c.l.b16 %v2070
        %v2184 = vunpack.c.h.b16 %v2070
        %v2185 = vunpack.c.l.b16 %v2071
        %v2186 = vunpack.c.h.b16 %v2071
        %v2187 = vunpack.c.l.b16 %v2072
        %v2188 = vunpack.c.h.b16 %v2072
        %v2189 = vunpack.c.l.b16 %v2073
        %v2190 = vunpack.c.h.b16 %v2073
        %v2191 = vunpack.c.l.b16 %v2074
        %v2192 = vunpack.c.h.b16 %v2074
        %v2193 = vpack.c.b16 %v2133, %v2129
        %v2194 = vpack.c.b16 %v2134, %v2130
        %v2195 = vpack.c.b16 %v2135, %v2131
        %v2196 = vpack.c.b16 %v2136, %v2132
        %v2197 = vpack.c.b16 %v2141, %v2137
        %v2198 = vpack.c.b16 %v2142, %v2138
        %v2199 = vpack.c.b16 %v2143, %v2139
        %v2200 = vpack.c.b16 %v2144, %v2140
        %v2201 = vpack.c.b16 %v2149, %v2145
        %v2202 = vpack.c.b16 %v2150, %v2146
        %v2203 = vpack.c.b16 %v2151, %v2147
        %v2204 = vpack.c.b16 %v2152, %v2148
        %v2205 = vpack.c.b16 %v2157, %v2153
        %v2206 = vpack.c.b16 %v2158, %v2154
        %v2207 = vpack.c.b16 %v2159, %v2155
        %v2208 = vpack.c.b16 %v2160, %v2156
        %v2209 = vpack.c.b16 %v2165, %v2161
        %v2210 = vpack.c.b16 %v2166, %v2162
        %v2211 = vpack.c.b16 %v2167, %v2163
        %v2212 = vpack.c.b16 %v2168, %v2164
        %v2213 = vpack.c.b16 %v2173, %v2169
        %v2214 = vpack.c.b16 %v2174, %v2170
        %v2215 = vpack.c.b16 %v2175, %v2171
        %v2216 = vpack.c.b16 %v2176, %v2172
        %v2217 = vpack.c.b16 %v2181, %v2177
        %v2218 = vpack.c.b16 %v2182, %v2178
        %v2219 = vpack.c.b16 %v2183, %v2179
        %v2220 = vpack.c.b16 %v2184, %v2180
        %v2221 = vpack.c.b16 %v2189, %v2185
        %v2222 = vpack.c.b16 %v2190, %v2186
        %v2223 = vpack.c.b16 %v2191, %v2187
        %v2224 = vpack.c.b16 %v2192, %v2188
        %2257 = vmatprep.subr.bf16.mxu0 %v2194
        %2258 = vmatpush1.bf16.msra.mxu0 %v2193
        %2259 = vmatprep.subr.bf16.mxu0 %v2198
        %2260 = vmatpush1.bf16.msra.mxu0 %v2197
        %2261 = vmatprep.subr.bf16.mxu0 %v2202
        %2262 = vmatpush1.bf16.msra.mxu0 %v2201
        %2263 = vmatprep.subr.bf16.mxu0 %v2206
        %2264 = vmatpush1.bf16.msra.mxu0 %v2205
        %2265 = vmatprep.subr.bf16.mxu0 %v2210
        %2266 = vmatpush1.bf16.msra.mxu0 %v2209
        %2267 = vmatprep.subr.bf16.mxu0 %v2214
        %2268 = vmatpush1.bf16.msra.mxu0 %v2213
        %2269 = vmatprep.subr.bf16.mxu0 %v2218
        %2270 = vmatpush1.bf16.msra.mxu0 %v2217
        %2271 = vmatprep.subr.bf16.mxu0 %v2222
        %2272 = vmatpush1.bf16.msra.mxu0 %v2221
        %2273 = vmatprep.subr.bf16.mxu0 0
        %2274 = vmatpush1.bf16.msra.mxu0 0
        %2275 = vmatprep.subr.bf16.mxu0 0
        %2276 = vmatpush1.bf16.msra.mxu0 0
        %2277 = vmatprep.subr.bf16.mxu0 0
        %2278 = vmatpush1.bf16.msra.mxu0 0
        %2279 = vmatprep.subr.bf16.mxu0 0
        %2280 = vmatpush1.bf16.msra.mxu0 0
        %2281 = vmatprep.subr.bf16.mxu0 0
        %2282 = vmatpush1.bf16.msra.mxu0 0
        %2283 = vmatprep.subr.bf16.mxu0 0
        %2284 = vmatpush1.bf16.msra.mxu0 0
        %2285 = vmatprep.subr.bf16.mxu0 0
        %2286 = vmatpush1.bf16.msra.mxu0 0
        %2287 = vmatprep.subr.bf16.mxu0 0
        %2288 = vmatpush1.bf16.msra.mxu0 0
        %2289 = vmatprep.mubr.bf16.mxu0 0
        %2290 = vmatmul.mubr.bf16.gmra.mrb[0].mxu0 %v2039
        %v2291 = vpop.f32.mrb[0].mxu0
        %v2292 = vadd.f32 %v2080, %v2291
        %v2293 = vpop.f32.mrb[0].mxu0
        %v2294 = vadd.f32 %v2084, %v2293
        %v2295 = vpop.f32.mrb[0].mxu0
        %v2296 = vadd.f32 %v2080, %v2295
        %v2297 = vpop.f32.mrb[0].mxu0
        %v2298 = vadd.f32 %v2084, %v2297
        %2299 = vmatprep.mubr.bf16.mxu0 0
        %2300 = vmatmul.mubr.bf16.gmra.mrb[0].mxu0 %v2040
        %v2301 = vpop.f32.mrb[0].mxu0
        %v2302 = vadd.f32 %v2080, %v2301
        %v2303 = vpop.f32.mrb[0].mxu0
        %v2304 = vadd.f32 %v2084, %v2303
        %v2305 = vpop.f32.mrb[0].mxu0
        %v2306 = vadd.f32 %v2080, %v2305
        %v2307 = vpop.f32.mrb[0].mxu0
        %v2308 = vadd.f32 %v2084, %v2307
        %2309 = vmatprep.mubr.bf16.mxu0 0
        %2310 = vmatmul.mubr.bf16.gmra.mrb[0].mxu0 %v2041
        %v2311 = vpop.f32.mrb[0].mxu0
        %v2312 = vadd.f32 %v2080, %v2311
        %v2313 = vpop.f32.mrb[0].mxu0
        %v2314 = vadd.f32 %v2084, %v2313
        %v2315 = vpop.f32.mrb[0].mxu0
        %v2316 = vadd.f32 %v2080, %v2315
        %v2317 = vpop.f32.mrb[0].mxu0
        %v2318 = vadd.f32 %v2084, %v2317
        %2319 = vmatprep.mubr.bf16.mxu0 0
        %2320 = vmatmul.mubr.bf16.gmra.mrb[0].mxu0 %v2042
        %v2321 = vpop.f32.mrb[0].mxu0
        %v2322 = vadd.f32 %v2080, %v2321
        %v2323 = vpop.f32.mrb[0].mxu0
        %v2324 = vadd.f32 %v2084, %v2323
        %v2325 = vpop.f32.mrb[0].mxu0
        %v2326 = vadd.f32 %v2080, %v2325
        %v2327 = vpop.f32.mrb[0].mxu0
        %v2328 = vadd.f32 %v2084, %v2327
        %2329 = vdwg.mxu0
        %2330 = vmatprep.subr.bf16.mxu0 %v2196
        %2331 = vmatpush1.bf16.msra.mxu0 %v2195
        %2332 = vmatprep.subr.bf16.mxu0 %v2200
        %2333 = vmatpush1.bf16.msra.mxu0 %v2199
        %2334 = vmatprep.subr.bf16.mxu0 %v2204
        %2335 = vmatpush1.bf16.msra.mxu0 %v2203
        %2336 = vmatprep.subr.bf16.mxu0 %v2208
        %2337 = vmatpush1.bf16.msra.mxu0 %v2207
        %2338 = vmatprep.subr.bf16.mxu0 %v2212
        %2339 = vmatpush1.bf16.msra.mxu0 %v2211
        %2340 = vmatprep.subr.bf16.mxu0 %v2216
        %2341 = vmatpush1.bf16.msra.mxu0 %v2215
        %2342 = vmatprep.subr.bf16.mxu0 %v2220
        %2343 = vmatpush1.bf16.msra.mxu0 %v2219
        %2344 = vmatprep.subr.bf16.mxu0 %v2224
        %2345 = vmatpush1.bf16.msra.mxu0 %v2223
        %2346 = vmatprep.subr.bf16.mxu0 0
        %2347 = vmatpush1.bf16.msra.mxu0 0
        %2348 = vmatprep.subr.bf16.mxu0 0
        %2349 = vmatpush1.bf16.msra.mxu0 0
        %2350 = vmatprep.subr.bf16.mxu0 0
        %2351 = vmatpush1.bf16.msra.mxu0 0
        %2352 = vmatprep.subr.bf16.mxu0 0
        %2353 = vmatpush1.bf16.msra.mxu0 0
        %2354 = vmatprep.subr.bf16.mxu0 0
        %2355 = vmatpush1.bf16.msra.mxu0 0
        %2356 = vmatprep.subr.bf16.mxu0 0
        %2357 = vmatpush1.bf16.msra.mxu0 0
        %2358 = vmatprep.subr.bf16.mxu0 0
        %2359 = vmatpush1.bf16.msra.mxu0 0
        %2360 = vmatprep.subr.bf16.mxu0 0
        %2361 = vmatpush1.bf16.msra.mxu0 0
        %2362 = vmatprep.mubr.bf16.mxu0 0
        %2363 = vmatmul.mubr.bf16.gmra.mrb[0].mxu0 %v2039
        %v2364 = vpop.f32.mrb[0].mxu0
        %v2365 = vadd.f32 %v2088, %v2364
        %v2366 = vpop.f32.mrb[0].mxu0
        %v2367 = vadd.f32 %v2092, %v2366
        %v2368 = vpop.f32.mrb[0].mxu0
        %v2369 = vadd.f32 %v2088, %v2368
        %v2370 = vpop.f32.mrb[0].mxu0
        %v2371 = vadd.f32 %v2092, %v2370
        %2372 = vmatprep.mubr.bf16.mxu0 0
        %2373 = vmatmul.mubr.bf16.gmra.mrb[0].mxu0 %v2040
        %v2374 = vpop.f32.mrb[0].mxu0
        %v2375 = vadd.f32 %v2088, %v2374
        %v2376 = vpop.f32.mrb[0].mxu0
        %v2377 = vadd.f32 %v2092, %v2376
        %v2378 = vpop.f32.mrb[0].mxu0
        %v2379 = vadd.f32 %v2088, %v2378
        %v2380 = vpop.f32.mrb[0].mxu0
        %v2381 = vadd.f32 %v2092, %v2380
        %2382 = vmatprep.mubr.bf16.mxu0 0
        %2383 = vmatmul.mubr.bf16.gmra.mrb[0].mxu0 %v2041
        %v2384 = vpop.f32.mrb[0].mxu0
        %v2385 = vadd.f32 %v2088, %v2384
        %v2386 = vpop.f32.mrb[0].mxu0
        %v2387 = vadd.f32 %v2092, %v2386
        %v2388 = vpop.f32.mrb[0].mxu0
        %v2389 = vadd.f32 %v2088, %v2388
        %v2390 = vpop.f32.mrb[0].mxu0
        %v2391 = vadd.f32 %v2092, %v2390
        %2392 = vmatprep.mubr.bf16.mxu0 0
        %2393 = vmatmul.mubr.bf16.gmra.mrb[0].mxu0 %v2042
        %v2394 = vpop.f32.mrb[0].mxu0
        %v2395 = vadd.f32 %v2088, %v2394
        %v2396 = vpop.f32.mrb[0].mxu0
        %v2397 = vadd.f32 %v2092, %v2396
        %v2398 = vpop.f32.mrb[0].mxu0
        %v2399 = vadd.f32 %v2088, %v2398
        %v2400 = vpop.f32.mrb[0].mxu0
        %v2401 = vadd.f32 %v2092, %v2400
        %2402 = vdwg.mxu0
        %v2403 = vmul.f32 %v2292, 0.5
        %v2404 = vmul.f32 %v2294, 0.5
        %v2405 = vmul.f32 %v2365, 0.5
        %v2406 = vmul.f32 %v2367, 0.5
        %v2407 = vmul.f32 %v2296, 0.5
        %v2408 = vmul.f32 %v2298, 0.5
        %v2409 = vmul.f32 %v2369, 0.5
        %v2410 = vmul.f32 %v2371, 0.5
        %v2411 = vmul.f32 %v2302, 0.5
        %v2412 = vmul.f32 %v2304, 0.5
        %v2413 = vmul.f32 %v2375, 0.5
        %v2414 = vmul.f32 %v2377, 0.5
        %v2415 = vmul.f32 %v2306, 0.5
        %v2416 = vmul.f32 %v2308, 0.5
        %v2417 = vmul.f32 %v2379, 0.5
        %v2418 = vmul.f32 %v2381, 0.5
        %v2419 = vmul.f32 %v2312, 0.5
        %v2420 = vmul.f32 %v2314, 0.5
        %v2421 = vmul.f32 %v2385, 0.5
        %v2422 = vmul.f32 %v2387, 0.5
        %v2423 = vmul.f32 %v2316, 0.5
        %v2424 = vmul.f32 %v2318, 0.5
        %v2425 = vmul.f32 %v2389, 0.5
        %v2426 = vmul.f32 %v2391, 0.5
        %v2427 = vmul.f32 %v2322, 0.5
        %v2428 = vmul.f32 %v2324, 0.5
        %v2429 = vmul.f32 %v2395, 0.5
        %v2430 = vmul.f32 %v2397, 0.5
        %v2431 = vmul.f32 %v2326, 0.5
        %v2432 = vmul.f32 %v2328, 0.5
        %v2433 = vmul.f32 %v2399, 0.5
        %v2434 = vmul.f32 %v2401, 0.5
        %v2435 = vmul.f32 %v2292, 0.70710677
        %v2436 = vmul.f32 %v2294, 0.70710677
        %v2437 = vmul.f32 %v2365, 0.70710677
        %v2438 = vmul.f32 %v2367, 0.70710677
        %v2439 = vmul.f32 %v2296, 0.70710677
        %v2440 = vmul.f32 %v2298, 0.70710677
        %v2441 = vmul.f32 %v2369, 0.70710677
        %v2442 = vmul.f32 %v2371, 0.70710677
        %v2443 = vmul.f32 %v2302, 0.70710677
        %v2444 = vmul.f32 %v2304, 0.70710677
        %v2445 = vmul.f32 %v2375, 0.70710677
        %v2446 = vmul.f32 %v2377, 0.70710677
        %v2447 = vmul.f32 %v2306, 0.70710677
        %v2448 = vmul.f32 %v2308, 0.70710677
        %v2449 = vmul.f32 %v2379, 0.70710677
        %v2450 = vmul.f32 %v2381, 0.70710677
        %v2451 = vmul.f32 %v2312, 0.70710677
        %v2452 = vmul.f32 %v2314, 0.70710677
        %v2453 = vmul.f32 %v2385, 0.70710677
        %v2454 = vmul.f32 %v2387, 0.70710677
        %v2455 = vmul.f32 %v2316, 0.70710677
        %v2456 = vmul.f32 %v2318, 0.70710677
        %v2457 = vmul.f32 %v2389, 0.70710677
        %v2458 = vmul.f32 %v2391, 0.70710677
        %v2459 = vmul.f32 %v2322, 0.70710677
        %v2460 = vmul.f32 %v2324, 0.70710677
        %v2461 = vmul.f32 %v2395, 0.70710677
        %v2462 = vmul.f32 %v2397, 0.70710677
        %v2463 = vmul.f32 %v2326, 0.70710677
        %v2464 = vmul.f32 %v2328, 0.70710677
        %v2465 = vmul.f32 %v2399, 0.70710677
        %v2466 = vmul.f32 %v2401, 0.70710677
        %v2467 = verf.f32.pop %v2435
        %v2468 = verf.f32.pop %v2436
        %v2469 = verf.f32.pop %v2437
        %v2470 = verf.f32.pop %v2438
        %v2471 = verf.f32.pop %v2439
        %v2472 = verf.f32.pop %v2440
        %v2473 = verf.f32.pop %v2441
        %v2474 = verf.f32.pop %v2442
        %v2475 = verf.f32.pop %v2443
        %v2476 = verf.f32.pop %v2444
        %v2477 = verf.f32.pop %v2445
        %v2478 = verf.f32.pop %v2446
        %v2479 = verf.f32.pop %v2447
        %v2480 = verf.f32.pop %v2448
        %v2481 = verf.f32.pop %v2449
        %v2482 = verf.f32.pop %v2450
        %v2483 = verf.f32.pop %v2451
        %v2484 = verf.f32.pop %v2452
        %v2485 = verf.f32.pop %v2453
        %v2486 = verf.f32.pop %v2454
        %v2487 = verf.f32.pop %v2455
        %v2488 = verf.f32.pop %v2456
        %v2489 = verf.f32.pop %v2457
        %v2490 = verf.f32.pop %v2458
        %v2491 = verf.f32.pop %v2459
        %v2492 = verf.f32.pop %v2460
        %v2493 = verf.f32.pop %v2461
        %v2494 = verf.f32.pop %v2462
        %v2495 = verf.f32.pop %v2463
        %v2496 = verf.f32.pop %v2464
        %v2497 = verf.f32.pop %v2465
        %v2498 = verf.f32.pop %v2466
        %v2499 = vadd.f32 %v2467, 1.0
        %v2500 = vadd.f32 %v2468, 1.0
        %v2501 = vadd.f32 %v2469, 1.0
        %v2502 = vadd.f32 %v2470, 1.0
        %v2503 = vadd.f32 %v2471, 1.0
        %v2504 = vadd.f32 %v2472, 1.0
        %v2505 = vadd.f32 %v2473, 1.0
        %v2506 = vadd.f32 %v2474, 1.0
        %v2507 = vadd.f32 %v2475, 1.0
        %v2508 = vadd.f32 %v2476, 1.0
        %v2509 = vadd.f32 %v2477, 1.0
        %v2510 = vadd.f32 %v2478, 1.0
        %v2511 = vadd.f32 %v2479, 1.0
        %v2512 = vadd.f32 %v2480, 1.0
        %v2513 = vadd.f32 %v2481, 1.0
        %v2514 = vadd.f32 %v2482, 1.0
        %v2515 = vadd.f32 %v2483, 1.0
        %v2516 = vadd.f32 %v2484, 1.0
        %v2517 = vadd.f32 %v2485, 1.0
        %v2518 = vadd.f32 %v2486, 1.0
        %v2519 = vadd.f32 %v2487, 1.0
        %v2520 = vadd.f32 %v2488, 1.0
        %v2521 = vadd.f32 %v2489, 1.0
        %v2522 = vadd.f32 %v2490, 1.0
        %v2523 = vadd.f32 %v2491, 1.0
        %v2524 = vadd.f32 %v2492, 1.0
        %v2525 = vadd.f32 %v2493, 1.0
        %v2526 = vadd.f32 %v2494, 1.0
        %v2527 = vadd.f32 %v2495, 1.0
        %v2528 = vadd.f32 %v2496, 1.0
        %v2529 = vadd.f32 %v2497, 1.0
        %v2530 = vadd.f32 %v2498, 1.0
        %v2531 = vmul.f32 %v2403, %v2499
        %v2532 = vmul.f32 %v2404, %v2500
        %v2533 = vmul.f32 %v2405, %v2501
        %v2534 = vmul.f32 %v2406, %v2502
        %v2535 = vmul.f32 %v2407, %v2503
        %v2536 = vmul.f32 %v2408, %v2504
        %v2537 = vmul.f32 %v2409, %v2505
        %v2538 = vmul.f32 %v2410, %v2506
        %v2539 = vmul.f32 %v2411, %v2507
        %v2540 = vmul.f32 %v2412, %v2508
        %v2541 = vmul.f32 %v2413, %v2509
        %v2542 = vmul.f32 %v2414, %v2510
        %v2543 = vmul.f32 %v2415, %v2511
        %v2544 = vmul.f32 %v2416, %v2512
        %v2545 = vmul.f32 %v2417, %v2513
        %v2546 = vmul.f32 %v2418, %v2514
        %v2547 = vmul.f32 %v2419, %v2515
        %v2548 = vmul.f32 %v2420, %v2516
        %v2549 = vmul.f32 %v2421, %v2517
        %v2550 = vmul.f32 %v2422, %v2518
        %v2551 = vmul.f32 %v2423, %v2519
        %v2552 = vmul.f32 %v2424, %v2520
        %v2553 = vmul.f32 %v2425, %v2521
        %v2554 = vmul.f32 %v2426, %v2522
        %v2555 = vmul.f32 %v2427, %v2523
        %v2556 = vmul.f32 %v2428, %v2524
        %v2557 = vmul.f32 %v2429, %v2525
        %v2558 = vmul.f32 %v2430, %v2526
        %v2559 = vmul.f32 %v2431, %v2527
        %v2560 = vmul.f32 %v2432, %v2528
        %v2561 = vmul.f32 %v2433, %v2529
        %v2562 = vmul.f32 %v2434, %v2530
        %v2563 = vpack.c.bf16 %v2535, %v2531
        %v2564 = vpack.c.bf16 %v2536, %v2532
        %v2565 = vpack.c.bf16 %v2537, %v2533
        %v2566 = vpack.c.bf16 %v2538, %v2534
        %v2567 = vpack.c.bf16 %v2543, %v2539
        %v2568 = vpack.c.bf16 %v2544, %v2540
        %v2569 = vpack.c.bf16 %v2545, %v2541
        %v2570 = vpack.c.bf16 %v2546, %v2542
        %v2571 = vpack.c.bf16 %v2551, %v2547
        %v2572 = vpack.c.bf16 %v2552, %v2548
        %v2573 = vpack.c.bf16 %v2553, %v2549
        %v2574 = vpack.c.bf16 %v2554, %v2550
        %v2575 = vpack.c.bf16 %v2559, %v2555
        %v2576 = vpack.c.bf16 %v2560, %v2556
        %v2577 = vpack.c.bf16 %v2561, %v2557
        %v2578 = vpack.c.bf16 %v2562, %v2558
        %v2579 = vld [vmem:[%s768] sm:$0xf]
        %v2580 = vld [vmem:[%s768 + $0x4] sm:$0xf]
        %v2581 = vld [vmem:[%s768 + $0x8] sm:$0xf]
        %v2582 = vld [vmem:[%s768 + $0xc] sm:$0xf]
        %v2583 = vld [vmem:[%s768 + $0x10] sm:$0xf]
        %v2584 = vld [vmem:[%s768 + $0x14] sm:$0xf]
        %v2585 = vld [vmem:[%s768 + $0x18] sm:$0xf]
        %v2586 = vld [vmem:[%s768 + $0x1c] sm:$0xf]
        %v2587 = vld [vmem:[%s768 + $0x20] sm:$0xf]
        %v2588 = vld [vmem:[%s768 + $0x24] sm:$0xf]
        %v2589 = vld [vmem:[%s768 + $0x28] sm:$0xf]
        %v2590 = vld [vmem:[%s768 + $0x2c] sm:$0xf]
        %v2591 = vld [vmem:[%s768 + $0x30] sm:$0xf]
        %v2592 = vld [vmem:[%s768 + $0x34] sm:$0xf]
        %v2593 = vld [vmem:[%s768 + $0x38] sm:$0xf]
        %v2594 = vld [vmem:[%s768 + $0x3c] sm:$0xf]
        %v2595 = vld [vmem:[%s768 + $0x40] sm:$0xf]
        %v2596 = vld [vmem:[%s768 + $0x44] sm:$0xf]
        %v2597 = vld [vmem:[%s768 + $0x48] sm:$0xf]
        %v2598 = vld [vmem:[%s768 + $0x4c] sm:$0xf]
        %v2599 = vld [vmem:[%s768 + $0x50] sm:$0xf]
        %v2600 = vld [vmem:[%s768 + $0x54] sm:$0xf]
        %v2601 = vld [vmem:[%s768 + $0x58] sm:$0xf]
        %v2602 = vld [vmem:[%s768 + $0x5c] sm:$0xf]
        %v2603 = vld [vmem:[%s768 + $0x60] sm:$0xf]
        %v2604 = vld [vmem:[%s768 + $0x64] sm:$0xf]
        %v2605 = vld [vmem:[%s768 + $0x68] sm:$0xf]
        %v2606 = vld [vmem:[%s768 + $0x6c] sm:$0xf]
        %v2607 = vld [vmem:[%s768 + $0x70] sm:$0xf]
        %v2608 = vld [vmem:[%s768 + $0x74] sm:$0xf]
        %v2609 = vld [vmem:[%s768 + $0x78] sm:$0xf]
        %v2610 = vld [vmem:[%s768 + $0x7c] sm:$0xf]
        %v2611 = vld [vmem:[%s768 + $0x80] sm:$0xf]
        %v2612 = vld [vmem:[%s768 + $0x84] sm:$0xf]
        %v2613 = vld [vmem:[%s768 + $0x88] sm:$0xf]
        %v2614 = vld [vmem:[%s768 + $0x8c] sm:$0xf]
        %v2615 = vld [vmem:[%s768 + $0x90] sm:$0xf]
        %v2616 = vld [vmem:[%s768 + $0x94] sm:$0xf]
        %v2617 = vld [vmem:[%s768 + $0x98] sm:$0xf]
        %v2618 = vld [vmem:[%s768 + $0x9c] sm:$0xf]
        %v2619 = vld [vmem:[%s768 + $0xa0] sm:$0xf]
        %v2620 = vld [vmem:[%s768 + $0xa4] sm:$0xf]
        %v2621 = vld [vmem:[%s768 + $0xa8] sm:$0xf]
        %v2622 = vld [vmem:[%s768 + $0xac] sm:$0xf]
        %v2623 = vld [vmem:[%s768 + $0xb0] sm:$0xf]
        %v2624 = vld [vmem:[%s768 + $0xb4] sm:$0xf]
        %v2625 = vld [vmem:[%s768 + $0xb8] sm:$0xf]
        %v2626 = vld [vmem:[%s768 + $0xbc] sm:$0xf]
        %v2627 = vld [vmem:[%s768 + $0xc0] sm:$0xf]
        %v2628 = vld [vmem:[%s768 + $0xc4] sm:$0xf]
        %v2629 = vld [vmem:[%s768 + $0xc8] sm:$0xf]
        %v2630 = vld [vmem:[%s768 + $0xcc] sm:$0xf]
        %v2631 = vld [vmem:[%s768 + $0xd0] sm:$0xf]
        %v2632 = vld [vmem:[%s768 + $0xd4] sm:$0xf]
        %v2633 = vld [vmem:[%s768 + $0xd8] sm:$0xf]
        %v2634 = vld [vmem:[%s768 + $0xdc] sm:$0xf]
        %v2635 = vld [vmem:[%s768 + $0xe0] sm:$0xf]
        %v2636 = vld [vmem:[%s768 + $0xe4] sm:$0xf]
        %v2637 = vld [vmem:[%s768 + $0xe8] sm:$0xf]
        %v2638 = vld [vmem:[%s768 + $0xec] sm:$0xf]
        %v2639 = vld [vmem:[%s768 + $0xf0] sm:$0xf]
        %v2640 = vld [vmem:[%s768 + $0xf4] sm:$0xf]
        %v2641 = vld [vmem:[%s768 + $0xf8] sm:$0xf]
        %v2642 = vld [vmem:[%s768 + $0xfc] sm:$0xf]
        %v2707 = vunpack.c.l.b16 %v2579
        %v2708 = vunpack.c.l.b16 %v2580
        %v2709 = vunpack.c.l.b16 %v2581
        %v2710 = vunpack.c.l.b16 %v2582
        %v2711 = vunpack.c.l.b16 %v2583
        %v2712 = vunpack.c.l.b16 %v2584
        %v2713 = vunpack.c.l.b16 %v2585
        %v2714 = vunpack.c.l.b16 %v2586
        %v2715 = vunpack.c.l.b16 %v2587
        %v2716 = vunpack.c.l.b16 %v2588
        %v2717 = vunpack.c.l.b16 %v2589
        %v2718 = vunpack.c.l.b16 %v2590
        %v2719 = vunpack.c.l.b16 %v2591
        %v2720 = vunpack.c.l.b16 %v2592
        %v2721 = vunpack.c.l.b16 %v2593
        %v2722 = vunpack.c.l.b16 %v2594
        %v2723 = vunpack.c.l.b16 %v2595
        %v2724 = vunpack.c.l.b16 %v2596
        %v2725 = vunpack.c.l.b16 %v2597
        %v2726 = vunpack.c.l.b16 %v2598
        %v2727 = vunpack.c.l.b16 %v2599
        %v2728 = vunpack.c.l.b16 %v2600
        %v2729 = vunpack.c.l.b16 %v2601
        %v2730 = vunpack.c.l.b16 %v2602
        %v2731 = vunpack.c.l.b16 %v2603
        %v2732 = vunpack.c.l.b16 %v2604
        %v2733 = vunpack.c.l.b16 %v2605
        %v2734 = vunpack.c.l.b16 %v2606
        %v2735 = vunpack.c.l.b16 %v2607
        %v2736 = vunpack.c.l.b16 %v2608
        %v2737 = vunpack.c.l.b16 %v2609
        %v2738 = vunpack.c.l.b16 %v2610
        %v2739 = vunpack.c.l.b16 %v2611
        %v2740 = vunpack.c.l.b16 %v2612
        %v2741 = vunpack.c.l.b16 %v2613
        %v2742 = vunpack.c.l.b16 %v2614
        %v2743 = vunpack.c.l.b16 %v2615
        %v2744 = vunpack.c.l.b16 %v2616
        %v2745 = vunpack.c.l.b16 %v2617
        %v2746 = vunpack.c.l.b16 %v2618
        %v2747 = vunpack.c.l.b16 %v2619
        %v2748 = vunpack.c.l.b16 %v2620
        %v2749 = vunpack.c.l.b16 %v2621
        %v2750 = vunpack.c.l.b16 %v2622
        %v2751 = vunpack.c.l.b16 %v2623
        %v2752 = vunpack.c.l.b16 %v2624
        %v2753 = vunpack.c.l.b16 %v2625
        %v2754 = vunpack.c.l.b16 %v2626
        %v2755 = vunpack.c.l.b16 %v2627
        %v2756 = vunpack.c.l.b16 %v2628
        %v2757 = vunpack.c.l.b16 %v2629
        %v2758 = vunpack.c.l.b16 %v2630
        %v2759 = vunpack.c.l.b16 %v2631
        %v2760 = vunpack.c.l.b16 %v2632
        %v2761 = vunpack.c.l.b16 %v2633
        %v2762 = vunpack.c.l.b16 %v2634
        %v2763 = vunpack.c.l.b16 %v2635
        %v2764 = vunpack.c.l.b16 %v2636
        %v2765 = vunpack.c.l.b16 %v2637
        %v2766 = vunpack.c.l.b16 %v2638
        %v2767 = vunpack.c.l.b16 %v2639
        %v2768 = vunpack.c.l.b16 %v2640
        %v2769 = vunpack.c.l.b16 %v2641
        %v2770 = vunpack.c.l.b16 %v2642
        %v2771 = vpack.c.b16 %v2708, %v2707
        %v2772 = vpack.c.b16 %v2710, %v2709
        %v2773 = vpack.c.b16 %v2712, %v2711
        %v2774 = vpack.c.b16 %v2714, %v2713
        %v2775 = vpack.c.b16 %v2716, %v2715
        %v2776 = vpack.c.b16 %v2718, %v2717
        %v2777 = vpack.c.b16 %v2720, %v2719
        %v2778 = vpack.c.b16 %v2722, %v2721
        %v2779 = vpack.c.b16 %v2724, %v2723
        %v2780 = vpack.c.b16 %v2726, %v2725
        %v2781 = vpack.c.b16 %v2728, %v2727
        %v2782 = vpack.c.b16 %v2730, %v2729
        %v2783 = vpack.c.b16 %v2732, %v2731
        %v2784 = vpack.c.b16 %v2734, %v2733
        %v2785 = vpack.c.b16 %v2736, %v2735
        %v2786 = vpack.c.b16 %v2738, %v2737
        %v2787 = vpack.c.b16 %v2740, %v2739
        %v2788 = vpack.c.b16 %v2742, %v2741
        %v2789 = vpack.c.b16 %v2744, %v2743
        %v2790 = vpack.c.b16 %v2746, %v2745
        %v2791 = vpack.c.b16 %v2748, %v2747
        %v2792 = vpack.c.b16 %v2750, %v2749
        %v2793 = vpack.c.b16 %v2752, %v2751
        %v2794 = vpack.c.b16 %v2754, %v2753
        %v2795 = vpack.c.b16 %v2756, %v2755
        %v2796 = vpack.c.b16 %v2758, %v2757
        %v2797 = vpack.c.b16 %v2760, %v2759
        %v2798 = vpack.c.b16 %v2762, %v2761
        %v2799 = vpack.c.b16 %v2764, %v2763
        %v2800 = vpack.c.b16 %v2766, %v2765
        %v2801 = vpack.c.b16 %v2768, %v2767
        %v2802 = vpack.c.b16 %v2770, %v2769
        %2835 = vmatprep.subr.bf16.mxu0 0
        %2836 = vmatpush1.bf16.msra.mxu0 %v2771
        %2837 = vmatprep.subr.bf16.mxu0 0
        %2838 = vmatpush1.bf16.msra.mxu0 %v2772
        %2839 = vmatprep.subr.bf16.mxu0 0
        %2840 = vmatpush1.bf16.msra.mxu0 %v2773
        %2841 = vmatprep.subr.bf16.mxu0 0
        %2842 = vmatpush1.bf16.msra.mxu0 %v2774
        %2843 = vmatprep.subr.bf16.mxu0 0
        %2844 = vmatpush1.bf16.msra.mxu0 %v2775
        %2845 = vmatprep.subr.bf16.mxu0 0
        %2846 = vmatpush1.bf16.msra.mxu0 %v2776
        %2847 = vmatprep.subr.bf16.mxu0 0
        %2848 = vmatpush1.bf16.msra.mxu0 %v2777
        %2849 = vmatprep.subr.bf16.mxu0 0
        %2850 = vmatpush1.bf16.msra.mxu0 %v2778
        %2851 = vmatprep.subr.bf16.mxu0 0
        %2852 = vmatpush1.bf16.msra.mxu0 %v2779
        %2853 = vmatprep.subr.bf16.mxu0 0
        %2854 = vmatpush1.bf16.msra.mxu0 %v2780
        %2855 = vmatprep.subr.bf16.mxu0 0
        %2856 = vmatpush1.bf16.msra.mxu0 %v2781
        %2857 = vmatprep.subr.bf16.mxu0 0
        %2858 = vmatpush1.bf16.msra.mxu0 %v2782
        %2859 = vmatprep.subr.bf16.mxu0 0
        %2860 = vmatpush1.bf16.msra.mxu0 %v2783
        %2861 = vmatprep.subr.bf16.mxu0 0
        %2862 = vmatpush1.bf16.msra.mxu0 %v2784
        %2863 = vmatprep.subr.bf16.mxu0 0
        %2864 = vmatpush1.bf16.msra.mxu0 %v2785
        %2865 = vmatprep.subr.bf16.mxu0 0
        %2866 = vmatpush1.bf16.msra.mxu0 %v2786
        %2867 = vmatprep.mubr.bf16.mxu0 %v2564
        %2868 = vmatmul.mubr.bf16.gmra.mrb[0].mxu0 %v2563
        %v2869 = vpop.f32.mrb[0].mxu0
        %v2870 = vadd.f32 0.0, %v2869
        %v2871 = vpop.f32.mrb[0].mxu0
        %v2872 = vpop.f32.mrb[0].mxu0
        %v2873 = vadd.f32 0.0, %v2872
        %v2874 = vpop.f32.mrb[0].mxu0
        %2875 = vmatprep.mubr.bf16.mxu0 %v2568
        %2876 = vmatmul.mubr.bf16.gmra.mrb[0].mxu0 %v2567
        %v2877 = vpop.f32.mrb[0].mxu0
        %v2878 = vadd.f32 0.0, %v2877
        %v2879 = vpop.f32.mrb[0].mxu0
        %v2880 = vpop.f32.mrb[0].mxu0
        %v2881 = vadd.f32 0.0, %v2880
        %v2882 = vpop.f32.mrb[0].mxu0
        %2883 = vmatprep.mubr.bf16.mxu0 %v2572
        %2884 = vmatmul.mubr.bf16.gmra.mrb[0].mxu0 %v2571
        %v2885 = vpop.f32.mrb[0].mxu0
        %v2886 = vadd.f32 0.0, %v2885
        %v2887 = vpop.f32.mrb[0].mxu0
        %v2888 = vpop.f32.mrb[0].mxu0
        %v2889 = vadd.f32 0.0, %v2888
        %v2890 = vpop.f32.mrb[0].mxu0
        %2891 = vmatprep.mubr.bf16.mxu0 %v2576
        %2892 = vmatmul.mubr.bf16.gmra.mrb[0].mxu0 %v2575
        %v2893 = vpop.f32.mrb[0].mxu0
        %v2894 = vadd.f32 0.0, %v2893
        %v2895 = vpop.f32.mrb[0].mxu0
        %v2896 = vpop.f32.mrb[0].mxu0
        %v2897 = vadd.f32 0.0, %v2896
        %v2898 = vpop.f32.mrb[0].mxu0
        %2899 = vdwg.mxu0
        %2900 = vmatprep.subr.bf16.mxu0 0
        %2901 = vmatpush1.bf16.msra.mxu0 %v2787
        %2902 = vmatprep.subr.bf16.mxu0 0
        %2903 = vmatpush1.bf16.msra.mxu0 %v2788
        %2904 = vmatprep.subr.bf16.mxu0 0
        %2905 = vmatpush1.bf16.msra.mxu0 %v2789
        %2906 = vmatprep.subr.bf16.mxu0 0
        %2907 = vmatpush1.bf16.msra.mxu0 %v2790
        %2908 = vmatprep.subr.bf16.mxu0 0
        %2909 = vmatpush1.bf16.msra.mxu0 %v2791
        %2910 = vmatprep.subr.bf16.mxu0 0
        %2911 = vmatpush1.bf16.msra.mxu0 %v2792
        %2912 = vmatprep.subr.bf16.mxu0 0
        %2913 = vmatpush1.bf16.msra.mxu0 %v2793
        %2914 = vmatprep.subr.bf16.mxu0 0
        %2915 = vmatpush1.bf16.msra.mxu0 %v2794
        %2916 = vmatprep.subr.bf16.mxu0 0
        %2917 = vmatpush1.bf16.msra.mxu0 %v2795
        %2918 = vmatprep.subr.bf16.mxu0 0
        %2919 = vmatpush1.bf16.msra.mxu0 %v2796
        %2920 = vmatprep.subr.bf16.mxu0 0
        %2921 = vmatpush1.bf16.msra.mxu0 %v2797
        %2922 = vmatprep.subr.bf16.mxu0 0
        %2923 = vmatpush1.bf16.msra.mxu0 %v2798
        %2924 = vmatprep.subr.bf16.mxu0 0
        %2925 = vmatpush1.bf16.msra.mxu0 %v2799
        %2926 = vmatprep.subr.bf16.mxu0 0
        %2927 = vmatpush1.bf16.msra.mxu0 %v2800
        %2928 = vmatprep.subr.bf16.mxu0 0
        %2929 = vmatpush1.bf16.msra.mxu0 %v2801
        %2930 = vmatprep.subr.bf16.mxu0 0
        %2931 = vmatpush1.bf16.msra.mxu0 %v2802
        %2932 = vmatprep.mubr.bf16.mxu0 %v2566
        %2933 = vmatmul.mubr.bf16.gmra.mrb[0].mxu0 %v2565
        %v2934 = vpop.f32.mrb[0].mxu0
        %v2935 = vadd.f32 %v2870, %v2934
        %v2936 = vpop.f32.mrb[0].mxu0
        %v2937 = vpop.f32.mrb[0].mxu0
        %v2938 = vadd.f32 %v2873, %v2937
        %v2939 = vpop.f32.mrb[0].mxu0
        %2940 = vmatprep.mubr.bf16.mxu0 %v2570
        %2941 = vmatmul.mubr.bf16.gmra.mrb[0].mxu0 %v2569
        %v2942 = vpop.f32.mrb[0].mxu0
        %v2943 = vadd.f32 %v2878, %v2942
        %v2944 = vpop.f32.mrb[0].mxu0
        %v2945 = vpop.f32.mrb[0].mxu0
        %v2946 = vadd.f32 %v2881, %v2945
        %v2947 = vpop.f32.mrb[0].mxu0
        %2948 = vmatprep.mubr.bf16.mxu0 %v2574
        %2949 = vmatmul.mubr.bf16.gmra.mrb[0].mxu0 %v2573
        %v2950 = vpop.f32.mrb[0].mxu0
        %v2951 = vadd.f32 %v2886, %v2950
        %v2952 = vpop.f32.mrb[0].mxu0
        %v2953 = vpop.f32.mrb[0].mxu0
        %v2954 = vadd.f32 %v2889, %v2953
        %v2955 = vpop.f32.mrb[0].mxu0
        %2956 = vmatprep.mubr.bf16.mxu0 %v2578
        %2957 = vmatmul.mubr.bf16.gmra.mrb[0].mxu0 %v2577
        %v2958 = vpop.f32.mrb[0].mxu0
        %v2959 = vadd.f32 %v2894, %v2958
        %v2960 = vpop.f32.mrb[0].mxu0
        %v2961 = vpop.f32.mrb[0].mxu0
        %v2962 = vadd.f32 %v2897, %v2961
        %v2963 = vpop.f32.mrb[0].mxu0
        %2964 = vdwg.mxu0
        %v2965 = vadd.f32 %v1897, %v2935
        %v2966 = vadd.f32 %v1898, %v2938
        %v2967 = vadd.f32 %v1899, %v2943
        %v2968 = vadd.f32 %v1900, %v2946
        %v2969 = vadd.f32 %v1901, %v2951
        %v2970 = vadd.f32 %v1902, %v2954
        %v2971 = vadd.f32 %v1903, %v2959
        %v2972 = vadd.f32 %v1904, %v2962
        %v2973 = vld [vmem:[%s771] sm:$0x1]
        %v2975 = vlaneseq
        %v2976 = vshrl.u32 %v2975, 7
        %v2977 = vsub.s32 0, %v2976
        %v2978 = vrot.slane %v2973, %v2977
        %v2980 = vadd.f32 %v2965, %v2978
        %v2981 = vadd.f32 %v2966, %v2978
        %v2982 = vadd.f32 %v2967, %v2978
        %v2983 = vadd.f32 %v2968, %v2978
        %v2984 = vadd.f32 %v2969, %v2978
        %v2985 = vadd.f32 %v2970, %v2978
        %v2986 = vadd.f32 %v2971, %v2978
        %v2987 = vadd.f32 %v2972, %v2978
        %2988 = vst [vmem:[#allocation2] sm:$0xff] %v2980
        %2989 = vst [vmem:[#allocation2 + $0x8] sm:$0xff] %v2981
        %2990 = vst [vmem:[#allocation2 + $0x10] sm:$0xff] %v2982
        %2991 = vst [vmem:[#allocation2 + $0x18] sm:$0xff] %v2983
        %2992 = vst [vmem:[#allocation2 + $0x20] sm:$0xff] %v2984
        %2993 = vst [vmem:[#allocation2 + $0x28] sm:$0xff] %v2985
        %2994 = vst [vmem:[#allocation2 + $0x30] sm:$0xff] %v2986
        %2995 = vst [vmem:[#allocation2 + $0x38] sm:$0xff] %v2987
        %p2996 = scmp.eq.s32.totalorder %s37, 1
        // Predicated region
        $region97: #{gpt2_forward.1} parent=87 // pred_check
          %p2997 = pneg %p2996
        $region98: #{gpt2_forward.1} parent=87 // pred_check_branch
          %2999 = sbr.rel (%p2997) target = $region100
        $region99: #{gpt2_forward.1} parent=87 // pred_region
          %v3000 = vld [vmem:[%s13] sm:$0x1]
          %v3001 = vld [vmem:[%s14] sm:$0x1]
          %3002 = vadd.xlane.f32.xlu0 %v2980
          %v3003 = vpop.xlane.xlu0 %3002
          %3004 = vadd.xlane.f32.xlu0 %v2981
          %v3005 = vpop.xlane.xlu0 %3004
          %3006 = vadd.xlane.f32.xlu0 %v2982
          %v3007 = vpop.xlane.xlu0 %3006
          %3008 = vadd.xlane.f32.xlu0 %v2983
          %v3009 = vpop.xlane.xlu0 %3008
          %3010 = vadd.xlane.f32.xlu0 %v2984
          %v3011 = vpop.xlane.xlu0 %3010
          %3012 = vadd.xlane.f32.xlu0 %v2985
          %v3013 = vpop.xlane.xlu0 %3012
          %3014 = vadd.xlane.f32.xlu0 %v2986
          %v3015 = vpop.xlane.xlu0 %3014
          %3016 = vadd.xlane.f32.xlu0 %v2987
          %v3017 = vpop.xlane.xlu0 %3016
          %v3018 = vmul.f32 %v3003, %v1035
          %v3019 = vmul.f32 %v3005, %v1035
          %v3020 = vmul.f32 %v3007, %v1035
          %v3021 = vmul.f32 %v3009, %v1035
          %v3022 = vmul.f32 %v3011, %v1035
          %v3023 = vmul.f32 %v3013, %v1035
          %v3024 = vmul.f32 %v3015, %v1035
          %v3025 = vmul.f32 %v3017, %v1035
          %v3026 = vmul.f32 %v2980, %v2980
          %v3027 = vmul.f32 %v2981, %v2981
          %v3028 = vmul.f32 %v2982, %v2982
          %v3029 = vmul.f32 %v2983, %v2983
          %v3030 = vmul.f32 %v2984, %v2984
          %v3031 = vmul.f32 %v2985, %v2985
          %v3032 = vmul.f32 %v2986, %v2986
          %v3033 = vmul.f32 %v2987, %v2987
          %3034 = vadd.xlane.f32.xlu0 %v3026
          %v3035 = vpop.xlane.xlu0 %3034
          %3036 = vadd.xlane.f32.xlu0 %v3027
          %v3037 = vpop.xlane.xlu0 %3036
          %3038 = vadd.xlane.f32.xlu0 %v3028
          %v3039 = vpop.xlane.xlu0 %3038
          %3040 = vadd.xlane.f32.xlu0 %v3029
          %v3041 = vpop.xlane.xlu0 %3040
          %3042 = vadd.xlane.f32.xlu0 %v3030
          %v3043 = vpop.xlane.xlu0 %3042
          %3044 = vadd.xlane.f32.xlu0 %v3031
          %v3045 = vpop.xlane.xlu0 %3044
          %3046 = vadd.xlane.f32.xlu0 %v3032
          %v3047 = vpop.xlane.xlu0 %3046
          %3048 = vadd.xlane.f32.xlu0 %v3033
          %v3049 = vpop.xlane.xlu0 %3048
          %v3050 = vmul.f32 %v3035, %v1035
          %v3051 = vmul.f32 %v3037, %v1035
          %v3052 = vmul.f32 %v3039, %v1035
          %v3053 = vmul.f32 %v3041, %v1035
          %v3054 = vmul.f32 %v3043, %v1035
          %v3055 = vmul.f32 %v3045, %v1035
          %v3056 = vmul.f32 %v3047, %v1035
          %v3057 = vmul.f32 %v3049, %v1035
          %v3058 = vsub.f32 %v2980, %v3018
          %v3059 = vsub.f32 %v2981, %v3019
          %v3060 = vsub.f32 %v2982, %v3020
          %v3061 = vsub.f32 %v2983, %v3021
          %v3062 = vsub.f32 %v2984, %v3022
          %v3063 = vsub.f32 %v2985, %v3023
          %v3064 = vsub.f32 %v2986, %v3024
          %v3065 = vsub.f32 %v2987, %v3025
          %v3066 = vmul.f32 %v3018, %v3018
          %v3067 = vmul.f32 %v3019, %v3019
          %v3068 = vmul.f32 %v3020, %v3020
          %v3069 = vmul.f32 %v3021, %v3021
          %v3070 = vmul.f32 %v3022, %v3022
          %v3071 = vmul.f32 %v3023, %v3023
          %v3072 = vmul.f32 %v3024, %v3024
          %v3073 = vmul.f32 %v3025, %v3025
          %v3074 = vsub.f32 %v3050, %v3066
          %v3075 = vsub.f32 %v3051, %v3067
          %v3076 = vsub.f32 %v3052, %v3068
          %v3077 = vsub.f32 %v3053, %v3069
          %v3078 = vsub.f32 %v3054, %v3070
          %v3079 = vsub.f32 %v3055, %v3071
          %v3080 = vsub.f32 %v3056, %v3072
          %v3081 = vsub.f32 %v3057, %v3073
          %v3082 = vadd.f32 %v3074, 1e-05
          %v3083 = vadd.f32 %v3075, 1e-05
          %v3084 = vadd.f32 %v3076, 1e-05
          %v3085 = vadd.f32 %v3077, 1e-05
          %v3086 = vadd.f32 %v3078, 1e-05
          %v3087 = vadd.f32 %v3079, 1e-05
          %v3088 = vadd.f32 %v3080, 1e-05
          %v3089 = vadd.f32 %v3081, 1e-05
          %v3090 = vrsqrt.pop %v3082
          %v3091 = vrsqrt.pop %v3083
          %v3092 = vrsqrt.pop %v3084
          %v3093 = vrsqrt.pop %v3085
          %v3094 = vrsqrt.pop %v3086
          %v3095 = vrsqrt.pop %v3087
          %v3096 = vrsqrt.pop %v3088
          %v3097 = vrsqrt.pop %v3089
          %v3098 = vmul.f32 %v3058, %v3090
          %v3099 = vmul.f32 %v3059, %v3091
          %v3100 = vmul.f32 %v3060, %v3092
          %v3101 = vmul.f32 %v3061, %v3093
          %v3102 = vmul.f32 %v3062, %v3094
          %v3103 = vmul.f32 %v3063, %v3095
          %v3104 = vmul.f32 %v3064, %v3096
          %v3105 = vmul.f32 %v3065, %v3097
          %v3107 = vlaneseq
          %v3108 = vshrl.u32 %v3107, 7
          %v3109 = vsub.s32 0, %v3108
          %v3110 = vrot.slane %v3000, %v3109
          %v3112 = vmul.f32 %v3098, %v3110
          %v3113 = vmul.f32 %v3099, %v3110
          %v3114 = vmul.f32 %v3100, %v3110
          %v3115 = vmul.f32 %v3101, %v3110
          %v3116 = vmul.f32 %v3102, %v3110
          %v3117 = vmul.f32 %v3103, %v3110
          %v3118 = vmul.f32 %v3104, %v3110
          %v3119 = vmul.f32 %v3105, %v3110
          %v3121 = vlaneseq
          %v3122 = vshrl.u32 %v3121, 7
          %v3123 = vsub.s32 0, %v3122
          %v3124 = vrot.slane %v3001, %v3123
          %v3126 = vadd.f32 %v3112, %v3124
          %v3127 = vadd.f32 %v3113, %v3124
          %v3128 = vadd.f32 %v3114, %v3124
          %v3129 = vadd.f32 %v3115, %v3124
          %v3130 = vadd.f32 %v3116, %v3124
          %v3131 = vadd.f32 %v3117, %v3124
          %v3132 = vadd.f32 %v3118, %v3124
          %v3133 = vadd.f32 %v3119, %v3124
          %v3134 = vpack.c.bf16 %v3127, %v3126
          %v3135 = vpack.c.bf16 %v3129, %v3128
          %v3136 = vpack.c.bf16 %v3131, %v3130
          %v3137 = vpack.c.bf16 %v3133, %v3132
          %v3138 = vld [vmem:[%s15] sm:$0xff]
          %v3139 = vld [vmem:[%s15 + $0x8] sm:$0xff]
          %v3140 = vld [vmem:[%s15 + $0x10] sm:$0xff]
          %v3141 = vld [vmem:[%s15 + $0x18] sm:$0xff]
          %v3142 = vld [vmem:[%s15 + $0x20] sm:$0xff]
          %v3143 = vld [vmem:[%s15 + $0x28] sm:$0xff]
          %v3144 = vld [vmem:[%s15 + $0x30] sm:$0xff]
          %v3145 = vld [vmem:[%s15 + $0x38] sm:$0xff]
          %v3146 = vld [vmem:[%s15 + $0x40] sm:$0xff]
          %v3147 = vld [vmem:[%s15 + $0x48] sm:$0xff]
          %v3148 = vld [vmem:[%s15 + $0x50] sm:$0xff]
          %v3149 = vld [vmem:[%s15 + $0x58] sm:$0xff]
          %v3150 = vld [vmem:[%s15 + $0x60] sm:$0xff]
          %v3151 = vld [vmem:[%s15 + $0x68] sm:$0xff]
          %v3152 = vld [vmem:[%s15 + $0x70] sm:$0xff]
          %v3153 = vld [vmem:[%s15 + $0x78] sm:$0xff]
          %v3154 = vld [vmem:[#allocation3] sm:$0x3]
          %v3156 = vlaneseq
          %v3157 = vshrl.u32 %v3156, 7
          %v3158 = vsub.s32 0, %v3157
          %v3159 = vrot.slane %v3154, %v3158
          %v3160 = vlaneseq
          %v3161 = vshrl.u32 %v3160, 7
          %v3162 = vsub.s32 1, %v3161
          %v3163 = vrot.slane %v3154, %v3162
          %v3182 = vunpack.c.l.b16 %v3138
          %v3183 = vunpack.c.h.b16 %v3138
          %v3184 = vunpack.c.l.b16 %v3139
          %v3185 = vunpack.c.h.b16 %v3139
          %v3186 = vunpack.c.l.b16 %v3140
          %v3187 = vunpack.c.h.b16 %v3140
          %v3188 = vunpack.c.l.b16 %v3141
          %v3189 = vunpack.c.h.b16 %v3141
          %v3190 = vunpack.c.l.b16 %v3142
          %v3191 = vunpack.c.h.b16 %v3142
          %v3192 = vunpack.c.l.b16 %v3143
          %v3193 = vunpack.c.h.b16 %v3143
          %v3194 = vunpack.c.l.b16 %v3144
          %v3195 = vunpack.c.h.b16 %v3144
          %v3196 = vunpack.c.l.b16 %v3145
          %v3197 = vunpack.c.h.b16 %v3145
          %v3198 = vunpack.c.l.b16 %v3146
          %v3199 = vunpack.c.h.b16 %v3146
          %v3200 = vunpack.c.l.b16 %v3147
          %v3201 = vunpack.c.h.b16 %v3147
          %v3202 = vunpack.c.l.b16 %v3148
          %v3203 = vunpack.c.h.b16 %v3148
          %v3204 = vunpack.c.l.b16 %v3149
          %v3205 = vunpack.c.h.b16 %v3149
          %v3206 = vunpack.c.l.b16 %v3150
          %v3207 = vunpack.c.h.b16 %v3150
          %v3208 = vunpack.c.l.b16 %v3151
          %v3209 = vunpack.c.h.b16 %v3151
          %v3210 = vunpack.c.l.b16 %v3152
          %v3211 = vunpack.c.h.b16 %v3152
          %v3212 = vunpack.c.l.b16 %v3153
          %v3213 = vunpack.c.h.b16 %v3153
          %v3214 = vpack.c.b16 %v3184, %v3182
          %v3215 = vpack.c.b16 %v3185, %v3183
          %v3216 = vpack.c.b16 %v3188, %v3186
          %v3217 = vpack.c.b16 %v3189, %v3187
          %v3218 = vpack.c.b16 %v3192, %v3190
          %v3219 = vpack.c.b16 %v3193, %v3191
          %v3220 = vpack.c.b16 %v3196, %v3194
          %v3221 = vpack.c.b16 %v3197, %v3195
          %v3222 = vpack.c.b16 %v3200, %v3198
          %v3223 = vpack.c.b16 %v3201, %v3199
          %v3224 = vpack.c.b16 %v3204, %v3202
          %v3225 = vpack.c.b16 %v3205, %v3203
          %v3226 = vpack.c.b16 %v3208, %v3206
          %v3227 = vpack.c.b16 %v3209, %v3207
          %v3228 = vpack.c.b16 %v3212, %v3210
          %v3229 = vpack.c.b16 %v3213, %v3211
          %3246 = vmatprep.subr.bf16.mxu0 %v3215
          %3247 = vmatpush1.bf16.msra.mxu0 %v3214
          %3248 = vmatprep.subr.bf16.mxu0 %v3217
          %3249 = vmatpush1.bf16.msra.mxu0 %v3216
          %3250 = vmatprep.subr.bf16.mxu0 %v3219
          %3251 = vmatpush1.bf16.msra.mxu0 %v3218
          %3252 = vmatprep.subr.bf16.mxu0 %v3221
          %3253 = vmatpush1.bf16.msra.mxu0 %v3220
          %3254 = vmatprep.subr.bf16.mxu0 %v3223
          %3255 = vmatpush1.bf16.msra.mxu0 %v3222
          %3256 = vmatprep.subr.bf16.mxu0 %v3225
          %3257 = vmatpush1.bf16.msra.mxu0 %v3224
          %3258 = vmatprep.subr.bf16.mxu0 %v3227
          %3259 = vmatpush1.bf16.msra.mxu0 %v3226
          %3260 = vmatprep.subr.bf16.mxu0 %v3229
          %3261 = vmatpush1.bf16.msra.mxu0 %v3228
          %3262 = vmatprep.subr.bf16.mxu0 0
          %3263 = vmatpush1.bf16.msra.mxu0 0
          %3264 = vmatprep.subr.bf16.mxu0 0
          %3265 = vmatpush1.bf16.msra.mxu0 0
          %3266 = vmatprep.subr.bf16.mxu0 0
          %3267 = vmatpush1.bf16.msra.mxu0 0
          %3268 = vmatprep.subr.bf16.mxu0 0
          %3269 = vmatpush1.bf16.msra.mxu0 0
          %3270 = vmatprep.subr.bf16.mxu0 0
          %3271 = vmatpush1.bf16.msra.mxu0 0
          %3272 = vmatprep.subr.bf16.mxu0 0
          %3273 = vmatpush1.bf16.msra.mxu0 0
          %3274 = vmatprep.subr.bf16.mxu0 0
          %3275 = vmatpush1.bf16.msra.mxu0 0
          %3276 = vmatprep.subr.bf16.mxu0 0
          %3277 = vmatpush1.bf16.msra.mxu0 0
          %3278 = vmatprep.mubr.bf16.mxu0 0
          %3279 = vmatmul.mubr.bf16.gmra.mrb[0].mxu0 %v3134
          %v3280 = vpop.f32.mrb[0].mxu0
          %v3281 = vadd.f32 %v3159, %v3280
          %v3282 = vpop.f32.mrb[0].mxu0
          %v3283 = vadd.f32 %v3163, %v3282
          %v3284 = vpop.f32.mrb[0].mxu0
          %v3285 = vadd.f32 %v3159, %v3284
          %v3286 = vpop.f32.mrb[0].mxu0
          %v3287 = vadd.f32 %v3163, %v3286
          %3288 = vmatprep.mubr.bf16.mxu0 0
          %3289 = vmatmul.mubr.bf16.gmra.mrb[0].mxu0 %v3135
          %v3290 = vpop.f32.mrb[0].mxu0
          %v3291 = vadd.f32 %v3159, %v3290
          %v3292 = vpop.f32.mrb[0].mxu0
          %v3293 = vadd.f32 %v3163, %v3292
          %v3294 = vpop.f32.mrb[0].mxu0
          %v3295 = vadd.f32 %v3159, %v3294
          %v3296 = vpop.f32.mrb[0].mxu0
          %v3297 = vadd.f32 %v3163, %v3296
          %3298 = vmatprep.mubr.bf16.mxu0 0
          %3299 = vmatmul.mubr.bf16.gmra.mrb[0].mxu0 %v3136
          %v3300 = vpop.f32.mrb[0].mxu0
          %v3301 = vadd.f32 %v3159, %v3300
          %v3302 = vpop.f32.mrb[0].mxu0
          %v3303 = vadd.f32 %v3163, %v3302
          %v3304 = vpop.f32.mrb[0].mxu0
          %v3305 = vadd.f32 %v3159, %v3304
          %v3306 = vpop.f32.mrb[0].mxu0
          %v3307 = vadd.f32 %v3163, %v3306
          %3308 = vmatprep.mubr.bf16.mxu0 0
          %3309 = vmatmul.mubr.bf16.gmra.mrb[0].mxu0 %v3137
          %v3310 = vpop.f32.mrb[0].mxu0
          %v3311 = vadd.f32 %v3159, %v3310
          %v3312 = vpop.f32.mrb[0].mxu0
          %v3313 = vadd.f32 %v3163, %v3312
          %v3314 = vpop.f32.mrb[0].mxu0
          %v3315 = vadd.f32 %v3159, %v3314
          %v3316 = vpop.f32.mrb[0].mxu0
          %v3317 = vadd.f32 %v3163, %v3316
          %3318 = vdwg.mxu0
          %3319 = vst [vmem:[%s719] sm:$0xff] %v3281
          %3320 = vst [vmem:[%s719 + $0x8] sm:$0xff] %v3283
          %3321 = vst [vmem:[%s719 + $0x10] sm:$0xff] %v3285
          %3322 = vst [vmem:[%s719 + $0x18] sm:$0xff] %v3287
          %3323 = vst [vmem:[%s719 + $0x20] sm:$0xff] %v3291
          %3324 = vst [vmem:[%s719 + $0x28] sm:$0xff] %v3293
          %3325 = vst [vmem:[%s719 + $0x30] sm:$0xff] %v3295
          %3326 = vst [vmem:[%s719 + $0x38] sm:$0xff] %v3297
          %3327 = vst [vmem:[%s719 + $0x40] sm:$0xff] %v3301
          %3328 = vst [vmem:[%s719 + $0x48] sm:$0xff] %v3303
          %3329 = vst [vmem:[%s719 + $0x50] sm:$0xff] %v3305
          %3330 = vst [vmem:[%s719 + $0x58] sm:$0xff] %v3307
          %3331 = vst [vmem:[%s719 + $0x60] sm:$0xff] %v3311
          %3332 = vst [vmem:[%s719 + $0x68] sm:$0xff] %v3313
          %3333 = vst [vmem:[%s719 + $0x70] sm:$0xff] %v3315
          %3334 = vst [vmem:[%s719 + $0x78] sm:$0xff] %v3317
        $region100: #{gpt2_forward.1} parent=87 // pred_fallthru
          _
        %s3335 = sand.u32 %s474, 1
        %s3336 = scalar_lea.sflag [#allocation5], %s3335
        %s3337 = sand.u32 %s474, 1
        %s3338 = smul.addr %s3337, 128
        %s3339 = scalar_lea.vmem [#allocation6], %s3338
        // Predicated region
        $region101: #{gpt2_forward.1} parent=87 // pred_check
          %p3340 = pneg %p484
        $region102: #{gpt2_forward.1} parent=87 // pred_check_branch
          %3342 = sbr.rel (%p3340) target = $region104
        $region103: #{gpt2_forward.1} parent=87 // pred_region
          %s3343 = smul.u32 8, %s36
          %s3345 = ssub.s32 2048, 2048
          %3346 = vsyncadd %s3336, %s3345
          %s3347 = smul.addr %s3343, 2
          %s3348 = smul.addr %s3347, 128
          %s3349 = scalar_lea.hbm %s17, %s3348
          %s3350 = sshll.u32 %s3339, 4
          %s3351 = int_to_ptr.vmem [resolvable:$true] %s3350
          %3356 = dma.vmem_to_hbm [thread:$0]  %s3351, 2048, %s3349, %s3336, 256, 256, 16
        $region104: #{gpt2_forward.1} parent=87 // pred_fallthru
          _
      $region88: #{gpt2_forward.1} parent=5 // pred_fallthru
        _
      %p3357 = scmp.le.s32.totalorder 2, %s27
      // Predicated region
      $region105: #{gpt2_forward.1} parent=5 // pred_check
        %p3358 = pneg %p3357
      $region106: #{gpt2_forward.1} parent=5 // pred_check_branch
        %3360 = sbr.rel (%p3358) target = $region108
      $region107: #{gpt2_forward.1} parent=5 // pred_region
        %s3361 = ssub.s32 %s27, 2
        // Predicated region
        $region109: #{gpt2_forward.1} parent=107 // pred_check
          %p3362 = pneg %p490
        $region110: #{gpt2_forward.1} parent=107 // pred_check_branch
          %3364 = sbr.rel (%p3362) target = $region112
        $region111: #{gpt2_forward.1} parent=107 // pred_region
          %s3365 = sand.u32 %s475, 1
          %s3366 = scalar_lea.sflag [#allocation5], %s3365
          %s3367 = sand.u32 %s475, 1
          %s3368 = smul.addr %s3367, 128
          %s3369 = scalar_lea.vmem [#allocation6], %s3368
          %3370 = dma.done %s3366, 2048
        $region112: #{gpt2_forward.1} parent=107 // pred_fallthru
          _
      $region108: #{gpt2_forward.1} parent=5 // pred_fallthru
        _
    $region6: #{gpt2_forward.1} parent=1 // loop_footer
      %s31 = sadd.s32 1, %s27
    $region7: #{gpt2_forward.1} parent=1 // loop_footer_branch
      %26 = sbr.rel target = $region3
    $region8: #{gpt2_forward.1} parent=1 // loop_exit
      _
    %3371 = vsyncpa [#allocation4], 1
    %s3372 = scalar_lea.sflag [#allocation4], 1
    %3373 = vsyncpa %s3372, 1
    %3374 = vsyncpa [#allocation5], 1
    %s3375 = scalar_lea.sflag [#allocation5], 1
    %3376 = vsyncpa %s3375, 1

</llo_original>
